<compile_context>
chip_gen: v6e
topology: v6e:2x2x1
jax: 0.10.0
libtpu: 0.0.40
codegen_flags: <defaults>
</compile_context>

<pallas_src>
import functools

import jax
import jax.numpy as jnp
from jax import lax
from jax.experimental import pallas as pl
from jax.experimental.pallas import tpu as pltpu

# --- config (mirrors the PyTorch module's globals) ---
NUM_EMBD = 192
BLOCK_SIZE = 128
NUM_HEADS = 6
NUM_LAYERS = 6
HEAD_SIZE = NUM_EMBD // NUM_HEADS  # 32
FFN_DIM = 4 * NUM_EMBD             # 768
LN_EPS = 1e-5                      # PyTorch nn.LayerNorm default
NEG_INF = -1e30                    # additive causal-mask value (exp underflows to 0)
# dropout = 0.3 -> identity at inference.


# ----------------------------------------------------------------------------
# In-kernel helpers
# ----------------------------------------------------------------------------
def _ln(x, g, b):
    m = jnp.mean(x, axis=-1, keepdims=True)
    xc = x - m
    v = jnp.mean(xc * xc, axis=-1, keepdims=True)
    return xc * lax.rsqrt(v + LN_EPS) * g + b


def _dot(a, b):
    return jnp.dot(a, b, preferred_element_type=jnp.float32)


def _dot_nt(a, b):  # a @ b.T without an explicit transpose
    return lax.dot_general(a, b, (((1,), (1,)), ((), ())),
                           preferred_element_type=jnp.float32)


# ----------------------------------------------------------------------------
# Fused whole-stack kernel: one grid step == one transformer block
# ----------------------------------------------------------------------------
def _stack_kernel(x0_ref, mask_ref,
                  ln1g_ref, ln1b_ref, wqkv_ref, wo_ref, bo_ref,
                  ln2g_ref, ln2b_ref, w1_ref, b1_ref, w2_ref, b2_ref,
                  lnfg_ref, lnfb_ref, wlm_ref, blm_ref,
                  logits_ref,
                  x_vmem, qkv_vmem, *, batch, seq):
    l = pl.program_id(0)
    C = NUM_EMBD

    # Residual stream enters VMEM once, at the first layer.
    @pl.when(l == 0)
    def _():
        x_vmem[...] = x0_ref[...]

    # ---- attention sub-block: LN1 -> fused QKV -> causal attention per head
    # ----                     -> single output projection per batch -> +res
    xn = _ln(x_vmem[...], ln1g_ref[0], ln1b_ref[0])        # (M, C)  f32
    # single lane-dense (M,192)@(192,576) matmul; 1/sqrt(hs) folded into W_q
    qkv_vmem[...] = _dot(xn, wqkv_ref[0])                  # (M, 3C)
    bias = mask_ref[...]                                    # (T, T) additive mask
    wo = wo_ref[0]                                          # hoisted loads
    bo = bo_ref[0]

    for b in range(batch):                                  # static unroll (small B)
        rows = pl.ds(b * seq, seq)
        heads = []
        for h in range(NUM_HEADS):                          # static unroll over heads
            c0 = h * HEAD_SIZE
            q = qkv_vmem[rows, pl.ds(c0, HEAD_SIZE)]                # (T, hs)
            k = qkv_vmem[rows, pl.ds(C + c0, HEAD_SIZE)]
            v = qkv_vmem[rows, pl.ds(2 * C + c0, HEAD_SIZE)]
            s = _dot_nt(q, k) + bias                                # (T, T)
            m = jnp.max(s, axis=-1, keepdims=True)
            e = jnp.exp(s - m)
            p = e * pl.reciprocal(jnp.sum(e, axis=-1, keepdims=True), approx=True)
            heads.append(_dot(p, v))                                # (T, hs)
        o = jnp.concatenate(heads, axis=-1)                         # (T, C)
        # one (T,192)@(192,192) projection per batch instead of 6 K=32 slivers
        x_vmem[rows, :] = x_vmem[rows, :] + _dot(o, wo) + bo

    # ---- FFN sub-block: LN2 -> W1 / ReLU -> W2 -> +res  (flattened B*T rows)
    x = x_vmem[...]
    xn2 = _ln(x, ln2g_ref[0], ln2b_ref[0])
    hid = jnp.maximum(_dot(xn2, w1_ref[0]) + b1_ref[0], 0.0)        # (M, 4C)
    x = x + _dot(hid, w2_ref[0]) + b2_ref[0]
    x_vmem[...] = x

    # ---- final LayerNorm + lm_head, fused into the last grid step
    @pl.when(l == NUM_LAYERS - 1)
    def _():
        xf = _ln(x, lnfg_ref[...], lnfb_ref[...])
        logits_ref[...] = (_dot(xf, wlm_ref[...]) + blm_ref[...]).astype(logits_ref.dtype)


def transformer_stack(x0, mask, pk, *, batch, seq):
    """Run the fused 6-layer stack + final LN + lm_head in one pallas_call."""
    M, C = x0.shape
    Vp = pk["w_lm"].shape[1]

    per_layer = lambda l: (l, 0, 0)   # stream layer l's weight slab
    const2 = lambda l: (0, 0)         # resident across all layers

    in_specs = [
        pl.BlockSpec((M, C), const2),                 # x0 (flattened embeddings)
        pl.BlockSpec((seq, seq), const2),             # additive causal mask
        pl.BlockSpec((1, 1, C), per_layer),           # ln1_g
        pl.BlockSpec((1, 1, C), per_layer),           # ln1_b
        pl.BlockSpec((1, C, 3 * C), per_layer),       # w_qkv (scale folded into Wq)
        pl.BlockSpec((1, C, C), per_layer),           # wo
        pl.BlockSpec((1, 1, C), per_layer),           # bo
        pl.BlockSpec((1, 1, C), per_layer),           # ln2_g
        pl.BlockSpec((1, 1, C), per_layer),           # ln2_b
        pl.BlockSpec((1, C, FFN_DIM), per_layer),     # w1
        pl.BlockSpec((1, 1, FFN_DIM), per_layer),     # b1
        pl.BlockSpec((1, FFN_DIM, C), per_layer),     # w2
        pl.BlockSpec((1, 1, C), per_layer),           # b2
        pl.BlockSpec((1, C), const2),                 # lnf_g
        pl.BlockSpec((1, C), const2),                 # lnf_b
        pl.BlockSpec((C, Vp), const2),                # w_lm (vocab padded to 128 lanes)
        pl.BlockSpec((1, Vp), const2),                # b_lm (padded)
    ]
    return pl.pallas_call(
        functools.partial(_stack_kernel, batch=batch, seq=seq),
        out_shape=jax.ShapeDtypeStruct((M, Vp), jnp.float32),
        grid=(NUM_LAYERS,),
        in_specs=in_specs,
        out_specs=pl.BlockSpec((M, Vp), const2),       # resident; written at last layer
        scratch_shapes=[
            pltpu.VMEM((M, C), jnp.float32),           # residual stream
            pltpu.VMEM((M, 3 * C), jnp.float32),       # fused QKV activations
        ],
        compiler_params=pltpu.CompilerParams(
            dimension_semantics=("arbitrary",),        # layers are sequential (carry)
            vmem_limit_bytes=32 * 1024 * 1024,         # headroom above v5e 16 MiB default
        ),
    )(x0, mask,
      pk["ln1_g"], pk["ln1_b"], pk["w_qkv"], pk["wo"], pk["bo"],
      pk["ln2_g"], pk["ln2_b"], pk["w1"], pk["b1"], pk["w2"], pk["b2"],
      pk["lnf_g"], pk["lnf_b"], pk["w_lm"], pk["b_lm"])


# ----------------------------------------------------------------------------
# Parameters (PyTorch-like layout) + packing for the fused kernel
# ----------------------------------------------------------------------------
def init_params(key, vocab_size):
    def dense(k, shape, scale=0.02):
        return (scale * jax.random.normal(k, shape)).astype(jnp.float32)

    keys = jax.random.split(key, 3 + NUM_LAYERS)
    params = {
        "tok_emb": dense(keys[0], (vocab_size, NUM_EMBD)),
        "pos_emb": dense(keys[1], (BLOCK_SIZE, NUM_EMBD)),
        "lnf_g": jnp.ones((NUM_EMBD,), jnp.float32),
        "lnf_b": jnp.zeros((NUM_EMBD,), jnp.float32),
        "w_lm": dense(keys[2], (NUM_EMBD, vocab_size)),
        "b_lm": jnp.zeros((vocab_size,), jnp.float32),
        "layers": [],
    }
    for i in range(NUM_LAYERS):
        lk = jax.random.split(keys[3 + i], 6)
        params["layers"].append({
            "wq": dense(lk[0], (NUM_HEADS, NUM_EMBD, HEAD_SIZE)),
            "wk": dense(lk[1], (NUM_HEADS, NUM_EMBD, HEAD_SIZE)),
            "wv": dense(lk[2], (NUM_HEADS, NUM_EMBD, HEAD_SIZE)),
            "wo": dense(lk[3], (NUM_EMBD, NUM_EMBD)),
            "bo": jnp.zeros((NUM_EMBD,), jnp.float32),
            "ln1_g": jnp.ones((NUM_EMBD,), jnp.float32),
            "ln1_b": jnp.zeros((NUM_EMBD,), jnp.float32),
            "ln2_g": jnp.ones((NUM_EMBD,), jnp.float32),
            "ln2_b": jnp.zeros((NUM_EMBD,), jnp.float32),
            "w1": dense(lk[4], (NUM_EMBD, FFN_DIM)),
            "b1": jnp.zeros((FFN_DIM,), jnp.float32),
            "w2": dense(lk[5], (FFN_DIM, NUM_EMBD)),
            "b2": jnp.zeros((NUM_EMBD,), jnp.float32),
        })
    return params


def pack_params(params):
    """Stack per-layer weights along a leading layer axis, fuse+pre-scale QKV,
    and pad the lm_head to a 128-lane vocab width."""
    C = NUM_EMBD
    vocab = params["w_lm"].shape[1]
    vocab_p = -(-vocab // 128) * 128
    scale = HEAD_SIZE ** (-0.5)

    def heads_to_cols(w):  # (H, C, hs) -> (C, H*hs), head h occupies cols [h*hs,(h+1)*hs)
        return jnp.transpose(w, (1, 0, 2)).reshape(C, NUM_HEADS * HEAD_SIZE)

    def stack(fn):
        return jnp.stack([fn(layer) for layer in params["layers"]], axis=0)

    # NOTE: weights kept f32 for bit-parity with the f32 PyTorch module; casting the
    # matmul inputs to bf16 (f32 accumulation) is a straightforward further win.
    return {
        "w_qkv": stack(lambda l: jnp.concatenate(
            [heads_to_cols(l["wq"]) * scale,      # fold 1/sqrt(head_size) into W_q
             heads_to_cols(l["wk"]),
             heads_to_cols(l["wv"])], axis=1)),                     # (L, C, 3C)
        "wo": stack(lambda l: l["wo"]),                             # (L, C, C)
        "bo": stack(lambda l: l["bo"].reshape(1, C)),               # (L, 1, C)
        "ln1_g": stack(lambda l: l["ln1_g"].reshape(1, C)),
        "ln1_b": stack(lambda l: l["ln1_b"].reshape(1, C)),
        "ln2_g": stack(lambda l: l["ln2_g"].reshape(1, C)),
        "ln2_b": stack(lambda l: l["ln2_b"].reshape(1, C)),
        "w1": stack(lambda l: l["w1"]),                             # (L, C, 4C)
        "b1": stack(lambda l: l["b1"].reshape(1, FFN_DIM)),
        "w2": stack(lambda l: l["w2"]),                             # (L, 4C, C)
        "b2": stack(lambda l: l["b2"].reshape(1, C)),
        "lnf_g": params["lnf_g"].reshape(1, C),
        "lnf_b": params["lnf_b"].reshape(1, C),
        "w_lm": jnp.pad(params["w_lm"], ((0, 0), (0, vocab_p - vocab))),
        "b_lm": jnp.pad(params["b_lm"], (0, vocab_p - vocab)).reshape(1, vocab_p),
    }


# ----------------------------------------------------------------------------
# Forward (mirrors BigramLanguageModel.forward)
# ----------------------------------------------------------------------------
def forward(params, idx, targets=None, packed=None):
    """Returns (logits, loss); loss is None when targets is None."""
    if packed is None:
        packed = pack_params(params)
    B, T = idx.shape
    vocab = params["w_lm"].shape[1]

    # glue: embedding gathers + positional add (gather has no clean Pallas path)
    tok = jnp.take(params["tok_emb"], idx, axis=0)            # (B, T, C)
    pos = params["pos_emb"][:T]                                # (T, C)
    x0 = (tok + pos).reshape(B * T, NUM_EMBD)                  # flatten B*T rows

    causal = jnp.tril(jnp.ones((T, T), dtype=bool))
    mask = jnp.where(causal, 0.0, NEG_INF).astype(jnp.float32)

    logits_p = transformer_stack(x0, mask, packed, batch=B, seq=T)  # (B*T, vocab_padded)
    logits = logits_p[:, :vocab].reshape(B, T, vocab)

    loss = None
    if targets is not None:
        logp = jax.nn.log_softmax(logits.reshape(B * T, vocab), axis=-1)
        loss = -jnp.mean(jnp.take_along_axis(logp, targets.reshape(B * T, 1), axis=-1))
    return logits, loss


# ----------------------------------------------------------------------------
# Pure-JAX reference (from the raw, unfused parameters) for correctness
# ----------------------------------------------------------------------------
def _ref_forward(params, idx, targets=None):
    B, T = idx.shape
    x = jnp.take(params["tok_emb"], idx, axis=0) + params["pos_emb"][:T]

    def ln(x, g, b):
        m = jnp.mean(x, -1, keepdims=True)
        v = jnp.mean((x - m) ** 2, -1, keepdims=True)
        return (x - m) * lax.rsqrt(v + LN_EPS) * g + b

    causal = jnp.tril(jnp.ones((T, T), bool))
    for layer in params["layers"]:
        xl = ln(x, layer["ln1_g"], layer["ln1_b"])
        q = jnp.einsum("btc,hcd->bhtd", xl, layer["wq"])
        k = jnp.einsum("btc,hcd->bhtd", xl, layer["wk"])
        v = jnp.einsum("btc,hcd->bhtd", xl, layer["wv"])
        s = jnp.einsum("bhtd,bhsd->bhts", q, k) * HEAD_SIZE ** (-0.5)
        s = jnp.where(causal, s, -jnp.inf)
        p = jax.nn.softmax(s, axis=-1)
        o = jnp.einsum("bhts,bhsd->bhtd", p, v)
        o = o.transpose(0, 2, 1, 3).reshape(B, T, NUM_EMBD)
        x = x + o @ layer["wo"] + layer["bo"]
        xl = ln(x, layer["ln2_g"], layer["ln2_b"])
        h = jnp.maximum(xl @ layer["w1"] + layer["b1"], 0.0)
        x = x + h @ layer["w2"] + layer["b2"]
    x = ln(x, params["lnf_g"], params["lnf_b"])
    logits = x @ params["w_lm"] + params["b_lm"]
    loss = None
    if targets is not None:
        V = logits.shape[-1]
        logp = jax.nn.log_softmax(logits.reshape(B * T, V), axis=-1)
        loss = -jnp.mean(jnp.take_along_axis(logp, targets.reshape(B * T, 1), axis=-1))
    return logits, loss


# ----------------------------------------------------------------------------
if __name__ == "__main__":
    VOCAB = 96
    B, T = 2, 8  # T <= block_size (128)

    key = jax.random.PRNGKey(0)
    pkey, ikey, tkey = jax.random.split(key, 3)
    params = init_params(pkey, VOCAB)
    packed = pack_params(params)
    idx = jax.random.randint(ikey, (B, T), 0, VOCAB, dtype=jnp.int32)
    targets = jax.random.randint(tkey, (B, T), 0, VOCAB, dtype=jnp.int32)

    fwd = jax.jit(lambda pk, i: forward(params, i, packed=pk))
    logits, _ = fwd(packed, idx)
    logits = jax.block_until_ready(logits)

    assert logits.shape == (B, T, VOCAB)
    assert bool(jnp.all(jnp.isfinite(logits)))

    ref_logits, ref_loss = _ref_forward(params, idx, targets)
    assert bool(jnp.allclose(logits, ref_logits, rtol=5e-3, atol=5e-3)), \
        "logits mismatch vs reference"

    loss_fn = jax.jit(lambda pk, i, t: forward(params, i, targets=t, packed=pk)[1])
    loss = jax.block_until_ready(loss_fn(packed, idx, targets))
    assert bool(jnp.isfinite(loss))
    assert bool(jnp.allclose(loss, ref_loss, rtol=5e-3, atol=5e-3)), \
        "loss mismatch vs reference"

    print("KERNEL_OK")
</pallas_src>

<mosaic_0001>
module attributes {stable_mosaic.version = 11 : i64} {
  func.func @_stack_kernel(%arg0: i32, %arg1: memref<16x192xf32, #tpu.memory_space<vmem>>, %arg2: memref<8x8xf32, #tpu.memory_space<vmem>>, %arg3: memref<1x1x192xf32, #tpu.memory_space<vmem>>, %arg4: memref<1x1x192xf32, #tpu.memory_space<vmem>>, %arg5: memref<1x192x576xf32, #tpu.memory_space<vmem>>, %arg6: memref<1x192x192xf32, #tpu.memory_space<vmem>>, %arg7: memref<1x1x192xf32, #tpu.memory_space<vmem>>, %arg8: memref<1x1x192xf32, #tpu.memory_space<vmem>>, %arg9: memref<1x1x192xf32, #tpu.memory_space<vmem>>, %arg10: memref<1x192x768xf32, #tpu.memory_space<vmem>>, %arg11: memref<1x1x768xf32, #tpu.memory_space<vmem>>, %arg12: memref<1x768x192xf32, #tpu.memory_space<vmem>>, %arg13: memref<1x1x192xf32, #tpu.memory_space<vmem>>, %arg14: memref<1x192xf32, #tpu.memory_space<vmem>>, %arg15: memref<1x192xf32, #tpu.memory_space<vmem>>, %arg16: memref<192x128xf32, #tpu.memory_space<vmem>>, %arg17: memref<1x128xf32, #tpu.memory_space<vmem>>, %arg18: memref<16x128xf32, #tpu.memory_space<vmem>>, %arg19: memref<16x192xf32, #tpu.memory_space<vmem>>, %arg20: memref<16x576xf32, #tpu.memory_space<vmem>>) attributes {dimension_semantics = [#tpu.dimension_semantics<arbitrary>], iteration_bounds = array<i64: 6>, scalar_prefetch = 0 : i64, scratch_operands = 2 : i64, tpu.core_type = #tpu.core_type<tc>, window_params = [{pipeline_mode = #tpu.pipeline_mode<synchronous>, transform_indices = @transform_0, window_bounds = array<i64: 16, 192>}, {pipeline_mode = #tpu.pipeline_mode<synchronous>, transform_indices = @transform_1, window_bounds = array<i64: 8, 8>}, {transform_indices = @transform_2, window_bounds = array<i64: 1, 1, 192>}, {transform_indices = @transform_3, window_bounds = array<i64: 1, 1, 192>}, {transform_indices = @transform_4, window_bounds = array<i64: 1, 192, 576>}, {transform_indices = @transform_5, window_bounds = array<i64: 1, 192, 192>}, {transform_indices = @transform_6, window_bounds = array<i64: 1, 1, 192>}, {transform_indices = @transform_7, window_bounds = array<i64: 1, 1, 192>}, {transform_indices = @transform_8, window_bounds = array<i64: 1, 1, 192>}, {transform_indices = @transform_9, window_bounds = array<i64: 1, 192, 768>}, {transform_indices = @transform_10, window_bounds = array<i64: 1, 1, 768>}, {transform_indices = @transform_11, window_bounds = array<i64: 1, 768, 192>}, {transform_indices = @transform_12, window_bounds = array<i64: 1, 1, 192>}, {pipeline_mode = #tpu.pipeline_mode<synchronous>, transform_indices = @transform_13, window_bounds = array<i64: 1, 192>}, {pipeline_mode = #tpu.pipeline_mode<synchronous>, transform_indices = @transform_14, window_bounds = array<i64: 1, 192>}, {pipeline_mode = #tpu.pipeline_mode<synchronous>, transform_indices = @transform_15, window_bounds = array<i64: 192, 128>}, {pipeline_mode = #tpu.pipeline_mode<synchronous>, transform_indices = @transform_16, window_bounds = array<i64: 1, 128>}, {pipeline_mode = #tpu.pipeline_mode<synchronous>, transform_indices = @transform_17, window_bounds = array<i64: 16, 128>}]} {
    %c0_i32 = arith.constant 0 : i32
    %0 = arith.cmpi eq, %arg0, %c0_i32 : i32
    %1 = arith.extui %0 : i1 to i32
    %c0_i32_0 = arith.constant 0 : i32
    %2 = arith.cmpi ne, %1, %c0_i32_0 : i32
    scf.if %2 {
      %c0_169 = arith.constant 0 : index
      %c0_170 = arith.constant 0 : index
      %289 = vector.load %arg1[%c0_169, %c0_170] : memref<16x192xf32, #tpu.memory_space<vmem>>, vector<16x192xf32>
      %c0_171 = arith.constant 0 : index
      %c0_172 = arith.constant 0 : index
      %290 = vector.load %arg19[%c0_171, %c0_172] : memref<16x192xf32, #tpu.memory_space<vmem>>, vector<16x192xf32>
      tpu.vector_store %arg19[%c0_171, %c0_172], %289 {strides = array<i32>} : memref<16x192xf32, #tpu.memory_space<vmem>>, vector<16x192xf32>,
    } else {
    }
    %c0 = arith.constant 0 : index
    %c0_1 = arith.constant 0 : index
    %3 = vector.load %arg19[%c0, %c0_1] : memref<16x192xf32, #tpu.memory_space<vmem>>, vector<16x192xf32>
    %c0_2 = arith.constant 0 : index
    %c0_3 = arith.constant 0 : index
    %c0_4 = arith.constant 0 : index
    %4 = vector.load %arg3[%c0_2, %c0_3, %c0_4] : memref<1x1x192xf32, #tpu.memory_space<vmem>>, vector<1x1x192xf32>
    %5 = vector.shape_cast %4 : vector<1x1x192xf32> to vector<1x192xf32>
    %c0_5 = arith.constant 0 : index
    %c0_6 = arith.constant 0 : index
    %c0_7 = arith.constant 0 : index
    %6 = vector.load %arg4[%c0_5, %c0_6, %c0_7] : memref<1x1x192xf32, #tpu.memory_space<vmem>>, vector<1x1x192xf32>
    %7 = vector.shape_cast %6 : vector<1x1x192xf32> to vector<1x192xf32>
    %cst = arith.constant dense<0.000000e+00> : vector<16xf32>
    %8 = vector.multi_reduction <add>, %3, %cst [1] : vector<16x192xf32> to vector<16xf32>
    %9 = vector.shape_cast %8 : vector<16xf32> to vector<16x1xf32>
    %cst_8 = arith.constant 1.920000e+02 : f32
    %10 = vector.broadcast %cst_8 : f32 to vector<16x1xf32>
    %11 = arith.divf %9, %10 : vector<16x1xf32>
    %12 = vector.broadcast %11 : vector<16x1xf32> to vector<16x192xf32>
    %13 = arith.subf %3, %12 : vector<16x192xf32>
    %14 = arith.mulf %13, %13 : vector<16x192xf32>
    %cst_9 = arith.constant dense<0.000000e+00> : vector<16xf32>
    %15 = vector.multi_reduction <add>, %14, %cst_9 [1] : vector<16x192xf32> to vector<16xf32>
    %16 = vector.shape_cast %15 : vector<16xf32> to vector<16x1xf32>
    %cst_10 = arith.constant 1.920000e+02 : f32
    %17 = vector.broadcast %cst_10 : f32 to vector<16x1xf32>
    %18 = arith.divf %16, %17 : vector<16x1xf32>
    %cst_11 = arith.constant 9.99999974E-6 : f32
    %19 = vector.broadcast %cst_11 : f32 to vector<16x1xf32>
    %20 = arith.addf %18, %19 : vector<16x1xf32>
    %21 = math.rsqrt %20 : vector<16x1xf32>
    %22 = vector.broadcast %21 : vector<16x1xf32> to vector<16x192xf32>
    %23 = arith.mulf %13, %22 : vector<16x192xf32>
    %24 = vector.broadcast %5 : vector<1x192xf32> to vector<16x192xf32>
    %25 = arith.mulf %23, %24 : vector<16x192xf32>
    %26 = vector.broadcast %7 : vector<1x192xf32> to vector<16x192xf32>
    %27 = arith.addf %25, %26 : vector<16x192xf32>
    %c0_12 = arith.constant 0 : index
    %c0_13 = arith.constant 0 : index
    %c0_14 = arith.constant 0 : index
    %28 = vector.load %arg5[%c0_12, %c0_13, %c0_14] : memref<1x192x576xf32, #tpu.memory_space<vmem>>, vector<1x192x576xf32>
    %29 = vector.shape_cast %28 : vector<1x192x576xf32> to vector<192x576xf32>
    %cst_15 = arith.constant dense<0.000000e+00> : vector<16x576xf32>
    %30 = tpu.matmul %27, %29, %cst_15 {dimension_numbers = #tpu.dot_dimension_numbers<[1], [0], [0], [1], [0, 0, 1, 1], [], []>} : vector<16x192xf32>, vector<192x576xf32>, vector<16x576xf32> -> vector<16x576xf32>
    %c0_16 = arith.constant 0 : index
    %c0_17 = arith.constant 0 : index
    %31 = vector.load %arg20[%c0_16, %c0_17] : memref<16x576xf32, #tpu.memory_space<vmem>>, vector<16x576xf32>
    tpu.vector_store %arg20[%c0_16, %c0_17], %30 {strides = array<i32>} : memref<16x576xf32, #tpu.memory_space<vmem>>, vector<16x576xf32>,
    %c0_18 = arith.constant 0 : index
    %c0_19 = arith.constant 0 : index
    %32 = vector.load %arg2[%c0_18, %c0_19] : memref<8x8xf32, #tpu.memory_space<vmem>>, vector<8x8xf32>
    %c0_20 = arith.constant 0 : index
    %c0_21 = arith.constant 0 : index
    %c0_22 = arith.constant 0 : index
    %33 = vector.load %arg6[%c0_20, %c0_21, %c0_22] : memref<1x192x192xf32, #tpu.memory_space<vmem>>, vector<1x192x192xf32>
    %34 = vector.shape_cast %33 : vector<1x192x192xf32> to vector<192x192xf32>
    %c0_23 = arith.constant 0 : index
    %c0_24 = arith.constant 0 : index
    %c0_25 = arith.constant 0 : index
    %35 = vector.load %arg7[%c0_23, %c0_24, %c0_25] : memref<1x1x192xf32, #tpu.memory_space<vmem>>, vector<1x1x192xf32>
    %36 = vector.shape_cast %35 : vector<1x1x192xf32> to vector<1x192xf32>
    %c0_26 = arith.constant 0 : index
    %c0_27 = arith.constant 0 : index
    %37 = vector.load %arg20[%c0_26, %c0_27] : memref<16x576xf32, #tpu.memory_space<vmem>>, vector<8x32xf32>
    %c0_28 = arith.constant 0 : index
    %c192 = arith.constant 192 : index
    %38 = vector.load %arg20[%c0_28, %c192] : memref<16x576xf32, #tpu.memory_space<vmem>>, vector<8x32xf32>
    %c0_29 = arith.constant 0 : index
    %c384 = arith.constant 384 : index
    %39 = vector.load %arg20[%c0_29, %c384] : memref<16x576xf32, #tpu.memory_space<vmem>>, vector<8x32xf32>
    %cst_30 = arith.constant dense<0.000000e+00> : vector<8x8xf32>
    %40 = tpu.matmul %37, %38, %cst_30 {dimension_numbers = #tpu.dot_dimension_numbers<[1], [1], [0], [0], [0, 0, 1, 0], [], []>} : vector<8x32xf32>, vector<8x32xf32>, vector<8x8xf32> -> vector<8x8xf32>
    %41 = arith.addf %40, %32 : vector<8x8xf32>
    %cst_31 = arith.constant dense<0xFF800000> : vector<8xf32>
    %42 = vector.multi_reduction <maximumf>, %41, %cst_31 [1] : vector<8x8xf32> to vector<8xf32>
    %43 = vector.shape_cast %42 : vector<8xf32> to vector<8x1xf32>
    %44 = vector.broadcast %43 : vector<8x1xf32> to vector<8x8xf32>
    %45 = arith.subf %41, %44 : vector<8x8xf32>
    %46 = math.exp %45 : vector<8x8xf32>
    %cst_32 = arith.constant dense<0.000000e+00> : vector<8xf32>
    %47 = vector.multi_reduction <add>, %46, %cst_32 [1] : vector<8x8xf32> to vector<8xf32>
    %48 = vector.shape_cast %47 : vector<8xf32> to vector<8x1xf32>
    %49 = tpu.reciprocal %48 {approx = true} : vector<8x1xf32> -> vector<8x1xf32>
    %50 = vector.broadcast %49 : vector<8x1xf32> to vector<8x8xf32>
    %51 = arith.mulf %46, %50 : vector<8x8xf32>
    %cst_33 = arith.constant dense<0.000000e+00> : vector<8x32xf32>
    %52 = tpu.matmul %51, %39, %cst_33 {dimension_numbers = #tpu.dot_dimension_numbers<[1], [0], [0], [1], [0, 0, 1, 1], [], []>} : vector<8x8xf32>, vector<8x32xf32>, vector<8x32xf32> -> vector<8x32xf32>
    %c0_34 = arith.constant 0 : index
    %c32 = arith.constant 32 : index
    %53 = vector.load %arg20[%c0_34, %c32] : memref<16x576xf32, #tpu.memory_space<vmem>>, vector<8x32xf32>
    %c0_35 = arith.constant 0 : index
    %c224 = arith.constant 224 : index
    %54 = vector.load %arg20[%c0_35, %c224] : memref<16x576xf32, #tpu.memory_space<vmem>>, vector<8x32xf32>
    %c0_36 = arith.constant 0 : index
    %c416 = arith.constant 416 : index
    %55 = vector.load %arg20[%c0_36, %c416] : memref<16x576xf32, #tpu.memory_space<vmem>>, vector<8x32xf32>
    %cst_37 = arith.constant dense<0.000000e+00> : vector<8x8xf32>
    %56 = tpu.matmul %53, %54, %cst_37 {dimension_numbers = #tpu.dot_dimension_numbers<[1], [1], [0], [0], [0, 0, 1, 0], [], []>} : vector<8x32xf32>, vector<8x32xf32>, vector<8x8xf32> -> vector<8x8xf32>
    %57 = arith.addf %56, %32 : vector<8x8xf32>
    %cst_38 = arith.constant dense<0xFF800000> : vector<8xf32>
    %58 = vector.multi_reduction <maximumf>, %57, %cst_38 [1] : vector<8x8xf32> to vector<8xf32>
    %59 = vector.shape_cast %58 : vector<8xf32> to vector<8x1xf32>
    %60 = vector.broadcast %59 : vector<8x1xf32> to vector<8x8xf32>
    %61 = arith.subf %57, %60 : vector<8x8xf32>
    %62 = math.exp %61 : vector<8x8xf32>
    %cst_39 = arith.constant dense<0.000000e+00> : vector<8xf32>
    %63 = vector.multi_reduction <add>, %62, %cst_39 [1] : vector<8x8xf32> to vector<8xf32>
    %64 = vector.shape_cast %63 : vector<8xf32> to vector<8x1xf32>
    %65 = tpu.reciprocal %64 {approx = true} : vector<8x1xf32> -> vector<8x1xf32>
    %66 = vector.broadcast %65 : vector<8x1xf32> to vector<8x8xf32>
    %67 = arith.mulf %62, %66 : vector<8x8xf32>
    %cst_40 = arith.constant dense<0.000000e+00> : vector<8x32xf32>
    %68 = tpu.matmul %67, %55, %cst_40 {dimension_numbers = #tpu.dot_dimension_numbers<[1], [0], [0], [1], [0, 0, 1, 1], [], []>} : vector<8x8xf32>, vector<8x32xf32>, vector<8x32xf32> -> vector<8x32xf32>
    %c0_41 = arith.constant 0 : index
    %c64 = arith.constant 64 : index
    %69 = vector.load %arg20[%c0_41, %c64] : memref<16x576xf32, #tpu.memory_space<vmem>>, vector<8x32xf32>
    %c0_42 = arith.constant 0 : index
    %c256 = arith.constant 256 : index
    %70 = vector.load %arg20[%c0_42, %c256] : memref<16x576xf32, #tpu.memory_space<vmem>>, vector<8x32xf32>
    %c0_43 = arith.constant 0 : index
    %c448 = arith.constant 448 : index
    %71 = vector.load %arg20[%c0_43, %c448] : memref<16x576xf32, #tpu.memory_space<vmem>>, vector<8x32xf32>
    %cst_44 = arith.constant dense<0.000000e+00> : vector<8x8xf32>
    %72 = tpu.matmul %69, %70, %cst_44 {dimension_numbers = #tpu.dot_dimension_numbers<[1], [1], [0], [0], [0, 0, 1, 0], [], []>} : vector<8x32xf32>, vector<8x32xf32>, vector<8x8xf32> -> vector<8x8xf32>
    %73 = arith.addf %72, %32 : vector<8x8xf32>
    %cst_45 = arith.constant dense<0xFF800000> : vector<8xf32>
    %74 = vector.multi_reduction <maximumf>, %73, %cst_45 [1] : vector<8x8xf32> to vector<8xf32>
    %75 = vector.shape_cast %74 : vector<8xf32> to vector<8x1xf32>
    %76 = vector.broadcast %75 : vector<8x1xf32> to vector<8x8xf32>
    %77 = arith.subf %73, %76 : vector<8x8xf32>
    %78 = math.exp %77 : vector<8x8xf32>
    %cst_46 = arith.constant dense<0.000000e+00> : vector<8xf32>
    %79 = vector.multi_reduction <add>, %78, %cst_46 [1] : vector<8x8xf32> to vector<8xf32>
    %80 = vector.shape_cast %79 : vector<8xf32> to vector<8x1xf32>
    %81 = tpu.reciprocal %80 {approx = true} : vector<8x1xf32> -> vector<8x1xf32>
    %82 = vector.broadcast %81 : vector<8x1xf32> to vector<8x8xf32>
    %83 = arith.mulf %78, %82 : vector<8x8xf32>
    %cst_47 = arith.constant dense<0.000000e+00> : vector<8x32xf32>
    %84 = tpu.matmul %83, %71, %cst_47 {dimension_numbers = #tpu.dot_dimension_numbers<[1], [0], [0], [1], [0, 0, 1, 1], [], []>} : vector<8x8xf32>, vector<8x32xf32>, vector<8x32xf32> -> vector<8x32xf32>
    %c0_48 = arith.constant 0 : index
    %c96 = arith.constant 96 : index
    %85 = vector.load %arg20[%c0_48, %c96] : memref<16x576xf32, #tpu.memory_space<vmem>>, vector<8x32xf32>
    %c0_49 = arith.constant 0 : index
    %c288 = arith.constant 288 : index
    %86 = vector.load %arg20[%c0_49, %c288] : memref<16x576xf32, #tpu.memory_space<vmem>>, vector<8x32xf32>
    %c0_50 = arith.constant 0 : index
    %c480 = arith.constant 480 : index
    %87 = vector.load %arg20[%c0_50, %c480] : memref<16x576xf32, #tpu.memory_space<vmem>>, vector<8x32xf32>
    %cst_51 = arith.constant dense<0.000000e+00> : vector<8x8xf32>
    %88 = tpu.matmul %85, %86, %cst_51 {dimension_numbers = #tpu.dot_dimension_numbers<[1], [1], [0], [0], [0, 0, 1, 0], [], []>} : vector<8x32xf32>, vector<8x32xf32>, vector<8x8xf32> -> vector<8x8xf32>
    %89 = arith.addf %88, %32 : vector<8x8xf32>
    %cst_52 = arith.constant dense<0xFF800000> : vector<8xf32>
    %90 = vector.multi_reduction <maximumf>, %89, %cst_52 [1] : vector<8x8xf32> to vector<8xf32>
    %91 = vector.shape_cast %90 : vector<8xf32> to vector<8x1xf32>
    %92 = vector.broadcast %91 : vector<8x1xf32> to vector<8x8xf32>
    %93 = arith.subf %89, %92 : vector<8x8xf32>
    %94 = math.exp %93 : vector<8x8xf32>
    %cst_53 = arith.constant dense<0.000000e+00> : vector<8xf32>
    %95 = vector.multi_reduction <add>, %94, %cst_53 [1] : vector<8x8xf32> to vector<8xf32>
    %96 = vector.shape_cast %95 : vector<8xf32> to vector<8x1xf32>
    %97 = tpu.reciprocal %96 {approx = true} : vector<8x1xf32> -> vector<8x1xf32>
    %98 = vector.broadcast %97 : vector<8x1xf32> to vector<8x8xf32>
    %99 = arith.mulf %94, %98 : vector<8x8xf32>
    %cst_54 = arith.constant dense<0.000000e+00> : vector<8x32xf32>
    %100 = tpu.matmul %99, %87, %cst_54 {dimension_numbers = #tpu.dot_dimension_numbers<[1], [0], [0], [1], [0, 0, 1, 1], [], []>} : vector<8x8xf32>, vector<8x32xf32>, vector<8x32xf32> -> vector<8x32xf32>
    %c0_55 = arith.constant 0 : index
    %c128 = arith.constant 128 : index
    %101 = vector.load %arg20[%c0_55, %c128] : memref<16x576xf32, #tpu.memory_space<vmem>>, vector<8x32xf32>
    %c0_56 = arith.constant 0 : index
    %c320 = arith.constant 320 : index
    %102 = vector.load %arg20[%c0_56, %c320] : memref<16x576xf32, #tpu.memory_space<vmem>>, vector<8x32xf32>
    %c0_57 = arith.constant 0 : index
    %c512 = arith.constant 512 : index
    %103 = vector.load %arg20[%c0_57, %c512] : memref<16x576xf32, #tpu.memory_space<vmem>>, vector<8x32xf32>
    %cst_58 = arith.constant dense<0.000000e+00> : vector<8x8xf32>
    %104 = tpu.matmul %101, %102, %cst_58 {dimension_numbers = #tpu.dot_dimension_numbers<[1], [1], [0], [0], [0, 0, 1, 0], [], []>} : vector<8x32xf32>, vector<8x32xf32>, vector<8x8xf32> -> vector<8x8xf32>
    %105 = arith.addf %104, %32 : vector<8x8xf32>
    %cst_59 = arith.constant dense<0xFF800000> : vector<8xf32>
    %106 = vector.multi_reduction <maximumf>, %105, %cst_59 [1] : vector<8x8xf32> to vector<8xf32>
    %107 = vector.shape_cast %106 : vector<8xf32> to vector<8x1xf32>
    %108 = vector.broadcast %107 : vector<8x1xf32> to vector<8x8xf32>
    %109 = arith.subf %105, %108 : vector<8x8xf32>
    %110 = math.exp %109 : vector<8x8xf32>
    %cst_60 = arith.constant dense<0.000000e+00> : vector<8xf32>
    %111 = vector.multi_reduction <add>, %110, %cst_60 [1] : vector<8x8xf32> to vector<8xf32>
    %112 = vector.shape_cast %111 : vector<8xf32> to vector<8x1xf32>
    %113 = tpu.reciprocal %112 {approx = true} : vector<8x1xf32> -> vector<8x1xf32>
    %114 = vector.broadcast %113 : vector<8x1xf32> to vector<8x8xf32>
    %115 = arith.mulf %110, %114 : vector<8x8xf32>
    %cst_61 = arith.constant dense<0.000000e+00> : vector<8x32xf32>
    %116 = tpu.matmul %115, %103, %cst_61 {dimension_numbers = #tpu.dot_dimension_numbers<[1], [0], [0], [1], [0, 0, 1, 1], [], []>} : vector<8x8xf32>, vector<8x32xf32>, vector<8x32xf32> -> vector<8x32xf32>
    %c0_62 = arith.constant 0 : index
    %c160 = arith.constant 160 : index
    %117 = vector.load %arg20[%c0_62, %c160] : memref<16x576xf32, #tpu.memory_space<vmem>>, vector<8x32xf32>
    %c0_63 = arith.constant 0 : index
    %c352 = arith.constant 352 : index
    %118 = vector.load %arg20[%c0_63, %c352] : memref<16x576xf32, #tpu.memory_space<vmem>>, vector<8x32xf32>
    %c0_64 = arith.constant 0 : index
    %c544 = arith.constant 544 : index
    %119 = vector.load %arg20[%c0_64, %c544] : memref<16x576xf32, #tpu.memory_space<vmem>>, vector<8x32xf32>
    %cst_65 = arith.constant dense<0.000000e+00> : vector<8x8xf32>
    %120 = tpu.matmul %117, %118, %cst_65 {dimension_numbers = #tpu.dot_dimension_numbers<[1], [1], [0], [0], [0, 0, 1, 0], [], []>} : vector<8x32xf32>, vector<8x32xf32>, vector<8x8xf32> -> vector<8x8xf32>
    %121 = arith.addf %120, %32 : vector<8x8xf32>
    %cst_66 = arith.constant dense<0xFF800000> : vector<8xf32>
    %122 = vector.multi_reduction <maximumf>, %121, %cst_66 [1] : vector<8x8xf32> to vector<8xf32>
    %123 = vector.shape_cast %122 : vector<8xf32> to vector<8x1xf32>
    %124 = vector.broadcast %123 : vector<8x1xf32> to vector<8x8xf32>
    %125 = arith.subf %121, %124 : vector<8x8xf32>
    %126 = math.exp %125 : vector<8x8xf32>
    %cst_67 = arith.constant dense<0.000000e+00> : vector<8xf32>
    %127 = vector.multi_reduction <add>, %126, %cst_67 [1] : vector<8x8xf32> to vector<8xf32>
    %128 = vector.shape_cast %127 : vector<8xf32> to vector<8x1xf32>
    %129 = tpu.reciprocal %128 {approx = true} : vector<8x1xf32> -> vector<8x1xf32>
    %130 = vector.broadcast %129 : vector<8x1xf32> to vector<8x8xf32>
    %131 = arith.mulf %126, %130 : vector<8x8xf32>
    %cst_68 = arith.constant dense<0.000000e+00> : vector<8x32xf32>
    %132 = tpu.matmul %131, %119, %cst_68 {dimension_numbers = #tpu.dot_dimension_numbers<[1], [0], [0], [1], [0, 0, 1, 1], [], []>} : vector<8x8xf32>, vector<8x32xf32>, vector<8x32xf32> -> vector<8x32xf32>
    %133 = tpu.concatenate %52, %68, %84, %100, %116, %132 in 1 : vector<8x32xf32>, vector<8x32xf32>, vector<8x32xf32>, vector<8x32xf32>, vector<8x32xf32>, vector<8x32xf32> -> vector<8x192xf32>
    %c0_69 = arith.constant 0 : index
    %c0_70 = arith.constant 0 : index
    %134 = vector.load %arg19[%c0_69, %c0_70] : memref<16x192xf32, #tpu.memory_space<vmem>>, vector<8x192xf32>
    %cst_71 = arith.constant dense<0.000000e+00> : vector<8x192xf32>
    %135 = tpu.matmul %133, %34, %cst_71 {dimension_numbers = #tpu.dot_dimension_numbers<[1], [0], [0], [1], [0, 0, 1, 1], [], []>} : vector<8x192xf32>, vector<192x192xf32>, vector<8x192xf32> -> vector<8x192xf32>
    %136 = arith.addf %134, %135 : vector<8x192xf32>
    %137 = vector.broadcast %36 : vector<1x192xf32> to vector<8x192xf32>
    %138 = arith.addf %136, %137 : vector<8x192xf32>
    %c0_72 = arith.constant 0 : index
    %c0_73 = arith.constant 0 : index
    %139 = vector.load %arg19[%c0_72, %c0_73] : memref<16x192xf32, #tpu.memory_space<vmem>>, vector<8x192xf32>
    tpu.vector_store %arg19[%c0_72, %c0_73], %138 {strides = array<i32>} : memref<16x192xf32, #tpu.memory_space<vmem>>, vector<8x192xf32>,
    %c8 = arith.constant 8 : index
    %c0_74 = arith.constant 0 : index
    %140 = vector.load %arg20[%c8, %c0_74] : memref<16x576xf32, #tpu.memory_space<vmem>>, vector<8x32xf32>
    %c8_75 = arith.constant 8 : index
    %c192_76 = arith.constant 192 : index
    %141 = vector.load %arg20[%c8_75, %c192_76] : memref<16x576xf32, #tpu.memory_space<vmem>>, vector<8x32xf32>
    %c8_77 = arith.constant 8 : index
    %c384_78 = arith.constant 384 : index
    %142 = vector.load %arg20[%c8_77, %c384_78] : memref<16x576xf32, #tpu.memory_space<vmem>>, vector<8x32xf32>
    %cst_79 = arith.constant dense<0.000000e+00> : vector<8x8xf32>
    %143 = tpu.matmul %140, %141, %cst_79 {dimension_numbers = #tpu.dot_dimension_numbers<[1], [1], [0], [0], [0, 0, 1, 0], [], []>} : vector<8x32xf32>, vector<8x32xf32>, vector<8x8xf32> -> vector<8x8xf32>
    %144 = arith.addf %143, %32 : vector<8x8xf32>
    %cst_80 = arith.constant dense<0xFF800000> : vector<8xf32>
    %145 = vector.multi_reduction <maximumf>, %144, %cst_80 [1] : vector<8x8xf32> to vector<8xf32>
    %146 = vector.shape_cast %145 : vector<8xf32> to vector<8x1xf32>
    %147 = vector.broadcast %146 : vector<8x1xf32> to vector<8x8xf32>
    %148 = arith.subf %144, %147 : vector<8x8xf32>
    %149 = math.exp %148 : vector<8x8xf32>
    %cst_81 = arith.constant dense<0.000000e+00> : vector<8xf32>
    %150 = vector.multi_reduction <add>, %149, %cst_81 [1] : vector<8x8xf32> to vector<8xf32>
    %151 = vector.shape_cast %150 : vector<8xf32> to vector<8x1xf32>
    %152 = tpu.reciprocal %151 {approx = true} : vector<8x1xf32> -> vector<8x1xf32>
    %153 = vector.broadcast %152 : vector<8x1xf32> to vector<8x8xf32>
    %154 = arith.mulf %149, %153 : vector<8x8xf32>
    %cst_82 = arith.constant dense<0.000000e+00> : vector<8x32xf32>
    %155 = tpu.matmul %154, %142, %cst_82 {dimension_numbers = #tpu.dot_dimension_numbers<[1], [0], [0], [1], [0, 0, 1, 1], [], []>} : vector<8x8xf32>, vector<8x32xf32>, vector<8x32xf32> -> vector<8x32xf32>
    %c8_83 = arith.constant 8 : index
    %c32_84 = arith.constant 32 : index
    %156 = vector.load %arg20[%c8_83, %c32_84] : memref<16x576xf32, #tpu.memory_space<vmem>>, vector<8x32xf32>
    %c8_85 = arith.constant 8 : index
    %c224_86 = arith.constant 224 : index
    %157 = vector.load %arg20[%c8_85, %c224_86] : memref<16x576xf32, #tpu.memory_space<vmem>>, vector<8x32xf32>
    %c8_87 = arith.constant 8 : index
    %c416_88 = arith.constant 416 : index
    %158 = vector.load %arg20[%c8_87, %c416_88] : memref<16x576xf32, #tpu.memory_space<vmem>>, vector<8x32xf32>
    %cst_89 = arith.constant dense<0.000000e+00> : vector<8x8xf32>
    %159 = tpu.matmul %156, %157, %cst_89 {dimension_numbers = #tpu.dot_dimension_numbers<[1], [1], [0], [0], [0, 0, 1, 0], [], []>} : vector<8x32xf32>, vector<8x32xf32>, vector<8x8xf32> -> vector<8x8xf32>
    %160 = arith.addf %159, %32 : vector<8x8xf32>
    %cst_90 = arith.constant dense<0xFF800000> : vector<8xf32>
    %161 = vector.multi_reduction <maximumf>, %160, %cst_90 [1] : vector<8x8xf32> to vector<8xf32>
    %162 = vector.shape_cast %161 : vector<8xf32> to vector<8x1xf32>
    %163 = vector.broadcast %162 : vector<8x1xf32> to vector<8x8xf32>
    %164 = arith.subf %160, %163 : vector<8x8xf32>
    %165 = math.exp %164 : vector<8x8xf32>
    %cst_91 = arith.constant dense<0.000000e+00> : vector<8xf32>
    %166 = vector.multi_reduction <add>, %165, %cst_91 [1] : vector<8x8xf32> to vector<8xf32>
    %167 = vector.shape_cast %166 : vector<8xf32> to vector<8x1xf32>
    %168 = tpu.reciprocal %167 {approx = true} : vector<8x1xf32> -> vector<8x1xf32>
    %169 = vector.broadcast %168 : vector<8x1xf32> to vector<8x8xf32>
    %170 = arith.mulf %165, %169 : vector<8x8xf32>
    %cst_92 = arith.constant dense<0.000000e+00> : vector<8x32xf32>
    %171 = tpu.matmul %170, %158, %cst_92 {dimension_numbers = #tpu.dot_dimension_numbers<[1], [0], [0], [1], [0, 0, 1, 1], [], []>} : vector<8x8xf32>, vector<8x32xf32>, vector<8x32xf32> -> vector<8x32xf32>
    %c8_93 = arith.constant 8 : index
    %c64_94 = arith.constant 64 : index
    %172 = vector.load %arg20[%c8_93, %c64_94] : memref<16x576xf32, #tpu.memory_space<vmem>>, vector<8x32xf32>
    %c8_95 = arith.constant 8 : index
    %c256_96 = arith.constant 256 : index
    %173 = vector.load %arg20[%c8_95, %c256_96] : memref<16x576xf32, #tpu.memory_space<vmem>>, vector<8x32xf32>
    %c8_97 = arith.constant 8 : index
    %c448_98 = arith.constant 448 : index
    %174 = vector.load %arg20[%c8_97, %c448_98] : memref<16x576xf32, #tpu.memory_space<vmem>>, vector<8x32xf32>
    %cst_99 = arith.constant dense<0.000000e+00> : vector<8x8xf32>
    %175 = tpu.matmul %172, %173, %cst_99 {dimension_numbers = #tpu.dot_dimension_numbers<[1], [1], [0], [0], [0, 0, 1, 0], [], []>} : vector<8x32xf32>, vector<8x32xf32>, vector<8x8xf32> -> vector<8x8xf32>
    %176 = arith.addf %175, %32 : vector<8x8xf32>
    %cst_100 = arith.constant dense<0xFF800000> : vector<8xf32>
    %177 = vector.multi_reduction <maximumf>, %176, %cst_100 [1] : vector<8x8xf32> to vector<8xf32>
    %178 = vector.shape_cast %177 : vector<8xf32> to vector<8x1xf32>
    %179 = vector.broadcast %178 : vector<8x1xf32> to vector<8x8xf32>
    %180 = arith.subf %176, %179 : vector<8x8xf32>
    %181 = math.exp %180 : vector<8x8xf32>
    %cst_101 = arith.constant dense<0.000000e+00> : vector<8xf32>
    %182 = vector.multi_reduction <add>, %181, %cst_101 [1] : vector<8x8xf32> to vector<8xf32>
    %183 = vector.shape_cast %182 : vector<8xf32> to vector<8x1xf32>
    %184 = tpu.reciprocal %183 {approx = true} : vector<8x1xf32> -> vector<8x1xf32>
    %185 = vector.broadcast %184 : vector<8x1xf32> to vector<8x8xf32>
    %186 = arith.mulf %181, %185 : vector<8x8xf32>
    %cst_102 = arith.constant dense<0.000000e+00> : vector<8x32xf32>
    %187 = tpu.matmul %186, %174, %cst_102 {dimension_numbers = #tpu.dot_dimension_numbers<[1], [0], [0], [1], [0, 0, 1, 1], [], []>} : vector<8x8xf32>, vector<8x32xf32>, vector<8x32xf32> -> vector<8x32xf32>
    %c8_103 = arith.constant 8 : index
    %c96_104 = arith.constant 96 : index
    %188 = vector.load %arg20[%c8_103, %c96_104] : memref<16x576xf32, #tpu.memory_space<vmem>>, vector<8x32xf32>
    %c8_105 = arith.constant 8 : index
    %c288_106 = arith.constant 288 : index
    %189 = vector.load %arg20[%c8_105, %c288_106] : memref<16x576xf32, #tpu.memory_space<vmem>>, vector<8x32xf32>
    %c8_107 = arith.constant 8 : index
    %c480_108 = arith.constant 480 : index
    %190 = vector.load %arg20[%c8_107, %c480_108] : memref<16x576xf32, #tpu.memory_space<vmem>>, vector<8x32xf32>
    %cst_109 = arith.constant dense<0.000000e+00> : vector<8x8xf32>
    %191 = tpu.matmul %188, %189, %cst_109 {dimension_numbers = #tpu.dot_dimension_numbers<[1], [1], [0], [0], [0, 0, 1, 0], [], []>} : vector<8x32xf32>, vector<8x32xf32>, vector<8x8xf32> -> vector<8x8xf32>
    %192 = arith.addf %191, %32 : vector<8x8xf32>
    %cst_110 = arith.constant dense<0xFF800000> : vector<8xf32>
    %193 = vector.multi_reduction <maximumf>, %192, %cst_110 [1] : vector<8x8xf32> to vector<8xf32>
    %194 = vector.shape_cast %193 : vector<8xf32> to vector<8x1xf32>
    %195 = vector.broadcast %194 : vector<8x1xf32> to vector<8x8xf32>
    %196 = arith.subf %192, %195 : vector<8x8xf32>
    %197 = math.exp %196 : vector<8x8xf32>
    %cst_111 = arith.constant dense<0.000000e+00> : vector<8xf32>
    %198 = vector.multi_reduction <add>, %197, %cst_111 [1] : vector<8x8xf32> to vector<8xf32>
    %199 = vector.shape_cast %198 : vector<8xf32> to vector<8x1xf32>
    %200 = tpu.reciprocal %199 {approx = true} : vector<8x1xf32> -> vector<8x1xf32>
    %201 = vector.broadcast %200 : vector<8x1xf32> to vector<8x8xf32>
    %202 = arith.mulf %197, %201 : vector<8x8xf32>
    %cst_112 = arith.constant dense<0.000000e+00> : vector<8x32xf32>
    %203 = tpu.matmul %202, %190, %cst_112 {dimension_numbers = #tpu.dot_dimension_numbers<[1], [0], [0], [1], [0, 0, 1, 1], [], []>} : vector<8x8xf32>, vector<8x32xf32>, vector<8x32xf32> -> vector<8x32xf32>
    %c8_113 = arith.constant 8 : index
    %c128_114 = arith.constant 128 : index
    %204 = vector.load %arg20[%c8_113, %c128_114] : memref<16x576xf32, #tpu.memory_space<vmem>>, vector<8x32xf32>
    %c8_115 = arith.constant 8 : index
    %c320_116 = arith.constant 320 : index
    %205 = vector.load %arg20[%c8_115, %c320_116] : memref<16x576xf32, #tpu.memory_space<vmem>>, vector<8x32xf32>
    %c8_117 = arith.constant 8 : index
    %c512_118 = arith.constant 512 : index
    %206 = vector.load %arg20[%c8_117, %c512_118] : memref<16x576xf32, #tpu.memory_space<vmem>>, vector<8x32xf32>
    %cst_119 = arith.constant dense<0.000000e+00> : vector<8x8xf32>
    %207 = tpu.matmul %204, %205, %cst_119 {dimension_numbers = #tpu.dot_dimension_numbers<[1], [1], [0], [0], [0, 0, 1, 0], [], []>} : vector<8x32xf32>, vector<8x32xf32>, vector<8x8xf32> -> vector<8x8xf32>
    %208 = arith.addf %207, %32 : vector<8x8xf32>
    %cst_120 = arith.constant dense<0xFF800000> : vector<8xf32>
    %209 = vector.multi_reduction <maximumf>, %208, %cst_120 [1] : vector<8x8xf32> to vector<8xf32>
    %210 = vector.shape_cast %209 : vector<8xf32> to vector<8x1xf32>
    %211 = vector.broadcast %210 : vector<8x1xf32> to vector<8x8xf32>
    %212 = arith.subf %208, %211 : vector<8x8xf32>
    %213 = math.exp %212 : vector<8x8xf32>
    %cst_121 = arith.constant dense<0.000000e+00> : vector<8xf32>
    %214 = vector.multi_reduction <add>, %213, %cst_121 [1] : vector<8x8xf32> to vector<8xf32>
    %215 = vector.shape_cast %214 : vector<8xf32> to vector<8x1xf32>
    %216 = tpu.reciprocal %215 {approx = true} : vector<8x1xf32> -> vector<8x1xf32>
    %217 = vector.broadcast %216 : vector<8x1xf32> to vector<8x8xf32>
    %218 = arith.mulf %213, %217 : vector<8x8xf32>
    %cst_122 = arith.constant dense<0.000000e+00> : vector<8x32xf32>
    %219 = tpu.matmul %218, %206, %cst_122 {dimension_numbers = #tpu.dot_dimension_numbers<[1], [0], [0], [1], [0, 0, 1, 1], [], []>} : vector<8x8xf32>, vector<8x32xf32>, vector<8x32xf32> -> vector<8x32xf32>
    %c8_123 = arith.constant 8 : index
    %c160_124 = arith.constant 160 : index
    %220 = vector.load %arg20[%c8_123, %c160_124] : memref<16x576xf32, #tpu.memory_space<vmem>>, vector<8x32xf32>
    %c8_125 = arith.constant 8 : index
    %c352_126 = arith.constant 352 : index
    %221 = vector.load %arg20[%c8_125, %c352_126] : memref<16x576xf32, #tpu.memory_space<vmem>>, vector<8x32xf32>
    %c8_127 = arith.constant 8 : index
    %c544_128 = arith.constant 544 : index
    %222 = vector.load %arg20[%c8_127, %c544_128] : memref<16x576xf32, #tpu.memory_space<vmem>>, vector<8x32xf32>
    %cst_129 = arith.constant dense<0.000000e+00> : vector<8x8xf32>
    %223 = tpu.matmul %220, %221, %cst_129 {dimension_numbers = #tpu.dot_dimension_numbers<[1], [1], [0], [0], [0, 0, 1, 0], [], []>} : vector<8x32xf32>, vector<8x32xf32>, vector<8x8xf32> -> vector<8x8xf32>
    %224 = arith.addf %223, %32 : vector<8x8xf32>
    %cst_130 = arith.constant dense<0xFF800000> : vector<8xf32>
    %225 = vector.multi_reduction <maximumf>, %224, %cst_130 [1] : vector<8x8xf32> to vector<8xf32>
    %226 = vector.shape_cast %225 : vector<8xf32> to vector<8x1xf32>
    %227 = vector.broadcast %226 : vector<8x1xf32> to vector<8x8xf32>
    %228 = arith.subf %224, %227 : vector<8x8xf32>
    %229 = math.exp %228 : vector<8x8xf32>
    %cst_131 = arith.constant dense<0.000000e+00> : vector<8xf32>
    %230 = vector.multi_reduction <add>, %229, %cst_131 [1] : vector<8x8xf32> to vector<8xf32>
    %231 = vector.shape_cast %230 : vector<8xf32> to vector<8x1xf32>
    %232 = tpu.reciprocal %231 {approx = true} : vector<8x1xf32> -> vector<8x1xf32>
    %233 = vector.broadcast %232 : vector<8x1xf32> to vector<8x8xf32>
    %234 = arith.mulf %229, %233 : vector<8x8xf32>
    %cst_132 = arith.constant dense<0.000000e+00> : vector<8x32xf32>
    %235 = tpu.matmul %234, %222, %cst_132 {dimension_numbers = #tpu.dot_dimension_numbers<[1], [0], [0], [1], [0, 0, 1, 1], [], []>} : vector<8x8xf32>, vector<8x32xf32>, vector<8x32xf32> -> vector<8x32xf32>
    %236 = tpu.concatenate %155, %171, %187, %203, %219, %235 in 1 : vector<8x32xf32>, vector<8x32xf32>, vector<8x32xf32>, vector<8x32xf32>, vector<8x32xf32>, vector<8x32xf32> -> vector<8x192xf32>
    %c8_133 = arith.constant 8 : index
    %c0_134 = arith.constant 0 : index
    %237 = vector.load %arg19[%c8_133, %c0_134] : memref<16x192xf32, #tpu.memory_space<vmem>>, vector<8x192xf32>
    %cst_135 = arith.constant dense<0.000000e+00> : vector<8x192xf32>
    %238 = tpu.matmul %236, %34, %cst_135 {dimension_numbers = #tpu.dot_dimension_numbers<[1], [0], [0], [1], [0, 0, 1, 1], [], []>} : vector<8x192xf32>, vector<192x192xf32>, vector<8x192xf32> -> vector<8x192xf32>
    %239 = arith.addf %237, %238 : vector<8x192xf32>
    %240 = vector.broadcast %36 : vector<1x192xf32> to vector<8x192xf32>
    %241 = arith.addf %239, %240 : vector<8x192xf32>
    %c8_136 = arith.constant 8 : index
    %c0_137 = arith.constant 0 : index
    %242 = vector.load %arg19[%c8_136, %c0_137] : memref<16x192xf32, #tpu.memory_space<vmem>>, vector<8x192xf32>
    tpu.vector_store %arg19[%c8_136, %c0_137], %241 {strides = array<i32>} : memref<16x192xf32, #tpu.memory_space<vmem>>, vector<8x192xf32>,
    %c0_138 = arith.constant 0 : index
    %c0_139 = arith.constant 0 : index
    %243 = vector.load %arg19[%c0_138, %c0_139] : memref<16x192xf32, #tpu.memory_space<vmem>>, vector<16x192xf32>
    %c0_140 = arith.constant 0 : index
    %c0_141 = arith.constant 0 : index
    %c0_142 = arith.constant 0 : index
    %244 = vector.load %arg8[%c0_140, %c0_141, %c0_142] : memref<1x1x192xf32, #tpu.memory_space<vmem>>, vector<1x1x192xf32>
    %245 = vector.shape_cast %244 : vector<1x1x192xf32> to vector<1x192xf32>
    %c0_143 = arith.constant 0 : index
    %c0_144 = arith.constant 0 : index
    %c0_145 = arith.constant 0 : index
    %246 = vector.load %arg9[%c0_143, %c0_144, %c0_145] : memref<1x1x192xf32, #tpu.memory_space<vmem>>, vector<1x1x192xf32>
    %247 = vector.shape_cast %246 : vector<1x1x192xf32> to vector<1x192xf32>
    %cst_146 = arith.constant dense<0.000000e+00> : vector<16xf32>
    %248 = vector.multi_reduction <add>, %243, %cst_146 [1] : vector<16x192xf32> to vector<16xf32>
    %249 = vector.shape_cast %248 : vector<16xf32> to vector<16x1xf32>
    %cst_147 = arith.constant 1.920000e+02 : f32
    %250 = vector.broadcast %cst_147 : f32 to vector<16x1xf32>
    %251 = arith.divf %249, %250 : vector<16x1xf32>
    %252 = vector.broadcast %251 : vector<16x1xf32> to vector<16x192xf32>
    %253 = arith.subf %243, %252 : vector<16x192xf32>
    %254 = arith.mulf %253, %253 : vector<16x192xf32>
    %cst_148 = arith.constant dense<0.000000e+00> : vector<16xf32>
    %255 = vector.multi_reduction <add>, %254, %cst_148 [1] : vector<16x192xf32> to vector<16xf32>
    %256 = vector.shape_cast %255 : vector<16xf32> to vector<16x1xf32>
    %cst_149 = arith.constant 1.920000e+02 : f32
    %257 = vector.broadcast %cst_149 : f32 to vector<16x1xf32>
    %258 = arith.divf %256, %257 : vector<16x1xf32>
    %cst_150 = arith.constant 9.99999974E-6 : f32
    %259 = vector.broadcast %cst_150 : f32 to vector<16x1xf32>
    %260 = arith.addf %258, %259 : vector<16x1xf32>
    %261 = math.rsqrt %260 : vector<16x1xf32>
    %262 = vector.broadcast %261 : vector<16x1xf32> to vector<16x192xf32>
    %263 = arith.mulf %253, %262 : vector<16x192xf32>
    %264 = vector.broadcast %245 : vector<1x192xf32> to vector<16x192xf32>
    %265 = arith.mulf %263, %264 : vector<16x192xf32>
    %266 = vector.broadcast %247 : vector<1x192xf32> to vector<16x192xf32>
    %267 = arith.addf %265, %266 : vector<16x192xf32>
    %c0_151 = arith.constant 0 : index
    %c0_152 = arith.constant 0 : index
    %c0_153 = arith.constant 0 : index
    %268 = vector.load %arg10[%c0_151, %c0_152, %c0_153] : memref<1x192x768xf32, #tpu.memory_space<vmem>>, vector<1x192x768xf32>
    %269 = vector.shape_cast %268 : vector<1x192x768xf32> to vector<192x768xf32>
    %cst_154 = arith.constant dense<0.000000e+00> : vector<16x768xf32>
    %270 = tpu.matmul %267, %269, %cst_154 {dimension_numbers = #tpu.dot_dimension_numbers<[1], [0], [0], [1], [0, 0, 1, 1], [], []>} : vector<16x192xf32>, vector<192x768xf32>, vector<16x768xf32> -> vector<16x768xf32>
    %c0_155 = arith.constant 0 : index
    %c0_156 = arith.constant 0 : index
    %c0_157 = arith.constant 0 : index
    %271 = vector.load %arg11[%c0_155, %c0_156, %c0_157] : memref<1x1x768xf32, #tpu.memory_space<vmem>>, vector<1x1x768xf32>
    %272 = vector.shape_cast %271 : vector<1x1x768xf32> to vector<1x768xf32>
    %273 = vector.broadcast %272 : vector<1x768xf32> to vector<16x768xf32>
    %274 = arith.addf %270, %273 : vector<16x768xf32>
    %cst_158 = arith.constant 0.000000e+00 : f32
    %275 = vector.broadcast %cst_158 : f32 to vector<16x768xf32>
    %276 = arith.maximumf %274, %275 : vector<16x768xf32>
    %c0_159 = arith.constant 0 : index
    %c0_160 = arith.constant 0 : index
    %c0_161 = arith.constant 0 : index
    %277 = vector.load %arg12[%c0_159, %c0_160, %c0_161] : memref<1x768x192xf32, #tpu.memory_space<vmem>>, vector<1x768x192xf32>
    %278 = vector.shape_cast %277 : vector<1x768x192xf32> to vector<768x192xf32>
    %cst_162 = arith.constant dense<0.000000e+00> : vector<16x192xf32>
    %279 = tpu.matmul %276, %278, %cst_162 {dimension_numbers = #tpu.dot_dimension_numbers<[1], [0], [0], [1], [0, 0, 1, 1], [], []>} : vector<16x768xf32>, vector<768x192xf32>, vector<16x192xf32> -> vector<16x192xf32>
    %280 = arith.addf %243, %279 : vector<16x192xf32>
    %c0_163 = arith.constant 0 : index
    %c0_164 = arith.constant 0 : index
    %c0_165 = arith.constant 0 : index
    %281 = vector.load %arg13[%c0_163, %c0_164, %c0_165] : memref<1x1x192xf32, #tpu.memory_space<vmem>>, vector<1x1x192xf32>
    %282 = vector.shape_cast %281 : vector<1x1x192xf32> to vector<1x192xf32>
    %283 = vector.broadcast %282 : vector<1x192xf32> to vector<16x192xf32>
    %284 = arith.addf %280, %283 : vector<16x192xf32>
    %c0_166 = arith.constant 0 : index
    %c0_167 = arith.constant 0 : index
    %285 = vector.load %arg19[%c0_166, %c0_167] : memref<16x192xf32, #tpu.memory_space<vmem>>, vector<16x192xf32>
    tpu.vector_store %arg19[%c0_166, %c0_167], %284 {strides = array<i32>} : memref<16x192xf32, #tpu.memory_space<vmem>>, vector<16x192xf32>,
    %c5_i32 = arith.constant 5 : i32
    %286 = arith.cmpi eq, %arg0, %c5_i32 : i32
    %287 = arith.extui %286 : i1 to i32
    %c0_i32_168 = arith.constant 0 : i32
    %288 = arith.cmpi ne, %287, %c0_i32_168 : i32
    scf.if %288 {
      %c0_169 = arith.constant 0 : index
      %c0_170 = arith.constant 0 : index
      %289 = vector.load %arg14[%c0_169, %c0_170] : memref<1x192xf32, #tpu.memory_space<vmem>>, vector<1x192xf32>
      %c0_171 = arith.constant 0 : index
      %c0_172 = arith.constant 0 : index
      %290 = vector.load %arg15[%c0_171, %c0_172] : memref<1x192xf32, #tpu.memory_space<vmem>>, vector<1x192xf32>
      %cst_173 = arith.constant dense<0.000000e+00> : vector<16xf32>
      %291 = vector.multi_reduction <add>, %284, %cst_173 [1] : vector<16x192xf32> to vector<16xf32>
      %292 = vector.shape_cast %291 : vector<16xf32> to vector<16x1xf32>
      %cst_174 = arith.constant 1.920000e+02 : f32
      %293 = vector.broadcast %cst_174 : f32 to vector<16x1xf32>
      %294 = arith.divf %292, %293 : vector<16x1xf32>
      %295 = vector.broadcast %294 : vector<16x1xf32> to vector<16x192xf32>
      %296 = arith.subf %284, %295 : vector<16x192xf32>
      %297 = arith.mulf %296, %296 : vector<16x192xf32>
      %cst_175 = arith.constant dense<0.000000e+00> : vector<16xf32>
      %298 = vector.multi_reduction <add>, %297, %cst_175 [1] : vector<16x192xf32> to vector<16xf32>
      %299 = vector.shape_cast %298 : vector<16xf32> to vector<16x1xf32>
      %cst_176 = arith.constant 1.920000e+02 : f32
      %300 = vector.broadcast %cst_176 : f32 to vector<16x1xf32>
      %301 = arith.divf %299, %300 : vector<16x1xf32>
      %cst_177 = arith.constant 9.99999974E-6 : f32
      %302 = vector.broadcast %cst_177 : f32 to vector<16x1xf32>
      %303 = arith.addf %301, %302 : vector<16x1xf32>
      %304 = math.rsqrt %303 : vector<16x1xf32>
      %305 = vector.broadcast %304 : vector<16x1xf32> to vector<16x192xf32>
      %306 = arith.mulf %296, %305 : vector<16x192xf32>
      %307 = vector.broadcast %289 : vector<1x192xf32> to vector<16x192xf32>
      %308 = arith.mulf %306, %307 : vector<16x192xf32>
      %309 = vector.broadcast %290 : vector<1x192xf32> to vector<16x192xf32>
      %310 = arith.addf %308, %309 : vector<16x192xf32>
      %c0_178 = arith.constant 0 : index
      %c0_179 = arith.constant 0 : index
      %311 = vector.load %arg16[%c0_178, %c0_179] : memref<192x128xf32, #tpu.memory_space<vmem>>, vector<192x128xf32>
      %cst_180 = arith.constant dense<0.000000e+00> : vector<16x128xf32>
      %312 = tpu.matmul %310, %311, %cst_180 {dimension_numbers = #tpu.dot_dimension_numbers<[1], [0], [0], [1], [0, 0, 1, 1], [], []>} : vector<16x192xf32>, vector<192x128xf32>, vector<16x128xf32> -> vector<16x128xf32>
      %c0_181 = arith.constant 0 : index
      %c0_182 = arith.constant 0 : index
      %313 = vector.load %arg17[%c0_181, %c0_182] : memref<1x128xf32, #tpu.memory_space<vmem>>, vector<1x128xf32>
      %314 = vector.broadcast %313 : vector<1x128xf32> to vector<16x128xf32>
      %315 = arith.addf %312, %314 : vector<16x128xf32>
      %c0_183 = arith.constant 0 : index
      %c0_184 = arith.constant 0 : index
      %316 = vector.load %arg18[%c0_183, %c0_184] : memref<16x128xf32, #tpu.memory_space<vmem>>, vector<16x128xf32>
      tpu.vector_store %arg18[%c0_183, %c0_184], %315 {strides = array<i32>} : memref<16x128xf32, #tpu.memory_space<vmem>>, vector<16x128xf32>,
    } else {
    }
    return
  }
  func.func @transform_0(%arg0: i32) -> (i32, i32) {
    %c0_i32 = arith.constant 0 : i32
    %c0_i32_0 = arith.constant 0 : i32
    %c0_i32_1 = arith.constant 0 : i32
    return %c0_i32, %c0_i32_0 : i32, i32
  }
  func.func @transform_1(%arg0: i32) -> (i32, i32) {
    %c0_i32 = arith.constant 0 : i32
    %c0_i32_0 = arith.constant 0 : i32
    %c0_i32_1 = arith.constant 0 : i32
    return %c0_i32, %c0_i32_0 : i32, i32
  }
  func.func @transform_2(%arg0: i32) -> (i32, i32, i32) {
    %c0_i32 = arith.constant 0 : i32
    %c0_i32_0 = arith.constant 0 : i32
    %c0_i32_1 = arith.constant 0 : i32
    return %arg0, %c0_i32, %c0_i32_0 : i32, i32, i32
  }
  func.func @transform_3(%arg0: i32) -> (i32, i32, i32) {
    %c0_i32 = arith.constant 0 : i32
    %c0_i32_0 = arith.constant 0 : i32
    %c0_i32_1 = arith.constant 0 : i32
    return %arg0, %c0_i32, %c0_i32_0 : i32, i32, i32
  }
  func.func @transform_4(%arg0: i32) -> (i32, i32, i32) {
    %c0_i32 = arith.constant 0 : i32
    %c0_i32_0 = arith.constant 0 : i32
    %c0_i32_1 = arith.constant 0 : i32
    return %arg0, %c0_i32, %c0_i32_0 : i32, i32, i32
  }
  func.func @transform_5(%arg0: i32) -> (i32, i32, i32) {
    %c0_i32 = arith.constant 0 : i32
    %c0_i32_0 = arith.constant 0 : i32
    %c0_i32_1 = arith.constant 0 : i32
    return %arg0, %c0_i32, %c0_i32_0 : i32, i32, i32
  }
  func.func @transform_6(%arg0: i32) -> (i32, i32, i32) {
    %c0_i32 = arith.constant 0 : i32
    %c0_i32_0 = arith.constant 0 : i32
    %c0_i32_1 = arith.constant 0 : i32
    return %arg0, %c0_i32, %c0_i32_0 : i32, i32, i32
  }
  func.func @transform_7(%arg0: i32) -> (i32, i32, i32) {
    %c0_i32 = arith.constant 0 : i32
    %c0_i32_0 = arith.constant 0 : i32
    %c0_i32_1 = arith.constant 0 : i32
    return %arg0, %c0_i32, %c0_i32_0 : i32, i32, i32
  }
  func.func @transform_8(%arg0: i32) -> (i32, i32, i32) {
    %c0_i32 = arith.constant 0 : i32
    %c0_i32_0 = arith.constant 0 : i32
    %c0_i32_1 = arith.constant 0 : i32
    return %arg0, %c0_i32, %c0_i32_0 : i32, i32, i32
  }
  func.func @transform_9(%arg0: i32) -> (i32, i32, i32) {
    %c0_i32 = arith.constant 0 : i32
    %c0_i32_0 = arith.constant 0 : i32
    %c0_i32_1 = arith.constant 0 : i32
    return %arg0, %c0_i32, %c0_i32_0 : i32, i32, i32
  }
  func.func @transform_10(%arg0: i32) -> (i32, i32, i32) {
    %c0_i32 = arith.constant 0 : i32
    %c0_i32_0 = arith.constant 0 : i32
    %c0_i32_1 = arith.constant 0 : i32
    return %arg0, %c0_i32, %c0_i32_0 : i32, i32, i32
  }
  func.func @transform_11(%arg0: i32) -> (i32, i32, i32) {
    %c0_i32 = arith.constant 0 : i32
    %c0_i32_0 = arith.constant 0 : i32
    %c0_i32_1 = arith.constant 0 : i32
    return %arg0, %c0_i32, %c0_i32_0 : i32, i32, i32
  }
  func.func @transform_12(%arg0: i32) -> (i32, i32, i32) {
    %c0_i32 = arith.constant 0 : i32
    %c0_i32_0 = arith.constant 0 : i32
    %c0_i32_1 = arith.constant 0 : i32
    return %arg0, %c0_i32, %c0_i32_0 : i32, i32, i32
  }
  func.func @transform_13(%arg0: i32) -> (i32, i32) {
    %c0_i32 = arith.constant 0 : i32
    %c0_i32_0 = arith.constant 0 : i32
    %c0_i32_1 = arith.constant 0 : i32
    return %c0_i32, %c0_i32_0 : i32, i32
  }
  func.func @transform_14(%arg0: i32) -> (i32, i32) {
    %c0_i32 = arith.constant 0 : i32
    %c0_i32_0 = arith.constant 0 : i32
    %c0_i32_1 = arith.constant 0 : i32
    return %c0_i32, %c0_i32_0 : i32, i32
  }
  func.func @transform_15(%arg0: i32) -> (i32, i32) {
    %c0_i32 = arith.constant 0 : i32
    %c0_i32_0 = arith.constant 0 : i32
    %c0_i32_1 = arith.constant 0 : i32
    return %c0_i32, %c0_i32_0 : i32, i32
  }
  func.func @transform_16(%arg0: i32) -> (i32, i32) {
    %c0_i32 = arith.constant 0 : i32
    %c0_i32_0 = arith.constant 0 : i32
    %c0_i32_1 = arith.constant 0 : i32
    return %c0_i32, %c0_i32_0 : i32, i32
  }
  func.func @transform_17(%arg0: i32) -> (i32, i32) {
    %c0_i32 = arith.constant 0 : i32
    %c0_i32_0 = arith.constant 0 : i32
    %c0_i32_1 = arith.constant 0 : i32
    return %c0_i32, %c0_i32_0 : i32, i32
  }
}

</mosaic_0001>

<llo_original>
// kernel: _lambda_.1
$region0: #{_lambda_.1}
  #allocation0 [shape = 'u32[]', space=smem, size = 0x4, offset = 0x4, fixed_abs, tag = 'smem constant byte address 0x4 - core index']
  #allocation1 [shape = 'u32[144,128]{1,0:T(1,128)}', space=vmem, size = 0x12000, scoped, tag = 'internal scratch']
  #allocation2 [shape = 'f32[16,192]{1,0:T(8,128)}', space=vmem, size = 0x4000, scoped, tag = 'scratch operand']
  #allocation3 [shape = 'f32[16,576]{1,0:T(8,128)}', space=vmem, size = 0xa000, scoped, tag = 'scratch operand']
  %s0 = inlined_call_operand.vmem [shape: f32[16,192], index: 0, kind: input, shape index: {}]
  %s1 = inlined_call_operand.vmem [shape: f32[8,8], index: 1, kind: input, shape index: {}]
  %s2 = inlined_call_operand.vmem [shape: f32[6,1,192], index: 2, kind: input, shape index: {}]
  %s3 = inlined_call_operand.vmem [shape: f32[6,1,192], index: 3, kind: input, shape index: {}]
  %s4 = inlined_call_operand.vmem [shape: f32[6,192,576], index: 4, kind: input, shape index: {}]
  %s5 = inlined_call_operand.vmem [shape: f32[6,192,192], index: 5, kind: input, shape index: {}]
  %s6 = inlined_call_operand.vmem [shape: f32[6,1,192], index: 6, kind: input, shape index: {}]
  %s7 = inlined_call_operand.vmem [shape: f32[6,1,192], index: 7, kind: input, shape index: {}]
  %s8 = inlined_call_operand.vmem [shape: f32[6,1,192], index: 8, kind: input, shape index: {}]
  %s9 = inlined_call_operand.vmem [shape: f32[6,192,768], index: 9, kind: input, shape index: {}]
  %s10 = inlined_call_operand.vmem [shape: f32[6,1,768], index: 10, kind: input, shape index: {}]
  %s11 = inlined_call_operand.vmem [shape: f32[6,768,192], index: 11, kind: input, shape index: {}]
  %s12 = inlined_call_operand.vmem [shape: f32[6,1,192], index: 12, kind: input, shape index: {}]
  %s13 = inlined_call_operand.vmem [shape: f32[1,192], index: 13, kind: input, shape index: {}]
  %s14 = inlined_call_operand.vmem [shape: f32[1,192], index: 14, kind: input, shape index: {}]
  %s15 = inlined_call_operand.vmem [shape: f32[192,128], index: 15, kind: input, shape index: {}]
  %s16 = inlined_call_operand.vmem [shape: f32[1,128], index: 16, kind: input, shape index: {}]
  %s17 = inlined_call_operand.vmem [shape: f32[16,128], index: 17, kind: output, shape index: {}]
  %s18 = sld [smem:[#allocation0]]
  $region109: #{_lambda_.1} parent=0
    _
  %s20 = ssub.s32 1, %s18
  %s21 = scalar_select 0, %s20, %s18
  loop: start=0, step=1, limit=8
  $region2: #{_lambda_.1} parent=0 // loop_pre_header
    _
  $region3: #{_lambda_.1} parent=0 // loop_header
    %s23 = sphi 0, %s27
    %p24 = scmp.ge.s32.totalorder %s23, 8
    %s31 = sphi 0, %s31
    %s33 = sphi 0, %s31
    %s34 = sphi 0, %s33
    %s48 = sphi 0, %s34
    %s52 = sphi 0, %s52
    %s54 = sphi 0, %s52
    %s55 = sphi 0, %s54
    %s69 = sphi 0, %s55
    %s75 = sphi 0, %s77
    %s78 = sphi 0, %s75
    %s79 = sphi 0, %s78
    %s95 = sphi 0, %s79
    %s101 = sphi 0, %s103
    %s104 = sphi 0, %s101
    %s105 = sphi 0, %s104
    %s121 = sphi 0, %s105
    %s127 = sphi 0, %s129
    %s130 = sphi 0, %s127
    %s131 = sphi 0, %s130
    %s147 = sphi 0, %s131
    %s153 = sphi 0, %s155
    %s156 = sphi 0, %s153
    %s157 = sphi 0, %s156
    %s173 = sphi 0, %s157
    %s179 = sphi 0, %s181
    %s182 = sphi 0, %s179
    %s183 = sphi 0, %s182
    %s199 = sphi 0, %s183
    %s205 = sphi 0, %s207
    %s208 = sphi 0, %s205
    %s209 = sphi 0, %s208
    %s225 = sphi 0, %s209
    %s231 = sphi 0, %s233
    %s234 = sphi 0, %s231
    %s235 = sphi 0, %s234
    %s251 = sphi 0, %s235
    %s257 = sphi 0, %s259
    %s260 = sphi 0, %s257
    %s261 = sphi 0, %s260
    %s277 = sphi 0, %s261
    %s283 = sphi 0, %s285
    %s286 = sphi 0, %s283
    %s287 = sphi 0, %s286
    %s303 = sphi 0, %s287
    %s309 = sphi 0, %s311
    %s312 = sphi 0, %s309
    %s313 = sphi 0, %s312
    %s329 = sphi 0, %s313
    %s335 = sphi 0, %s337
    %s338 = sphi 0, %s335
    %s339 = sphi 0, %s338
    %s355 = sphi 0, %s339
    %s359 = sphi 0, %s359
    %s361 = sphi 0, %s359
    %s362 = sphi 0, %s361
    %s376 = sphi 0, %s362
    %s380 = sphi 0, %s380
    %s382 = sphi 0, %s380
    %s383 = sphi 0, %s382
    %s397 = sphi 0, %s383
    %s401 = sphi 0, %s401
    %s403 = sphi 0, %s401
    %s404 = sphi 0, %s403
    %s418 = sphi 0, %s404
    %s422 = sphi 0, %s422
    %s424 = sphi 0, %s422
    %s425 = sphi 0, %s424
    %s439 = sphi 0, %s425
    %s443 = sphi 0, %s443
    %s445 = sphi 0, %s443
    %s446 = sphi 0, %s445
    %s460 = sphi 0, %s446
  $region4: #{_lambda_.1} parent=0 // loop_header_branch
    %26 = sbr.rel (%p24) target = $region8
  $region5: #{_lambda_.1} parent=0 // loop_body
    %s28 = ssub.s32 %s23, 1
    %s29 = ssub.s32 %s23, 2
    %s30 = sadd.s32 %s23, 1
    %s32 = sadd.s32 %s31, 1
    %p35 = scmp.eq.s32.totalorder %s23, 5
    %p36 = scmp.ne.s32.totalorder %s31, %s33
    %p37 = scmp.eq.s32.totalorder %s23, 0
    %p38 = por %p36, %p37
    %p39 = scmp.ne.s32.totalorder %s31, %s33
    %p40 = scmp.eq.s32.totalorder %s28, 5
    %p41 = por %p39, %p40
    %p42 = scmp.ne.s32.totalorder %s33, %s34
    %p43 = scmp.eq.s32.totalorder %s28, 0
    %p44 = por %p42, %p43
    %p45 = scmp.ne.s32.totalorder %s33, %s34
    %p46 = scmp.eq.s32.totalorder %s29, 5
    %p47 = por %p45, %p46
    %p49 = scmp.ne.s32.totalorder %s34, %s48
    %p50 = scmp.eq.s32.totalorder %s29, 0
    %p51 = por %p49, %p50
    %s53 = sadd.s32 %s52, 1
    %p56 = scmp.eq.s32.totalorder %s23, 5
    %p57 = scmp.ne.s32.totalorder %s52, %s54
    %p58 = scmp.eq.s32.totalorder %s23, 0
    %p59 = por %p57, %p58
    %p60 = scmp.ne.s32.totalorder %s52, %s54
    %p61 = scmp.eq.s32.totalorder %s28, 5
    %p62 = por %p60, %p61
    %p63 = scmp.ne.s32.totalorder %s54, %s55
    %p64 = scmp.eq.s32.totalorder %s28, 0
    %p65 = por %p63, %p64
    %p66 = scmp.ne.s32.totalorder %s54, %s55
    %p67 = scmp.eq.s32.totalorder %s29, 5
    %p68 = por %p66, %p67
    %p70 = scmp.ne.s32.totalorder %s55, %s69
    %p71 = scmp.eq.s32.totalorder %s29, 0
    %p72 = por %p70, %p71
    %s73 = ssub.s32 %s23, %s30
    %p74 = scmp.eq.s32.totalorder %s73, 0
    %s76 = sadd.s32 %s75, 1
    %s77 = scalar_select %p74, %s75, %s76
    %p80 = pneg %p74
    %p81 = scmp.eq.s32.totalorder %s23, 5
    %p82 = por %p80, %p81
    %p83 = scmp.ne.s32.totalorder %s75, %s78
    %p84 = scmp.eq.s32.totalorder %s23, 0
    %p85 = por %p83, %p84
    %p86 = scmp.ne.s32.totalorder %s75, %s78
    %p87 = scmp.eq.s32.totalorder %s28, 5
    %p88 = por %p86, %p87
    %p89 = scmp.ne.s32.totalorder %s78, %s79
    %p90 = scmp.eq.s32.totalorder %s28, 0
    %p91 = por %p89, %p90
    %p92 = scmp.ne.s32.totalorder %s78, %s79
    %p93 = scmp.eq.s32.totalorder %s29, 5
    %p94 = por %p92, %p93
    %p96 = scmp.ne.s32.totalorder %s79, %s95
    %p97 = scmp.eq.s32.totalorder %s29, 0
    %p98 = por %p96, %p97
    %s99 = ssub.s32 %s23, %s30
    %p100 = scmp.eq.s32.totalorder %s99, 0
    %s102 = sadd.s32 %s101, 1
    %s103 = scalar_select %p100, %s101, %s102
    %p106 = pneg %p100
    %p107 = scmp.eq.s32.totalorder %s23, 5
    %p108 = por %p106, %p107
    %p109 = scmp.ne.s32.totalorder %s101, %s104
    %p110 = scmp.eq.s32.totalorder %s23, 0
    %p111 = por %p109, %p110
    %p112 = scmp.ne.s32.totalorder %s101, %s104
    %p113 = scmp.eq.s32.totalorder %s28, 5
    %p114 = por %p112, %p113
    %p115 = scmp.ne.s32.totalorder %s104, %s105
    %p116 = scmp.eq.s32.totalorder %s28, 0
    %p117 = por %p115, %p116
    %p118 = scmp.ne.s32.totalorder %s104, %s105
    %p119 = scmp.eq.s32.totalorder %s29, 5
    %p120 = por %p118, %p119
    %p122 = scmp.ne.s32.totalorder %s105, %s121
    %p123 = scmp.eq.s32.totalorder %s29, 0
    %p124 = por %p122, %p123
    %s125 = ssub.s32 %s23, %s30
    %p126 = scmp.eq.s32.totalorder %s125, 0
    %s128 = sadd.s32 %s127, 1
    %s129 = scalar_select %p126, %s127, %s128
    %p132 = pneg %p126
    %p133 = scmp.eq.s32.totalorder %s23, 5
    %p134 = por %p132, %p133
    %p135 = scmp.ne.s32.totalorder %s127, %s130
    %p136 = scmp.eq.s32.totalorder %s23, 0
    %p137 = por %p135, %p136
    %p138 = scmp.ne.s32.totalorder %s127, %s130
    %p139 = scmp.eq.s32.totalorder %s28, 5
    %p140 = por %p138, %p139
    %p141 = scmp.ne.s32.totalorder %s130, %s131
    %p142 = scmp.eq.s32.totalorder %s28, 0
    %p143 = por %p141, %p142
    %p144 = scmp.ne.s32.totalorder %s130, %s131
    %p145 = scmp.eq.s32.totalorder %s29, 5
    %p146 = por %p144, %p145
    %p148 = scmp.ne.s32.totalorder %s131, %s147
    %p149 = scmp.eq.s32.totalorder %s29, 0
    %p150 = por %p148, %p149
    %s151 = ssub.s32 %s23, %s30
    %p152 = scmp.eq.s32.totalorder %s151, 0
    %s154 = sadd.s32 %s153, 1
    %s155 = scalar_select %p152, %s153, %s154
    %p158 = pneg %p152
    %p159 = scmp.eq.s32.totalorder %s23, 5
    %p160 = por %p158, %p159
    %p161 = scmp.ne.s32.totalorder %s153, %s156
    %p162 = scmp.eq.s32.totalorder %s23, 0
    %p163 = por %p161, %p162
    %p164 = scmp.ne.s32.totalorder %s153, %s156
    %p165 = scmp.eq.s32.totalorder %s28, 5
    %p166 = por %p164, %p165
    %p167 = scmp.ne.s32.totalorder %s156, %s157
    %p168 = scmp.eq.s32.totalorder %s28, 0
    %p169 = por %p167, %p168
    %p170 = scmp.ne.s32.totalorder %s156, %s157
    %p171 = scmp.eq.s32.totalorder %s29, 5
    %p172 = por %p170, %p171
    %p174 = scmp.ne.s32.totalorder %s157, %s173
    %p175 = scmp.eq.s32.totalorder %s29, 0
    %p176 = por %p174, %p175
    %s177 = ssub.s32 %s23, %s30
    %p178 = scmp.eq.s32.totalorder %s177, 0
    %s180 = sadd.s32 %s179, 1
    %s181 = scalar_select %p178, %s179, %s180
    %p184 = pneg %p178
    %p185 = scmp.eq.s32.totalorder %s23, 5
    %p186 = por %p184, %p185
    %p187 = scmp.ne.s32.totalorder %s179, %s182
    %p188 = scmp.eq.s32.totalorder %s23, 0
    %p189 = por %p187, %p188
    %p190 = scmp.ne.s32.totalorder %s179, %s182
    %p191 = scmp.eq.s32.totalorder %s28, 5
    %p192 = por %p190, %p191
    %p193 = scmp.ne.s32.totalorder %s182, %s183
    %p194 = scmp.eq.s32.totalorder %s28, 0
    %p195 = por %p193, %p194
    %p196 = scmp.ne.s32.totalorder %s182, %s183
    %p197 = scmp.eq.s32.totalorder %s29, 5
    %p198 = por %p196, %p197
    %p200 = scmp.ne.s32.totalorder %s183, %s199
    %p201 = scmp.eq.s32.totalorder %s29, 0
    %p202 = por %p200, %p201
    %s203 = ssub.s32 %s23, %s30
    %p204 = scmp.eq.s32.totalorder %s203, 0
    %s206 = sadd.s32 %s205, 1
    %s207 = scalar_select %p204, %s205, %s206
    %p210 = pneg %p204
    %p211 = scmp.eq.s32.totalorder %s23, 5
    %p212 = por %p210, %p211
    %p213 = scmp.ne.s32.totalorder %s205, %s208
    %p214 = scmp.eq.s32.totalorder %s23, 0
    %p215 = por %p213, %p214
    %p216 = scmp.ne.s32.totalorder %s205, %s208
    %p217 = scmp.eq.s32.totalorder %s28, 5
    %p218 = por %p216, %p217
    %p219 = scmp.ne.s32.totalorder %s208, %s209
    %p220 = scmp.eq.s32.totalorder %s28, 0
    %p221 = por %p219, %p220
    %p222 = scmp.ne.s32.totalorder %s208, %s209
    %p223 = scmp.eq.s32.totalorder %s29, 5
    %p224 = por %p222, %p223
    %p226 = scmp.ne.s32.totalorder %s209, %s225
    %p227 = scmp.eq.s32.totalorder %s29, 0
    %p228 = por %p226, %p227
    %s229 = ssub.s32 %s23, %s30
    %p230 = scmp.eq.s32.totalorder %s229, 0
    %s232 = sadd.s32 %s231, 1
    %s233 = scalar_select %p230, %s231, %s232
    %p236 = pneg %p230
    %p237 = scmp.eq.s32.totalorder %s23, 5
    %p238 = por %p236, %p237
    %p239 = scmp.ne.s32.totalorder %s231, %s234
    %p240 = scmp.eq.s32.totalorder %s23, 0
    %p241 = por %p239, %p240
    %p242 = scmp.ne.s32.totalorder %s231, %s234
    %p243 = scmp.eq.s32.totalorder %s28, 5
    %p244 = por %p242, %p243
    %p245 = scmp.ne.s32.totalorder %s234, %s235
    %p246 = scmp.eq.s32.totalorder %s28, 0
    %p247 = por %p245, %p246
    %p248 = scmp.ne.s32.totalorder %s234, %s235
    %p249 = scmp.eq.s32.totalorder %s29, 5
    %p250 = por %p248, %p249
    %p252 = scmp.ne.s32.totalorder %s235, %s251
    %p253 = scmp.eq.s32.totalorder %s29, 0
    %p254 = por %p252, %p253
    %s255 = ssub.s32 %s23, %s30
    %p256 = scmp.eq.s32.totalorder %s255, 0
    %s258 = sadd.s32 %s257, 1
    %s259 = scalar_select %p256, %s257, %s258
    %p262 = pneg %p256
    %p263 = scmp.eq.s32.totalorder %s23, 5
    %p264 = por %p262, %p263
    %p265 = scmp.ne.s32.totalorder %s257, %s260
    %p266 = scmp.eq.s32.totalorder %s23, 0
    %p267 = por %p265, %p266
    %p268 = scmp.ne.s32.totalorder %s257, %s260
    %p269 = scmp.eq.s32.totalorder %s28, 5
    %p270 = por %p268, %p269
    %p271 = scmp.ne.s32.totalorder %s260, %s261
    %p272 = scmp.eq.s32.totalorder %s28, 0
    %p273 = por %p271, %p272
    %p274 = scmp.ne.s32.totalorder %s260, %s261
    %p275 = scmp.eq.s32.totalorder %s29, 5
    %p276 = por %p274, %p275
    %p278 = scmp.ne.s32.totalorder %s261, %s277
    %p279 = scmp.eq.s32.totalorder %s29, 0
    %p280 = por %p278, %p279
    %s281 = ssub.s32 %s23, %s30
    %p282 = scmp.eq.s32.totalorder %s281, 0
    %s284 = sadd.s32 %s283, 1
    %s285 = scalar_select %p282, %s283, %s284
    %p288 = pneg %p282
    %p289 = scmp.eq.s32.totalorder %s23, 5
    %p290 = por %p288, %p289
    %p291 = scmp.ne.s32.totalorder %s283, %s286
    %p292 = scmp.eq.s32.totalorder %s23, 0
    %p293 = por %p291, %p292
    %p294 = scmp.ne.s32.totalorder %s283, %s286
    %p295 = scmp.eq.s32.totalorder %s28, 5
    %p296 = por %p294, %p295
    %p297 = scmp.ne.s32.totalorder %s286, %s287
    %p298 = scmp.eq.s32.totalorder %s28, 0
    %p299 = por %p297, %p298
    %p300 = scmp.ne.s32.totalorder %s286, %s287
    %p301 = scmp.eq.s32.totalorder %s29, 5
    %p302 = por %p300, %p301
    %p304 = scmp.ne.s32.totalorder %s287, %s303
    %p305 = scmp.eq.s32.totalorder %s29, 0
    %p306 = por %p304, %p305
    %s307 = ssub.s32 %s23, %s30
    %p308 = scmp.eq.s32.totalorder %s307, 0
    %s310 = sadd.s32 %s309, 1
    %s311 = scalar_select %p308, %s309, %s310
    %p314 = pneg %p308
    %p315 = scmp.eq.s32.totalorder %s23, 5
    %p316 = por %p314, %p315
    %p317 = scmp.ne.s32.totalorder %s309, %s312
    %p318 = scmp.eq.s32.totalorder %s23, 0
    %p319 = por %p317, %p318
    %p320 = scmp.ne.s32.totalorder %s309, %s312
    %p321 = scmp.eq.s32.totalorder %s28, 5
    %p322 = por %p320, %p321
    %p323 = scmp.ne.s32.totalorder %s312, %s313
    %p324 = scmp.eq.s32.totalorder %s28, 0
    %p325 = por %p323, %p324
    %p326 = scmp.ne.s32.totalorder %s312, %s313
    %p327 = scmp.eq.s32.totalorder %s29, 5
    %p328 = por %p326, %p327
    %p330 = scmp.ne.s32.totalorder %s313, %s329
    %p331 = scmp.eq.s32.totalorder %s29, 0
    %p332 = por %p330, %p331
    %s333 = ssub.s32 %s23, %s30
    %p334 = scmp.eq.s32.totalorder %s333, 0
    %s336 = sadd.s32 %s335, 1
    %s337 = scalar_select %p334, %s335, %s336
    %p340 = pneg %p334
    %p341 = scmp.eq.s32.totalorder %s23, 5
    %p342 = por %p340, %p341
    %p343 = scmp.ne.s32.totalorder %s335, %s338
    %p344 = scmp.eq.s32.totalorder %s23, 0
    %p345 = por %p343, %p344
    %p346 = scmp.ne.s32.totalorder %s335, %s338
    %p347 = scmp.eq.s32.totalorder %s28, 5
    %p348 = por %p346, %p347
    %p349 = scmp.ne.s32.totalorder %s338, %s339
    %p350 = scmp.eq.s32.totalorder %s28, 0
    %p351 = por %p349, %p350
    %p352 = scmp.ne.s32.totalorder %s338, %s339
    %p353 = scmp.eq.s32.totalorder %s29, 5
    %p354 = por %p352, %p353
    %p356 = scmp.ne.s32.totalorder %s339, %s355
    %p357 = scmp.eq.s32.totalorder %s29, 0
    %p358 = por %p356, %p357
    %s360 = sadd.s32 %s359, 1
    %p363 = scmp.eq.s32.totalorder %s23, 5
    %p364 = scmp.ne.s32.totalorder %s359, %s361
    %p365 = scmp.eq.s32.totalorder %s23, 0
    %p366 = por %p364, %p365
    %p367 = scmp.ne.s32.totalorder %s359, %s361
    %p368 = scmp.eq.s32.totalorder %s28, 5
    %p369 = por %p367, %p368
    %p370 = scmp.ne.s32.totalorder %s361, %s362
    %p371 = scmp.eq.s32.totalorder %s28, 0
    %p372 = por %p370, %p371
    %p373 = scmp.ne.s32.totalorder %s361, %s362
    %p374 = scmp.eq.s32.totalorder %s29, 5
    %p375 = por %p373, %p374
    %p377 = scmp.ne.s32.totalorder %s362, %s376
    %p378 = scmp.eq.s32.totalorder %s29, 0
    %p379 = por %p377, %p378
    %s381 = sadd.s32 %s380, 1
    %p384 = scmp.eq.s32.totalorder %s23, 5
    %p385 = scmp.ne.s32.totalorder %s380, %s382
    %p386 = scmp.eq.s32.totalorder %s23, 0
    %p387 = por %p385, %p386
    %p388 = scmp.ne.s32.totalorder %s380, %s382
    %p389 = scmp.eq.s32.totalorder %s28, 5
    %p390 = por %p388, %p389
    %p391 = scmp.ne.s32.totalorder %s382, %s383
    %p392 = scmp.eq.s32.totalorder %s28, 0
    %p393 = por %p391, %p392
    %p394 = scmp.ne.s32.totalorder %s382, %s383
    %p395 = scmp.eq.s32.totalorder %s29, 5
    %p396 = por %p394, %p395
    %p398 = scmp.ne.s32.totalorder %s383, %s397
    %p399 = scmp.eq.s32.totalorder %s29, 0
    %p400 = por %p398, %p399
    %s402 = sadd.s32 %s401, 1
    %p405 = scmp.eq.s32.totalorder %s23, 5
    %p406 = scmp.ne.s32.totalorder %s401, %s403
    %p407 = scmp.eq.s32.totalorder %s23, 0
    %p408 = por %p406, %p407
    %p409 = scmp.ne.s32.totalorder %s401, %s403
    %p410 = scmp.eq.s32.totalorder %s28, 5
    %p411 = por %p409, %p410
    %p412 = scmp.ne.s32.totalorder %s403, %s404
    %p413 = scmp.eq.s32.totalorder %s28, 0
    %p414 = por %p412, %p413
    %p415 = scmp.ne.s32.totalorder %s403, %s404
    %p416 = scmp.eq.s32.totalorder %s29, 5
    %p417 = por %p415, %p416
    %p419 = scmp.ne.s32.totalorder %s404, %s418
    %p420 = scmp.eq.s32.totalorder %s29, 0
    %p421 = por %p419, %p420
    %s423 = sadd.s32 %s422, 1
    %p426 = scmp.eq.s32.totalorder %s23, 5
    %p427 = scmp.ne.s32.totalorder %s422, %s424
    %p428 = scmp.eq.s32.totalorder %s23, 0
    %p429 = por %p427, %p428
    %p430 = scmp.ne.s32.totalorder %s422, %s424
    %p431 = scmp.eq.s32.totalorder %s28, 5
    %p432 = por %p430, %p431
    %p433 = scmp.ne.s32.totalorder %s424, %s425
    %p434 = scmp.eq.s32.totalorder %s28, 0
    %p435 = por %p433, %p434
    %p436 = scmp.ne.s32.totalorder %s424, %s425
    %p437 = scmp.eq.s32.totalorder %s29, 5
    %p438 = por %p436, %p437
    %p440 = scmp.ne.s32.totalorder %s425, %s439
    %p441 = scmp.eq.s32.totalorder %s29, 0
    %p442 = por %p440, %p441
    %s444 = sadd.s32 %s443, 1
    %p447 = scmp.eq.s32.totalorder %s23, 5
    %p448 = scmp.ne.s32.totalorder %s443, %s445
    %p449 = scmp.eq.s32.totalorder %s23, 0
    %p450 = por %p448, %p449
    %p451 = scmp.ne.s32.totalorder %s443, %s445
    %p452 = scmp.eq.s32.totalorder %s28, 5
    %p453 = por %p451, %p452
    %p454 = scmp.ne.s32.totalorder %s445, %s446
    %p455 = scmp.eq.s32.totalorder %s28, 0
    %p456 = por %p454, %p455
    %p457 = scmp.ne.s32.totalorder %s445, %s446
    %p458 = scmp.eq.s32.totalorder %s29, 5
    %p459 = por %p457, %p458
    %p461 = scmp.ne.s32.totalorder %s446, %s460
    %p462 = scmp.eq.s32.totalorder %s29, 0
    %p463 = por %p461, %p462
    %p464 = scmp.le.s32.totalorder 1, %s23
    %p465 = scmp.lt.s32.totalorder %s23, 7
    %p466 = pnand %p464, %p465
    %p467 = pneg %p466
    // Predicated region
    $region9: #{_lambda_.1} parent=5 // pred_check
      _
    $region10: #{_lambda_.1} parent=5 // pred_check_branch
      %469 = sbr.rel (%p466) target = $region12
    $region11: #{_lambda_.1} parent=5 // pred_region
      %s470 = ssub.s32 %s23, 1
      // Predicated region
      $region13: #{_lambda_.1} parent=11 // pred_check
        %p471 = pneg %p44
      $region14: #{_lambda_.1} parent=11 // pred_check_branch
        %473 = sbr.rel (%p471) target = $region16
      $region15: #{_lambda_.1} parent=11 // pred_region
        _
      $region16: #{_lambda_.1} parent=11 // pred_fallthru
        _
      // Predicated region
      $region17: #{_lambda_.1} parent=11 // pred_check
        %p474 = pneg %p65
      $region18: #{_lambda_.1} parent=11 // pred_check_branch
        %476 = sbr.rel (%p474) target = $region20
      $region19: #{_lambda_.1} parent=11 // pred_region
        _
      $region20: #{_lambda_.1} parent=11 // pred_fallthru
        _
      // Predicated region
      $region21: #{_lambda_.1} parent=11 // pred_check
        %p477 = pneg %p372
      $region22: #{_lambda_.1} parent=11 // pred_check_branch
        %479 = sbr.rel (%p477) target = $region24
      $region23: #{_lambda_.1} parent=11 // pred_region
        _
      $region24: #{_lambda_.1} parent=11 // pred_fallthru
        _
      // Predicated region
      $region25: #{_lambda_.1} parent=11 // pred_check
        %p480 = pneg %p393
      $region26: #{_lambda_.1} parent=11 // pred_check_branch
        %482 = sbr.rel (%p480) target = $region28
      $region27: #{_lambda_.1} parent=11 // pred_region
        _
      $region28: #{_lambda_.1} parent=11 // pred_fallthru
        _
      // Predicated region
      $region29: #{_lambda_.1} parent=11 // pred_check
        %p483 = pneg %p414
      $region30: #{_lambda_.1} parent=11 // pred_check_branch
        %485 = sbr.rel (%p483) target = $region32
      $region31: #{_lambda_.1} parent=11 // pred_region
        _
      $region32: #{_lambda_.1} parent=11 // pred_fallthru
        _
      // Predicated region
      $region33: #{_lambda_.1} parent=11 // pred_check
        %p486 = pneg %p435
      $region34: #{_lambda_.1} parent=11 // pred_check_branch
        %488 = sbr.rel (%p486) target = $region36
      $region35: #{_lambda_.1} parent=11 // pred_region
        _
      $region36: #{_lambda_.1} parent=11 // pred_fallthru
        _
    $region12: #{_lambda_.1} parent=5 // pred_fallthru
      _
    %p489 = scmp.lt.s32.totalorder %s23, 6
    // Predicated region
    $region37: #{_lambda_.1} parent=5 // pred_check
      %p490 = pneg %p489
    $region38: #{_lambda_.1} parent=5 // pred_check_branch
      %492 = sbr.rel (%p490) target = $region40
    $region39: #{_lambda_.1} parent=5 // pred_region
      // Predicated region
      $region41: #{_lambda_.1} parent=39 // pred_check
        %p493 = pneg %p85
      $region42: #{_lambda_.1} parent=39 // pred_check_branch
        %495 = sbr.rel (%p493) target = $region44
      $region43: #{_lambda_.1} parent=39 // pred_region
        %p496 = scmp.lt.s32.totalorder %s23, 5
        %s497 = scalar_select %p496, %s23, 5
        %s498 = smul.addr %s497, 2
        %s499 = scalar_lea.vmem %s2, %s498
      $region44: #{_lambda_.1} parent=39 // pred_fallthru
        _
      // Predicated region
      $region45: #{_lambda_.1} parent=39 // pred_check
        %p500 = pneg %p111
      $region46: #{_lambda_.1} parent=39 // pred_check_branch
        %502 = sbr.rel (%p500) target = $region48
      $region47: #{_lambda_.1} parent=39 // pred_region
        %p503 = scmp.lt.s32.totalorder %s23, 5
        %s504 = scalar_select %p503, %s23, 5
        %s505 = smul.addr %s504, 2
        %s506 = scalar_lea.vmem %s3, %s505
      $region48: #{_lambda_.1} parent=39 // pred_fallthru
        _
      // Predicated region
      $region49: #{_lambda_.1} parent=39 // pred_check
        %p507 = pneg %p137
      $region50: #{_lambda_.1} parent=39 // pred_check_branch
        %509 = sbr.rel (%p507) target = $region52
      $region51: #{_lambda_.1} parent=39 // pred_region
        %p510 = scmp.lt.s32.totalorder %s23, 5
        %s511 = scalar_select %p510, %s23, 5
        %s512 = smul.addr %s511, 120
        %s513 = smul.addr %s512, 8
        %s514 = scalar_lea.vmem %s4, %s513
      $region52: #{_lambda_.1} parent=39 // pred_fallthru
        _
      // Predicated region
      $region53: #{_lambda_.1} parent=39 // pred_check
        %p515 = pneg %p163
      $region54: #{_lambda_.1} parent=39 // pred_check_branch
        %517 = sbr.rel (%p515) target = $region56
      $region55: #{_lambda_.1} parent=39 // pred_region
        %p518 = scmp.lt.s32.totalorder %s23, 5
        %s519 = scalar_select %p518, %s23, 5
        %s520 = smul.addr %s519, 48
        %s521 = smul.addr %s520, 8
        %s522 = scalar_lea.vmem %s5, %s521
      $region56: #{_lambda_.1} parent=39 // pred_fallthru
        _
      // Predicated region
      $region57: #{_lambda_.1} parent=39 // pred_check
        %p523 = pneg %p189
      $region58: #{_lambda_.1} parent=39 // pred_check_branch
        %525 = sbr.rel (%p523) target = $region60
      $region59: #{_lambda_.1} parent=39 // pred_region
        %p526 = scmp.lt.s32.totalorder %s23, 5
        %s527 = scalar_select %p526, %s23, 5
        %s528 = smul.addr %s527, 2
        %s529 = scalar_lea.vmem %s6, %s528
      $region60: #{_lambda_.1} parent=39 // pred_fallthru
        _
      // Predicated region
      $region61: #{_lambda_.1} parent=39 // pred_check
        %p530 = pneg %p215
      $region62: #{_lambda_.1} parent=39 // pred_check_branch
        %532 = sbr.rel (%p530) target = $region64
      $region63: #{_lambda_.1} parent=39 // pred_region
        %p533 = scmp.lt.s32.totalorder %s23, 5
        %s534 = scalar_select %p533, %s23, 5
        %s535 = smul.addr %s534, 2
        %s536 = scalar_lea.vmem %s7, %s535
      $region64: #{_lambda_.1} parent=39 // pred_fallthru
        _
      // Predicated region
      $region65: #{_lambda_.1} parent=39 // pred_check
        %p537 = pneg %p241
      $region66: #{_lambda_.1} parent=39 // pred_check_branch
        %539 = sbr.rel (%p537) target = $region68
      $region67: #{_lambda_.1} parent=39 // pred_region
        %p540 = scmp.lt.s32.totalorder %s23, 5
        %s541 = scalar_select %p540, %s23, 5
        %s542 = smul.addr %s541, 2
        %s543 = scalar_lea.vmem %s8, %s542
      $region68: #{_lambda_.1} parent=39 // pred_fallthru
        _
      // Predicated region
      $region69: #{_lambda_.1} parent=39 // pred_check
        %p544 = pneg %p267
      $region70: #{_lambda_.1} parent=39 // pred_check_branch
        %546 = sbr.rel (%p544) target = $region72
      $region71: #{_lambda_.1} parent=39 // pred_region
        %p547 = scmp.lt.s32.totalorder %s23, 5
        %s548 = scalar_select %p547, %s23, 5
        %s549 = smul.addr %s548, 144
        %s550 = smul.addr %s549, 8
        %s551 = scalar_lea.vmem %s9, %s550
      $region72: #{_lambda_.1} parent=39 // pred_fallthru
        _
      // Predicated region
      $region73: #{_lambda_.1} parent=39 // pred_check
        %p552 = pneg %p293
      $region74: #{_lambda_.1} parent=39 // pred_check_branch
        %554 = sbr.rel (%p552) target = $region76
      $region75: #{_lambda_.1} parent=39 // pred_region
        %p555 = scmp.lt.s32.totalorder %s23, 5
        %s556 = scalar_select %p555, %s23, 5
        %s557 = smul.addr %s556, 6
        %s558 = scalar_lea.vmem %s10, %s557
      $region76: #{_lambda_.1} parent=39 // pred_fallthru
        _
      // Predicated region
      $region77: #{_lambda_.1} parent=39 // pred_check
        %p559 = pneg %p319
      $region78: #{_lambda_.1} parent=39 // pred_check_branch
        %561 = sbr.rel (%p559) target = $region80
      $region79: #{_lambda_.1} parent=39 // pred_region
        %p562 = scmp.lt.s32.totalorder %s23, 5
        %s563 = scalar_select %p562, %s23, 5
        %s564 = smul.addr %s563, 192
        %s565 = smul.addr %s564, 8
        %s566 = scalar_lea.vmem %s11, %s565
      $region80: #{_lambda_.1} parent=39 // pred_fallthru
        _
      // Predicated region
      $region81: #{_lambda_.1} parent=39 // pred_check
        %p567 = pneg %p345
      $region82: #{_lambda_.1} parent=39 // pred_check_branch
        %569 = sbr.rel (%p567) target = $region84
      $region83: #{_lambda_.1} parent=39 // pred_region
        %p570 = scmp.lt.s32.totalorder %s23, 5
        %s571 = scalar_select %p570, %s23, 5
        %s572 = smul.addr %s571, 2
        %s573 = scalar_lea.vmem %s12, %s572
      $region84: #{_lambda_.1} parent=39 // pred_fallthru
        _
    $region40: #{_lambda_.1} parent=5 // pred_fallthru
      _
    %p574 = scmp.le.s32.totalorder 1, %s23
    %p575 = scmp.lt.s32.totalorder %s23, 7
    %p576 = pnand %p574, %p575
    %p577 = pneg %p576
    // Predicated region
    $region85: #{_lambda_.1} parent=5 // pred_check
      _
    $region86: #{_lambda_.1} parent=5 // pred_check_branch
      %579 = sbr.rel (%p576) target = $region88
    $region87: #{_lambda_.1} parent=5 // pred_region
      %s580 = ssub.s32 %s23, 1
      %p581 = pneg %p44
      %p582 = pneg %p41
      %p583 = pneg %p65
      %p584 = pneg %p62
      %p585 = scmp.lt.s32.totalorder %s28, 5
      %s586 = scalar_select %p585, %s28, 5
      %s587 = smul.addr %s586, 2
      %s588 = scalar_lea.vmem %s2, %s587
      %p589 = pneg %p91
      %p590 = pneg %p88
      %p591 = scmp.lt.s32.totalorder %s28, 5
      %s592 = scalar_select %p591, %s28, 5
      %s593 = smul.addr %s592, 2
      %s594 = scalar_lea.vmem %s3, %s593
      %p595 = pneg %p117
      %p596 = pneg %p114
      %p597 = scmp.lt.s32.totalorder %s28, 5
      %s598 = scalar_select %p597, %s28, 5
      %s599 = smul.addr %s598, 120
      %s600 = smul.addr %s599, 8
      %s601 = scalar_lea.vmem %s4, %s600
      %p602 = pneg %p143
      %p603 = pneg %p140
      %p604 = scmp.lt.s32.totalorder %s28, 5
      %s605 = scalar_select %p604, %s28, 5
      %s606 = smul.addr %s605, 48
      %s607 = smul.addr %s606, 8
      %s608 = scalar_lea.vmem %s5, %s607
      %p609 = pneg %p169
      %p610 = pneg %p166
      %p611 = scmp.lt.s32.totalorder %s28, 5
      %s612 = scalar_select %p611, %s28, 5
      %s613 = smul.addr %s612, 2
      %s614 = scalar_lea.vmem %s6, %s613
      %p615 = pneg %p195
      %p616 = pneg %p192
      %p617 = scmp.lt.s32.totalorder %s28, 5
      %s618 = scalar_select %p617, %s28, 5
      %s619 = smul.addr %s618, 2
      %s620 = scalar_lea.vmem %s7, %s619
      %p621 = pneg %p221
      %p622 = pneg %p218
      %p623 = scmp.lt.s32.totalorder %s28, 5
      %s624 = scalar_select %p623, %s28, 5
      %s625 = smul.addr %s624, 2
      %s626 = scalar_lea.vmem %s8, %s625
      %p627 = pneg %p247
      %p628 = pneg %p244
      %p629 = scmp.lt.s32.totalorder %s28, 5
      %s630 = scalar_select %p629, %s28, 5
      %s631 = smul.addr %s630, 144
      %s632 = smul.addr %s631, 8
      %s633 = scalar_lea.vmem %s9, %s632
      %p634 = pneg %p273
      %p635 = pneg %p270
      %p636 = scmp.lt.s32.totalorder %s28, 5
      %s637 = scalar_select %p636, %s28, 5
      %s638 = smul.addr %s637, 6
      %s639 = scalar_lea.vmem %s10, %s638
      %p640 = pneg %p299
      %p641 = pneg %p296
      %p642 = scmp.lt.s32.totalorder %s28, 5
      %s643 = scalar_select %p642, %s28, 5
      %s644 = smul.addr %s643, 192
      %s645 = smul.addr %s644, 8
      %s646 = scalar_lea.vmem %s11, %s645
      %p647 = pneg %p325
      %p648 = pneg %p322
      %p649 = scmp.lt.s32.totalorder %s28, 5
      %s650 = scalar_select %p649, %s28, 5
      %s651 = smul.addr %s650, 2
      %s652 = scalar_lea.vmem %s12, %s651
      %p653 = pneg %p351
      %p654 = pneg %p348
      %p655 = pneg %p372
      %p656 = pneg %p369
      %p657 = pneg %p393
      %p658 = pneg %p390
      %p659 = pneg %p414
      %p660 = pneg %p411
      %p661 = pneg %p435
      %p662 = pneg %p432
      %p663 = pneg %p456
      %p664 = pneg %p453
      %p665 = scmp.lt.s32.totalorder %s28, 5
      %s666 = scalar_select %p665, %s28, 5
      %s667 = smul.addr %s666, 2
      %s668 = scalar_lea.vmem %s2, %s667
      %p669 = scmp.lt.s32.totalorder %s28, 5
      %s670 = scalar_select %p669, %s28, 5
      %s671 = smul.addr %s670, 2
      %s672 = scalar_lea.vmem %s3, %s671
      %p673 = scmp.lt.s32.totalorder %s28, 5
      %s674 = scalar_select %p673, %s28, 5
      %s675 = smul.addr %s674, 120
      %s676 = smul.addr %s675, 8
      %s677 = scalar_lea.vmem %s4, %s676
      %p678 = scmp.lt.s32.totalorder %s28, 5
      %s679 = scalar_select %p678, %s28, 5
      %s680 = smul.addr %s679, 48
      %s681 = smul.addr %s680, 8
      %s682 = scalar_lea.vmem %s5, %s681
      %p683 = scmp.lt.s32.totalorder %s28, 5
      %s684 = scalar_select %p683, %s28, 5
      %s685 = smul.addr %s684, 2
      %s686 = scalar_lea.vmem %s6, %s685
      %p687 = scmp.lt.s32.totalorder %s28, 5
      %s688 = scalar_select %p687, %s28, 5
      %s689 = smul.addr %s688, 2
      %s690 = scalar_lea.vmem %s7, %s689
      %p691 = scmp.lt.s32.totalorder %s28, 5
      %s692 = scalar_select %p691, %s28, 5
      %s693 = smul.addr %s692, 2
      %s694 = scalar_lea.vmem %s8, %s693
      %p695 = scmp.lt.s32.totalorder %s28, 5
      %s696 = scalar_select %p695, %s28, 5
      %s697 = smul.addr %s696, 144
      %s698 = smul.addr %s697, 8
      %s699 = scalar_lea.vmem %s9, %s698
      %p700 = scmp.lt.s32.totalorder %s28, 5
      %s701 = scalar_select %p700, %s28, 5
      %s702 = smul.addr %s701, 6
      %s703 = scalar_lea.vmem %s10, %s702
      %p704 = scmp.lt.s32.totalorder %s28, 5
      %s705 = scalar_select %p704, %s28, 5
      %s706 = smul.addr %s705, 192
      %s707 = smul.addr %s706, 8
      %s708 = scalar_lea.vmem %s11, %s707
      %p709 = scmp.lt.s32.totalorder %s28, 5
      %s710 = scalar_select %p709, %s28, 5
      %s711 = smul.addr %s710, 2
      %s712 = scalar_lea.vmem %s12, %s711
      %p713 = scmp.eq.s32.totalorder %s28, 0
      // Predicated region
      $region89: #{_lambda_.1} parent=87 // pred_check
        %p714 = pneg %p713
      $region90: #{_lambda_.1} parent=87 // pred_check_branch
        %716 = sbr.rel (%p714) target = $region92
      $region91: #{_lambda_.1} parent=87 // pred_region
        %v717 = vld [vmem:[%s0] sm:$0xff]
        %v718 = vld [vmem:[%s0 + $0x8] sm:$0xff]
        %v719 = vld [vmem:[%s0 + $0x10] sm:$0xff]
        %v720 = vld [vmem:[%s0 + $0x18] sm:$0xff]
        %721 = vst [vmem:[#allocation2] sm:$0xff] %v717
        %vm722 = vcmask 523264
        %723 = vst.msk [vmem:[#allocation2 + $0x8] sm:$0xff] %vm722, %v718
        %724 = vst [vmem:[#allocation2 + $0x10] sm:$0xff] %v719
        %725 = vst.msk [vmem:[#allocation2 + $0x18] sm:$0xff] %vm722, %v720
      $region92: #{_lambda_.1} parent=87 // pred_fallthru
        _
      %v726 = vld [vmem:[#allocation2] sm:$0xff]
      %v727 = vld [vmem:[#allocation2 + $0x8] sm:$0xff]
      %v728 = vld [vmem:[#allocation2 + $0x10] sm:$0xff]
      %v729 = vld [vmem:[#allocation2 + $0x18] sm:$0xff]
      %v730 = vld [vmem:[%s668] sm:$0x3]
      %v731 = vld [vmem:[%s672] sm:$0x3]
      %vm732 = vcmask 523264
      %v733 = vsel %vm732, %v727, 0.0
      %v734 = vadd.f32 %v726, %v733
      %735 = vadd.xlane.f32.xlu0 %v734
      %v736 = vpop.xlane.xlu0 %735
      %v737 = vsel %vm732, %v729, 0.0
      %v738 = vadd.f32 %v728, %v737
      %739 = vadd.xlane.f32.xlu0 %v738
      %v740 = vpop.xlane.xlu0 %739
      %v741 = vrcp.pop 192.0
      %v742 = vmul.f32 %v736, %v741
      %v743 = vmul.f32 %v740, %v741
      %v744 = vsub.f32 %v726, %v742
      %v745 = vsub.f32 %v727, %v742
      %v746 = vsub.f32 %v728, %v743
      %v747 = vsub.f32 %v729, %v743
      %v748 = vmul.f32 %v744, %v744
      %v749 = vmul.f32 %v745, %v745
      %v750 = vmul.f32 %v746, %v746
      %v751 = vmul.f32 %v747, %v747
      %v752 = vsel %vm732, %v749, 0.0
      %v753 = vadd.f32 %v748, %v752
      %754 = vadd.xlane.f32.xlu0 %v753
      %v755 = vpop.xlane.xlu0 %754
      %v756 = vsel %vm732, %v751, 0.0
      %v757 = vadd.f32 %v750, %v756
      %758 = vadd.xlane.f32.xlu0 %v757
      %v759 = vpop.xlane.xlu0 %758
      %v760 = vmul.f32 %v755, %v741
      %v761 = vmul.f32 %v759, %v741
      %v762 = vadd.f32 %v760, 1e-05
      %v763 = vadd.f32 %v761, 1e-05
      %v764 = vrsqrt.pop %v762
      %v765 = vrsqrt.pop %v763
      %v766 = vmul.f32 %v744, %v764
      %v767 = vmul.f32 %v745, %v764
      %v768 = vmul.f32 %v746, %v765
      %v769 = vmul.f32 %v747, %v765
      %v771 = vlaneseq
      %v772 = vshrl.u32 %v771, 7
      %v773 = vsub.s32 0, %v772
      %v774 = vrot.slane %v730, %v773
      %v775 = vlaneseq
      %v776 = vshrl.u32 %v775, 7
      %v777 = vsub.s32 1, %v776
      %v778 = vrot.slane %v730, %v777
      %v781 = vmul.f32 %v766, %v774
      %v782 = vmul.f32 %v767, %v778
      %v783 = vmul.f32 %v768, %v774
      %v784 = vmul.f32 %v769, %v778
      %v786 = vlaneseq
      %v787 = vshrl.u32 %v786, 7
      %v788 = vsub.s32 0, %v787
      %v789 = vrot.slane %v731, %v788
      %v790 = vlaneseq
      %v791 = vshrl.u32 %v790, 7
      %v792 = vsub.s32 1, %v791
      %v793 = vrot.slane %v731, %v792
      %v796 = vadd.f32 %v781, %v789
      %v797 = vadd.f32 %v782, %v793
      %v798 = vadd.f32 %v783, %v789
      %v799 = vadd.f32 %v784, %v793
      %v800 = vld [vmem:[%s677] sm:$0xff]
      %v801 = vld [vmem:[%s677 + $0x8] sm:$0xff]
      %v802 = vld [vmem:[%s677 + $0x10] sm:$0xff]
      %v803 = vld [vmem:[%s677 + $0x18] sm:$0xff]
      %v804 = vld [vmem:[%s677 + $0x20] sm:$0xff]
      %v805 = vld [vmem:[%s677 + $0x28] sm:$0xff]
      %v806 = vld [vmem:[%s677 + $0x30] sm:$0xff]
      %v807 = vld [vmem:[%s677 + $0x38] sm:$0xff]
      %v808 = vld [vmem:[%s677 + $0x40] sm:$0xff]
      %v809 = vld [vmem:[%s677 + $0x48] sm:$0xff]
      %v810 = vld [vmem:[%s677 + $0x50] sm:$0xff]
      %v811 = vld [vmem:[%s677 + $0x58] sm:$0xff]
      %v812 = vld [vmem:[%s677 + $0x60] sm:$0xff]
      %v813 = vld [vmem:[%s677 + $0x68] sm:$0xff]
      %v814 = vld [vmem:[%s677 + $0x70] sm:$0xff]
      %v815 = vld [vmem:[%s677 + $0x78] sm:$0xff]
      %v816 = vld [vmem:[%s677 + $0x80] sm:$0xff]
      %v817 = vld [vmem:[%s677 + $0x88] sm:$0xff]
      %v818 = vld [vmem:[%s677 + $0x90] sm:$0xff]
      %v819 = vld [vmem:[%s677 + $0x98] sm:$0xff]
      %v820 = vld [vmem:[%s677 + $0xa0] sm:$0xff]
      %v821 = vld [vmem:[%s677 + $0xa8] sm:$0xff]
      %v822 = vld [vmem:[%s677 + $0xb0] sm:$0xff]
      %v823 = vld [vmem:[%s677 + $0xb8] sm:$0xff]
      %v824 = vld [vmem:[%s677 + $0xc0] sm:$0xff]
      %v825 = vld [vmem:[%s677 + $0xc8] sm:$0xff]
      %v826 = vld [vmem:[%s677 + $0xd0] sm:$0xff]
      %v827 = vld [vmem:[%s677 + $0xd8] sm:$0xff]
      %v828 = vld [vmem:[%s677 + $0xe0] sm:$0xff]
      %v829 = vld [vmem:[%s677 + $0xe8] sm:$0xff]
      %v830 = vld [vmem:[%s677 + $0xf0] sm:$0xff]
      %v831 = vld [vmem:[%s677 + $0xf8] sm:$0xff]
      %v832 = vld [vmem:[%s677 + $0x100] sm:$0xff]
      %v833 = vld [vmem:[%s677 + $0x108] sm:$0xff]
      %v834 = vld [vmem:[%s677 + $0x110] sm:$0xff]
      %v835 = vld [vmem:[%s677 + $0x118] sm:$0xff]
      %v836 = vld [vmem:[%s677 + $0x120] sm:$0xff]
      %v837 = vld [vmem:[%s677 + $0x128] sm:$0xff]
      %v838 = vld [vmem:[%s677 + $0x130] sm:$0xff]
      %v839 = vld [vmem:[%s677 + $0x138] sm:$0xff]
      %v840 = vld [vmem:[%s677 + $0x140] sm:$0xff]
      %v841 = vld [vmem:[%s677 + $0x148] sm:$0xff]
      %v842 = vld [vmem:[%s677 + $0x150] sm:$0xff]
      %v843 = vld [vmem:[%s677 + $0x158] sm:$0xff]
      %v844 = vld [vmem:[%s677 + $0x160] sm:$0xff]
      %v845 = vld [vmem:[%s677 + $0x168] sm:$0xff]
      %v846 = vld [vmem:[%s677 + $0x170] sm:$0xff]
      %v847 = vld [vmem:[%s677 + $0x178] sm:$0xff]
      %v848 = vld [vmem:[%s677 + $0x180] sm:$0xff]
      %v849 = vld [vmem:[%s677 + $0x188] sm:$0xff]
      %v850 = vld [vmem:[%s677 + $0x190] sm:$0xff]
      %v851 = vld [vmem:[%s677 + $0x198] sm:$0xff]
      %v852 = vld [vmem:[%s677 + $0x1a0] sm:$0xff]
      %v853 = vld [vmem:[%s677 + $0x1a8] sm:$0xff]
      %v854 = vld [vmem:[%s677 + $0x1b0] sm:$0xff]
      %v855 = vld [vmem:[%s677 + $0x1b8] sm:$0xff]
      %v856 = vld [vmem:[%s677 + $0x1c0] sm:$0xff]
      %v857 = vld [vmem:[%s677 + $0x1c8] sm:$0xff]
      %v858 = vld [vmem:[%s677 + $0x1d0] sm:$0xff]
      %v859 = vld [vmem:[%s677 + $0x1d8] sm:$0xff]
      %v860 = vld [vmem:[%s677 + $0x1e0] sm:$0xff]
      %v861 = vld [vmem:[%s677 + $0x1e8] sm:$0xff]
      %v862 = vld [vmem:[%s677 + $0x1f0] sm:$0xff]
      %v863 = vld [vmem:[%s677 + $0x1f8] sm:$0xff]
      %v864 = vld [vmem:[%s677 + $0x200] sm:$0xff]
      %v865 = vld [vmem:[%s677 + $0x208] sm:$0xff]
      %v866 = vld [vmem:[%s677 + $0x210] sm:$0xff]
      %v867 = vld [vmem:[%s677 + $0x218] sm:$0xff]
      %v868 = vld [vmem:[%s677 + $0x220] sm:$0xff]
      %v869 = vld [vmem:[%s677 + $0x228] sm:$0xff]
      %v870 = vld [vmem:[%s677 + $0x230] sm:$0xff]
      %v871 = vld [vmem:[%s677 + $0x238] sm:$0xff]
      %v872 = vld [vmem:[%s677 + $0x240] sm:$0xff]
      %v873 = vld [vmem:[%s677 + $0x248] sm:$0xff]
      %v874 = vld [vmem:[%s677 + $0x250] sm:$0xff]
      %v875 = vld [vmem:[%s677 + $0x258] sm:$0xff]
      %v876 = vld [vmem:[%s677 + $0x260] sm:$0xff]
      %v877 = vld [vmem:[%s677 + $0x268] sm:$0xff]
      %v878 = vld [vmem:[%s677 + $0x270] sm:$0xff]
      %v879 = vld [vmem:[%s677 + $0x278] sm:$0xff]
      %v880 = vld [vmem:[%s677 + $0x280] sm:$0xff]
      %v881 = vld [vmem:[%s677 + $0x288] sm:$0xff]
      %v882 = vld [vmem:[%s677 + $0x290] sm:$0xff]
      %v883 = vld [vmem:[%s677 + $0x298] sm:$0xff]
      %v884 = vld [vmem:[%s677 + $0x2a0] sm:$0xff]
      %v885 = vld [vmem:[%s677 + $0x2a8] sm:$0xff]
      %v886 = vld [vmem:[%s677 + $0x2b0] sm:$0xff]
      %v887 = vld [vmem:[%s677 + $0x2b8] sm:$0xff]
      %v888 = vld [vmem:[%s677 + $0x2c0] sm:$0xff]
      %v889 = vld [vmem:[%s677 + $0x2c8] sm:$0xff]
      %v890 = vld [vmem:[%s677 + $0x2d0] sm:$0xff]
      %v891 = vld [vmem:[%s677 + $0x2d8] sm:$0xff]
      %v892 = vld [vmem:[%s677 + $0x2e0] sm:$0xff]
      %v893 = vld [vmem:[%s677 + $0x2e8] sm:$0xff]
      %v894 = vld [vmem:[%s677 + $0x2f0] sm:$0xff]
      %v895 = vld [vmem:[%s677 + $0x2f8] sm:$0xff]
      %v896 = vld [vmem:[%s677 + $0x300] sm:$0xff]
      %v897 = vld [vmem:[%s677 + $0x308] sm:$0xff]
      %v898 = vld [vmem:[%s677 + $0x310] sm:$0xff]
      %v899 = vld [vmem:[%s677 + $0x318] sm:$0xff]
      %v900 = vld [vmem:[%s677 + $0x320] sm:$0xff]
      %v901 = vld [vmem:[%s677 + $0x328] sm:$0xff]
      %v902 = vld [vmem:[%s677 + $0x330] sm:$0xff]
      %v903 = vld [vmem:[%s677 + $0x338] sm:$0xff]
      %v904 = vld [vmem:[%s677 + $0x340] sm:$0xff]
      %v905 = vld [vmem:[%s677 + $0x348] sm:$0xff]
      %v906 = vld [vmem:[%s677 + $0x350] sm:$0xff]
      %v907 = vld [vmem:[%s677 + $0x358] sm:$0xff]
      %v908 = vld [vmem:[%s677 + $0x360] sm:$0xff]
      %v909 = vld [vmem:[%s677 + $0x368] sm:$0xff]
      %v910 = vld [vmem:[%s677 + $0x370] sm:$0xff]
      %v911 = vld [vmem:[%s677 + $0x378] sm:$0xff]
      %v912 = vld [vmem:[%s677 + $0x380] sm:$0xff]
      %v913 = vld [vmem:[%s677 + $0x388] sm:$0xff]
      %v914 = vld [vmem:[%s677 + $0x390] sm:$0xff]
      %v915 = vld [vmem:[%s677 + $0x398] sm:$0xff]
      %v916 = vld [vmem:[%s677 + $0x3a0] sm:$0xff]
      %v917 = vld [vmem:[%s677 + $0x3a8] sm:$0xff]
      %v918 = vld [vmem:[%s677 + $0x3b0] sm:$0xff]
      %v919 = vld [vmem:[%s677 + $0x3b8] sm:$0xff]
      %v921 = vsel %vm732, %v797, 0
      %v924 = vsel %vm732, %v799, 0
      %926 = vmatprep.subr.mxu0 %v876
      %927 = vmatpush1.msra.mxu0 %v875
      %928 = vmatprep.subr.mxu0 %v871
      %929 = vmatpush1.msra.mxu0 %v870
      %930 = vmatprep.subr.mxu0 %v866
      %931 = vmatpush1.msra.mxu0 %v865
      %932 = vmatprep.subr.mxu0 %v861
      %933 = vmatpush1.msra.mxu0 %v860
      %934 = vmatprep.subr.mxu0 %v856
      %935 = vmatpush1.msra.mxu0 %v855
      %936 = vmatprep.subr.mxu0 %v851
      %937 = vmatpush1.msra.mxu0 %v850
      %938 = vmatprep.subr.mxu0 %v846
      %939 = vmatpush1.msra.mxu0 %v845
      %940 = vmatprep.subr.mxu0 %v841
      %941 = vmatpush1.msra.mxu0 %v840
      %942 = vmatprep.subr.mxu0 %v836
      %943 = vmatpush1.msra.mxu0 %v835
      %944 = vmatprep.subr.mxu0 %v831
      %945 = vmatpush1.msra.mxu0 %v830
      %946 = vmatprep.subr.mxu0 %v826
      %947 = vmatpush1.msra.mxu0 %v825
      %948 = vmatprep.subr.mxu0 %v821
      %949 = vmatpush1.msra.mxu0 %v820
      %950 = vmatprep.subr.mxu0 %v816
      %951 = vmatpush1.msra.mxu0 %v815
      %952 = vmatprep.subr.mxu0 %v811
      %953 = vmatpush1.msra.mxu0 %v810
      %954 = vmatprep.subr.mxu0 %v806
      %955 = vmatpush1.msra.mxu0 %v805
      %956 = vmatprep.subr.mxu0 %v801
      %957 = vmatpush1.msra.mxu0 %v800
      %958 = vmatprep.subr.mxu0 0.0
      %959 = vmatpush2.msra.mxu0 0.0
      %960 = vmatprep.subr.mxu0 0.0
      %961 = vmatpush2.msra.mxu0 0.0
      %962 = vmatprep.subr.mxu0 0.0
      %963 = vmatpush2.msra.mxu0 0.0
      %964 = vmatprep.subr.mxu0 0.0
      %965 = vmatpush2.msra.mxu0 0.0
      %966 = vmatprep.subr.mxu0 0.0
      %967 = vmatpush2.msra.mxu0 0.0
      %968 = vmatprep.subr.mxu0 0.0
      %969 = vmatpush2.msra.mxu0 0.0
      %970 = vmatprep.subr.mxu0 0.0
      %971 = vmatpush2.msra.mxu0 0.0
      %972 = vmatprep.subr.mxu0 0.0
      %973 = vmatpush2.msra.mxu0 0.0
      %974 = vmatprep.subr.mxu0 %v916
      %975 = vmatpush2.msra.mxu0 %v915
      %976 = vmatprep.subr.mxu0 %v911
      %977 = vmatpush2.msra.mxu0 %v910
      %978 = vmatprep.subr.mxu0 %v906
      %979 = vmatpush2.msra.mxu0 %v905
      %980 = vmatprep.subr.mxu0 %v901
      %981 = vmatpush2.msra.mxu0 %v900
      %982 = vmatprep.subr.mxu0 %v896
      %983 = vmatpush2.msra.mxu0 %v895
      %984 = vmatprep.subr.mxu0 %v891
      %985 = vmatpush2.msra.mxu0 %v890
      %986 = vmatprep.subr.mxu0 %v886
      %987 = vmatpush2.msra.mxu0 %v885
      %988 = vmatprep.subr.mxu0 %v881
      %989 = vmatpush2.msra.mxu0 %v880
      %990 = vmatprep.mubr.f32.mxu0 %v921
      %991 = vmatmul.mubr.f32.gmra.mxu0 %v796
      %v992 = vpop.f32.mrf.mxu0
      %v993 = vadd.f32 0.0, %v992
      %v994 = vpop.f32.mrf.mxu0
      %v995 = vadd.f32 0.0, %v994
      %996 = vmatprep.mubr.f32.mxu0 %v924
      %997 = vmatmul.mubr.f32.gmra.mxu0 %v798
      %v998 = vpop.f32.mrf.mxu0
      %v999 = vadd.f32 0.0, %v998
      %v1000 = vpop.f32.mrf.mxu0
      %v1001 = vadd.f32 0.0, %v1000
      %1002 = vdwg.mxu0
      %1003 = vmatprep.subr.mxu0 %v878
      %1004 = vmatpush1.msra.mxu0 %v877
      %1005 = vmatprep.subr.mxu0 %v873
      %1006 = vmatpush1.msra.mxu0 %v872
      %1007 = vmatprep.subr.mxu0 %v868
      %1008 = vmatpush1.msra.mxu0 %v867
      %1009 = vmatprep.subr.mxu0 %v863
      %1010 = vmatpush1.msra.mxu0 %v862
      %1011 = vmatprep.subr.mxu0 %v858
      %1012 = vmatpush1.msra.mxu0 %v857
      %1013 = vmatprep.subr.mxu0 %v853
      %1014 = vmatpush1.msra.mxu0 %v852
      %1015 = vmatprep.subr.mxu0 %v848
      %1016 = vmatpush1.msra.mxu0 %v847
      %1017 = vmatprep.subr.mxu0 %v843
      %1018 = vmatpush1.msra.mxu0 %v842
      %1019 = vmatprep.subr.mxu0 %v838
      %1020 = vmatpush1.msra.mxu0 %v837
      %1021 = vmatprep.subr.mxu0 %v833
      %1022 = vmatpush1.msra.mxu0 %v832
      %1023 = vmatprep.subr.mxu0 %v828
      %1024 = vmatpush1.msra.mxu0 %v827
      %1025 = vmatprep.subr.mxu0 %v823
      %1026 = vmatpush1.msra.mxu0 %v822
      %1027 = vmatprep.subr.mxu0 %v818
      %1028 = vmatpush1.msra.mxu0 %v817
      %1029 = vmatprep.subr.mxu0 %v813
      %1030 = vmatpush1.msra.mxu0 %v812
      %1031 = vmatprep.subr.mxu0 %v808
      %1032 = vmatpush1.msra.mxu0 %v807
      %1033 = vmatprep.subr.mxu0 %v803
      %1034 = vmatpush1.msra.mxu0 %v802
      %1035 = vmatprep.subr.mxu0 0.0
      %1036 = vmatpush2.msra.mxu0 0.0
      %1037 = vmatprep.subr.mxu0 0.0
      %1038 = vmatpush2.msra.mxu0 0.0
      %1039 = vmatprep.subr.mxu0 0.0
      %1040 = vmatpush2.msra.mxu0 0.0
      %1041 = vmatprep.subr.mxu0 0.0
      %1042 = vmatpush2.msra.mxu0 0.0
      %1043 = vmatprep.subr.mxu0 0.0
      %1044 = vmatpush2.msra.mxu0 0.0
      %1045 = vmatprep.subr.mxu0 0.0
      %1046 = vmatpush2.msra.mxu0 0.0
      %1047 = vmatprep.subr.mxu0 0.0
      %1048 = vmatpush2.msra.mxu0 0.0
      %1049 = vmatprep.subr.mxu0 0.0
      %1050 = vmatpush2.msra.mxu0 0.0
      %1051 = vmatprep.subr.mxu0 %v918
      %1052 = vmatpush2.msra.mxu0 %v917
      %1053 = vmatprep.subr.mxu0 %v913
      %1054 = vmatpush2.msra.mxu0 %v912
      %1055 = vmatprep.subr.mxu0 %v908
      %1056 = vmatpush2.msra.mxu0 %v907
      %1057 = vmatprep.subr.mxu0 %v903
      %1058 = vmatpush2.msra.mxu0 %v902
      %1059 = vmatprep.subr.mxu0 %v898
      %1060 = vmatpush2.msra.mxu0 %v897
      %1061 = vmatprep.subr.mxu0 %v893
      %1062 = vmatpush2.msra.mxu0 %v892
      %1063 = vmatprep.subr.mxu0 %v888
      %1064 = vmatpush2.msra.mxu0 %v887
      %1065 = vmatprep.subr.mxu0 %v883
      %1066 = vmatpush2.msra.mxu0 %v882
      %1067 = vmatprep.mubr.f32.mxu0 %v921
      %1068 = vmatmul.mubr.f32.gmra.mxu0 %v796
      %v1069 = vpop.f32.mrf.mxu0
      %v1070 = vadd.f32 0.0, %v1069
      %v1071 = vpop.f32.mrf.mxu0
      %v1072 = vadd.f32 0.0, %v1071
      %1073 = vmatprep.mubr.f32.mxu0 %v924
      %1074 = vmatmul.mubr.f32.gmra.mxu0 %v798
      %v1075 = vpop.f32.mrf.mxu0
      %v1076 = vadd.f32 0.0, %v1075
      %v1077 = vpop.f32.mrf.mxu0
      %v1078 = vadd.f32 0.0, %v1077
      %1079 = vdwg.mxu0
      %1080 = vmatprep.subr.mxu0 0.0
      %1081 = vmatpush1.msra.mxu0 %v879
      %1082 = vmatprep.subr.mxu0 0.0
      %1083 = vmatpush1.msra.mxu0 %v874
      %1084 = vmatprep.subr.mxu0 0.0
      %1085 = vmatpush1.msra.mxu0 %v869
      %1086 = vmatprep.subr.mxu0 0.0
      %1087 = vmatpush1.msra.mxu0 %v864
      %1088 = vmatprep.subr.mxu0 0.0
      %1089 = vmatpush1.msra.mxu0 %v859
      %1090 = vmatprep.subr.mxu0 0.0
      %1091 = vmatpush1.msra.mxu0 %v854
      %1092 = vmatprep.subr.mxu0 0.0
      %1093 = vmatpush1.msra.mxu0 %v849
      %1094 = vmatprep.subr.mxu0 0.0
      %1095 = vmatpush1.msra.mxu0 %v844
      %1096 = vmatprep.subr.mxu0 0.0
      %1097 = vmatpush1.msra.mxu0 %v839
      %1098 = vmatprep.subr.mxu0 0.0
      %1099 = vmatpush1.msra.mxu0 %v834
      %1100 = vmatprep.subr.mxu0 0.0
      %1101 = vmatpush1.msra.mxu0 %v829
      %1102 = vmatprep.subr.mxu0 0.0
      %1103 = vmatpush1.msra.mxu0 %v824
      %1104 = vmatprep.subr.mxu0 0.0
      %1105 = vmatpush1.msra.mxu0 %v819
      %1106 = vmatprep.subr.mxu0 0.0
      %1107 = vmatpush1.msra.mxu0 %v814
      %1108 = vmatprep.subr.mxu0 0.0
      %1109 = vmatpush1.msra.mxu0 %v809
      %1110 = vmatprep.subr.mxu0 0.0
      %1111 = vmatpush1.msra.mxu0 %v804
      %1112 = vmatprep.subr.mxu0 0.0
      %1113 = vmatpush2.msra.mxu0 0.0
      %1114 = vmatprep.subr.mxu0 0.0
      %1115 = vmatpush2.msra.mxu0 0.0
      %1116 = vmatprep.subr.mxu0 0.0
      %1117 = vmatpush2.msra.mxu0 0.0
      %1118 = vmatprep.subr.mxu0 0.0
      %1119 = vmatpush2.msra.mxu0 0.0
      %1120 = vmatprep.subr.mxu0 0.0
      %1121 = vmatpush2.msra.mxu0 0.0
      %1122 = vmatprep.subr.mxu0 0.0
      %1123 = vmatpush2.msra.mxu0 0.0
      %1124 = vmatprep.subr.mxu0 0.0
      %1125 = vmatpush2.msra.mxu0 0.0
      %1126 = vmatprep.subr.mxu0 0.0
      %1127 = vmatpush2.msra.mxu0 0.0
      %1128 = vmatprep.subr.mxu0 0.0
      %1129 = vmatpush2.msra.mxu0 %v919
      %1130 = vmatprep.subr.mxu0 0.0
      %1131 = vmatpush2.msra.mxu0 %v914
      %1132 = vmatprep.subr.mxu0 0.0
      %1133 = vmatpush2.msra.mxu0 %v909
      %1134 = vmatprep.subr.mxu0 0.0
      %1135 = vmatpush2.msra.mxu0 %v904
      %1136 = vmatprep.subr.mxu0 0.0
      %1137 = vmatpush2.msra.mxu0 %v899
      %1138 = vmatprep.subr.mxu0 0.0
      %1139 = vmatpush2.msra.mxu0 %v894
      %1140 = vmatprep.subr.mxu0 0.0
      %1141 = vmatpush2.msra.mxu0 %v889
      %1142 = vmatprep.subr.mxu0 0.0
      %1143 = vmatpush2.msra.mxu0 %v884
      %1144 = vmatprep.mubr.f32.mxu0 %v921
      %1145 = vmatmul.mubr.f32.gmra.mxu0 %v796
      %v1146 = vpop.f32.mrf.mxu0
      %v1147 = vadd.f32 0.0, %v1146
      %v1148 = vpop.f32.mrf.mxu0
      %1149 = vmatprep.mubr.f32.mxu0 %v924
      %1150 = vmatmul.mubr.f32.gmra.mxu0 %v798
      %v1151 = vpop.f32.mrf.mxu0
      %v1152 = vadd.f32 0.0, %v1151
      %v1153 = vpop.f32.mrf.mxu0
      %1154 = vdwg.mxu0
      %1155 = vst [vmem:[#allocation3] sm:$0xff] %v993
      %1156 = vst [vmem:[#allocation3 + $0x8] sm:$0xff] %v995
      %1157 = vst [vmem:[#allocation3 + $0x10] sm:$0xff] %v1070
      %1158 = vst [vmem:[#allocation3 + $0x18] sm:$0xff] %v1072
      %1159 = vst.msk [vmem:[#allocation3 + $0x20] sm:$0xff] %vm732, %v1147
      %1160 = vst [vmem:[#allocation3 + $0x28] sm:$0xff] %v999
      %1161 = vst [vmem:[#allocation3 + $0x30] sm:$0xff] %v1001
      %1162 = vst [vmem:[#allocation3 + $0x38] sm:$0xff] %v1076
      %1163 = vst [vmem:[#allocation3 + $0x40] sm:$0xff] %v1078
      %1164 = vst.msk [vmem:[#allocation3 + $0x48] sm:$0xff] %vm732, %v1152
      %v1165 = vld [vmem:[%s1] sm:$0xff]
      %v1166 = vld [vmem:[%s682] sm:$0xff]
      %v1167 = vld [vmem:[%s682 + $0x8] sm:$0xff]
      %v1168 = vld [vmem:[%s682 + $0x10] sm:$0xff]
      %v1169 = vld [vmem:[%s682 + $0x18] sm:$0xff]
      %v1170 = vld [vmem:[%s682 + $0x20] sm:$0xff]
      %v1171 = vld [vmem:[%s682 + $0x28] sm:$0xff]
      %v1172 = vld [vmem:[%s682 + $0x30] sm:$0xff]
      %v1173 = vld [vmem:[%s682 + $0x38] sm:$0xff]
      %v1174 = vld [vmem:[%s682 + $0x40] sm:$0xff]
      %v1175 = vld [vmem:[%s682 + $0x48] sm:$0xff]
      %v1176 = vld [vmem:[%s682 + $0x50] sm:$0xff]
      %v1177 = vld [vmem:[%s682 + $0x58] sm:$0xff]
      %v1178 = vld [vmem:[%s682 + $0x60] sm:$0xff]
      %v1179 = vld [vmem:[%s682 + $0x68] sm:$0xff]
      %v1180 = vld [vmem:[%s682 + $0x70] sm:$0xff]
      %v1181 = vld [vmem:[%s682 + $0x78] sm:$0xff]
      %v1182 = vld [vmem:[%s682 + $0x80] sm:$0xff]
      %v1183 = vld [vmem:[%s682 + $0x88] sm:$0xff]
      %v1184 = vld [vmem:[%s682 + $0x90] sm:$0xff]
      %v1185 = vld [vmem:[%s682 + $0x98] sm:$0xff]
      %v1186 = vld [vmem:[%s682 + $0xa0] sm:$0xff]
      %v1187 = vld [vmem:[%s682 + $0xa8] sm:$0xff]
      %v1188 = vld [vmem:[%s682 + $0xb0] sm:$0xff]
      %v1189 = vld [vmem:[%s682 + $0xb8] sm:$0xff]
      %v1190 = vld [vmem:[%s682 + $0xc0] sm:$0xff]
      %v1191 = vld [vmem:[%s682 + $0xc8] sm:$0xff]
      %v1192 = vld [vmem:[%s682 + $0xd0] sm:$0xff]
      %v1193 = vld [vmem:[%s682 + $0xd8] sm:$0xff]
      %v1194 = vld [vmem:[%s682 + $0xe0] sm:$0xff]
      %v1195 = vld [vmem:[%s682 + $0xe8] sm:$0xff]
      %v1196 = vld [vmem:[%s682 + $0xf0] sm:$0xff]
      %v1197 = vld [vmem:[%s682 + $0xf8] sm:$0xff]
      %v1198 = vld [vmem:[%s682 + $0x100] sm:$0xff]
      %v1199 = vld [vmem:[%s682 + $0x108] sm:$0xff]
      %v1200 = vld [vmem:[%s682 + $0x110] sm:$0xff]
      %v1201 = vld [vmem:[%s682 + $0x118] sm:$0xff]
      %v1202 = vld [vmem:[%s682 + $0x120] sm:$0xff]
      %v1203 = vld [vmem:[%s682 + $0x128] sm:$0xff]
      %v1204 = vld [vmem:[%s682 + $0x130] sm:$0xff]
      %v1205 = vld [vmem:[%s682 + $0x138] sm:$0xff]
      %v1206 = vld [vmem:[%s682 + $0x140] sm:$0xff]
      %v1207 = vld [vmem:[%s682 + $0x148] sm:$0xff]
      %v1208 = vld [vmem:[%s682 + $0x150] sm:$0xff]
      %v1209 = vld [vmem:[%s682 + $0x158] sm:$0xff]
      %v1210 = vld [vmem:[%s682 + $0x160] sm:$0xff]
      %v1211 = vld [vmem:[%s682 + $0x168] sm:$0xff]
      %v1212 = vld [vmem:[%s682 + $0x170] sm:$0xff]
      %v1213 = vld [vmem:[%s682 + $0x178] sm:$0xff]
      %v1214 = vld [vmem:[%s686] sm:$0x3]
      %v1215 = vld [vmem:[#allocation3] sm:$0xff]
      %v1216 = vld [vmem:[#allocation3 + $0x8] sm:$0xff]
      %v1217 = vld [vmem:[#allocation3 + $0x18] sm:$0xff]
      %1219 = vrot.lane.b32.xlu0 %v1216, 64
      %v1220 = vpop.permute.xlu0 %1219
      %vm1221 = vcmask 261120
      %v1223 = vsel %vm1221, %v1215, 0
      %v1225 = vsel %vm1221, %v1220, 0
      %1227 = vmatprep.subr.mxu0 0.0
      %1228 = vmatpush1.xpose.msra.mxu0 0.0
      %1229 = vmatprep.subr.mxu0 0.0
      %1230 = vmatpush1.xpose.msra.mxu0 0.0
      %1231 = vmatprep.subr.mxu0 0.0
      %1232 = vmatpush1.xpose.msra.mxu0 0.0
      %1233 = vmatprep.subr.mxu0 0.0
      %1234 = vmatpush1.xpose.msra.mxu0 0.0
      %1235 = vmatprep.subr.mxu0 0.0
      %1236 = vmatpush1.xpose.msra.mxu0 0.0
      %1237 = vmatprep.subr.mxu0 0.0
      %1238 = vmatpush1.xpose.msra.mxu0 0.0
      %1239 = vmatprep.subr.mxu0 0.0
      %1240 = vmatpush1.xpose.msra.mxu0 0.0
      %1241 = vmatprep.subr.mxu0 0.0
      %1242 = vmatpush1.xpose.msra.mxu0 0.0
      %1243 = vmatprep.subr.mxu0 0.0
      %1244 = vmatpush1.xpose.msra.mxu0 0.0
      %1245 = vmatprep.subr.mxu0 0.0
      %1246 = vmatpush1.xpose.msra.mxu0 0.0
      %1247 = vmatprep.subr.mxu0 0.0
      %1248 = vmatpush1.xpose.msra.mxu0 0.0
      %1249 = vmatprep.subr.mxu0 0.0
      %1250 = vmatpush1.xpose.msra.mxu0 0.0
      %1251 = vmatprep.subr.mxu0 0.0
      %1252 = vmatpush1.xpose.msra.mxu0 0.0
      %1253 = vmatprep.subr.mxu0 0.0
      %1254 = vmatpush1.xpose.msra.mxu0 0.0
      %1255 = vmatprep.subr.mxu0 0.0
      %1256 = vmatpush1.xpose.msra.mxu0 0.0
      %1257 = vmatprep.subr.mxu0 0.0
      %1258 = vmatpush1.xpose.msra.mxu0 %v1225
      %1259 = vmatprep.subr.mxu0 0.0
      %1260 = vmatpush2.xpose.msra.mxu0 0.0
      %1261 = vmatprep.subr.mxu0 0.0
      %1262 = vmatpush2.xpose.msra.mxu0 0.0
      %1263 = vmatprep.subr.mxu0 0.0
      %1264 = vmatpush2.xpose.msra.mxu0 0.0
      %1265 = vmatprep.subr.mxu0 0.0
      %1266 = vmatpush2.xpose.msra.mxu0 0.0
      %1267 = vmatprep.subr.mxu0 0.0
      %1268 = vmatpush2.xpose.msra.mxu0 0.0
      %1269 = vmatprep.subr.mxu0 0.0
      %1270 = vmatpush2.xpose.msra.mxu0 0.0
      %1271 = vmatprep.subr.mxu0 0.0
      %1272 = vmatpush2.xpose.msra.mxu0 0.0
      %1273 = vmatprep.subr.mxu0 0.0
      %1274 = vmatpush2.xpose.msra.mxu0 0.0
      %1275 = vmatprep.subr.mxu0 0.0
      %1276 = vmatpush2.xpose.msra.mxu0 0.0
      %1277 = vmatprep.subr.mxu0 0.0
      %1278 = vmatpush2.xpose.msra.mxu0 0.0
      %1279 = vmatprep.subr.mxu0 0.0
      %1280 = vmatpush2.xpose.msra.mxu0 0.0
      %1281 = vmatprep.subr.mxu0 0.0
      %1282 = vmatpush2.xpose.msra.mxu0 0.0
      %1283 = vmatprep.subr.mxu0 0.0
      %1284 = vmatpush2.xpose.msra.mxu0 0.0
      %1285 = vmatprep.subr.mxu0 0.0
      %1286 = vmatpush2.xpose.msra.mxu0 0.0
      %1287 = vmatprep.subr.mxu0 0.0
      %1288 = vmatpush2.xpose.msra.mxu0 0.0
      %1289 = vmatprep.subr.mxu0 0.0
      %1290 = vmatpush2.xpose.msra.mxu0 0.0
      %1291 = vmatprep.mubr.f32.mxu0 0.0
      %1292 = vmatmul.mubr.f32.gmra.mxu0 %v1223
      %v1293 = vpop.f32.mrf.mxu0
      %v1294 = vadd.f32 %v1165, %v1293
      %v1295 = vpop.f32.mrf.mxu0
      %1296 = vdwg.mxu0
      %vm1297 = vcmask 64512
      %v1298 = vsel %vm1297, %v1294, -inf
      %1299 = vmax.xlane.f32.xlu0 %v1298
      %v1300 = vpop.xlane.xlu0 %1299
      %v1301 = vsub.f32 %v1294, %v1300
      %v1302 = vmul.f32 %v1301, 1.442695
      %v1303 = vpow.pop %v1302
      %v1304 = vsel %vm1297, %v1303, 0.0
      %1305 = vadd.xlane.f32.xlu0 %v1304
      %v1306 = vpop.xlane.xlu0 %1305
      %v1307 = vrcp.pop %v1306
      %v1308 = vmul.f32 %v1303, %v1307
      %v1310 = vsel %vm1297, %v1308, 0
      %1312 = vmatprep.subr.mxu0 0.0
      %1313 = vmatpush1.msra.mxu0 0.0
      %1314 = vmatprep.subr.mxu0 0.0
      %1315 = vmatpush1.msra.mxu0 0.0
      %1316 = vmatprep.subr.mxu0 0.0
      %1317 = vmatpush1.msra.mxu0 0.0
      %1318 = vmatprep.subr.mxu0 0.0
      %1319 = vmatpush1.msra.mxu0 0.0
      %1320 = vmatprep.subr.mxu0 0.0
      %1321 = vmatpush1.msra.mxu0 0.0
      %1322 = vmatprep.subr.mxu0 0.0
      %1323 = vmatpush1.msra.mxu0 0.0
      %1324 = vmatprep.subr.mxu0 0.0
      %1325 = vmatpush1.msra.mxu0 0.0
      %1326 = vmatprep.subr.mxu0 0.0
      %1327 = vmatpush1.msra.mxu0 0.0
      %1328 = vmatprep.subr.mxu0 0.0
      %1329 = vmatpush1.msra.mxu0 0.0
      %1330 = vmatprep.subr.mxu0 0.0
      %1331 = vmatpush1.msra.mxu0 0.0
      %1332 = vmatprep.subr.mxu0 0.0
      %1333 = vmatpush1.msra.mxu0 0.0
      %1334 = vmatprep.subr.mxu0 0.0
      %1335 = vmatpush1.msra.mxu0 0.0
      %1336 = vmatprep.subr.mxu0 0.0
      %1337 = vmatpush1.msra.mxu0 0.0
      %1338 = vmatprep.subr.mxu0 0.0
      %1339 = vmatpush1.msra.mxu0 0.0
      %1340 = vmatprep.subr.mxu0 0.0
      %1341 = vmatpush1.msra.mxu0 0.0
      %1342 = vmatprep.subr.mxu0 0.0
      %1343 = vmatpush1.msra.mxu0 %v1217
      %1344 = vmatprep.subr.mxu0 0.0
      %1345 = vmatpush2.msra.mxu0 0.0
      %1346 = vmatprep.subr.mxu0 0.0
      %1347 = vmatpush2.msra.mxu0 0.0
      %1348 = vmatprep.subr.mxu0 0.0
      %1349 = vmatpush2.msra.mxu0 0.0
      %1350 = vmatprep.subr.mxu0 0.0
      %1351 = vmatpush2.msra.mxu0 0.0
      %1352 = vmatprep.subr.mxu0 0.0
      %1353 = vmatpush2.msra.mxu0 0.0
      %1354 = vmatprep.subr.mxu0 0.0
      %1355 = vmatpush2.msra.mxu0 0.0
      %1356 = vmatprep.subr.mxu0 0.0
      %1357 = vmatpush2.msra.mxu0 0.0
      %1358 = vmatprep.subr.mxu0 0.0
      %1359 = vmatpush2.msra.mxu0 0.0
      %1360 = vmatprep.subr.mxu0 0.0
      %1361 = vmatpush2.msra.mxu0 0.0
      %1362 = vmatprep.subr.mxu0 0.0
      %1363 = vmatpush2.msra.mxu0 0.0
      %1364 = vmatprep.subr.mxu0 0.0
      %1365 = vmatpush2.msra.mxu0 0.0
      %1366 = vmatprep.subr.mxu0 0.0
      %1367 = vmatpush2.msra.mxu0 0.0
      %1368 = vmatprep.subr.mxu0 0.0
      %1369 = vmatpush2.msra.mxu0 0.0
      %1370 = vmatprep.subr.mxu0 0.0
      %1371 = vmatpush2.msra.mxu0 0.0
      %1372 = vmatprep.subr.mxu0 0.0
      %1373 = vmatpush2.msra.mxu0 0.0
      %1374 = vmatprep.subr.mxu0 0.0
      %1375 = vmatpush2.msra.mxu0 0.0
      %1376 = vmatprep.mubr.f32.mxu0 0.0
      %1377 = vmatmul.mubr.f32.gmra.mxu0 %v1310
      %v1378 = vpop.f32.mrf.mxu0
      %v1379 = vadd.f32 0.0, %v1378
      %v1380 = vpop.f32.mrf.mxu0
      %1381 = vdwg.mxu0
      %1382 = vrot.lane.b32.xlu0 %v1215, 96
      %v1383 = vpop.permute.xlu0 %1382
      %1384 = vrot.lane.b32.xlu0 %v1216, 32
      %v1385 = vpop.permute.xlu0 %1384
      %v1386 = vsel %vm1221, %v1383, 0
      %v1388 = vsel %vm1221, %v1385, 0
      %1390 = vmatprep.subr.mxu0 0.0
      %1391 = vmatpush1.xpose.msra.mxu0 0.0
      %1392 = vmatprep.subr.mxu0 0.0
      %1393 = vmatpush1.xpose.msra.mxu0 0.0
      %1394 = vmatprep.subr.mxu0 0.0
      %1395 = vmatpush1.xpose.msra.mxu0 0.0
      %1396 = vmatprep.subr.mxu0 0.0
      %1397 = vmatpush1.xpose.msra.mxu0 0.0
      %1398 = vmatprep.subr.mxu0 0.0
      %1399 = vmatpush1.xpose.msra.mxu0 0.0
      %1400 = vmatprep.subr.mxu0 0.0
      %1401 = vmatpush1.xpose.msra.mxu0 0.0
      %1402 = vmatprep.subr.mxu0 0.0
      %1403 = vmatpush1.xpose.msra.mxu0 0.0
      %1404 = vmatprep.subr.mxu0 0.0
      %1405 = vmatpush1.xpose.msra.mxu0 0.0
      %1406 = vmatprep.subr.mxu0 0.0
      %1407 = vmatpush1.xpose.msra.mxu0 0.0
      %1408 = vmatprep.subr.mxu0 0.0
      %1409 = vmatpush1.xpose.msra.mxu0 0.0
      %1410 = vmatprep.subr.mxu0 0.0
      %1411 = vmatpush1.xpose.msra.mxu0 0.0
      %1412 = vmatprep.subr.mxu0 0.0
      %1413 = vmatpush1.xpose.msra.mxu0 0.0
      %1414 = vmatprep.subr.mxu0 0.0
      %1415 = vmatpush1.xpose.msra.mxu0 0.0
      %1416 = vmatprep.subr.mxu0 0.0
      %1417 = vmatpush1.xpose.msra.mxu0 0.0
      %1418 = vmatprep.subr.mxu0 0.0
      %1419 = vmatpush1.xpose.msra.mxu0 0.0
      %1420 = vmatprep.subr.mxu0 0.0
      %1421 = vmatpush1.xpose.msra.mxu0 %v1388
      %1422 = vmatprep.subr.mxu0 0.0
      %1423 = vmatpush2.xpose.msra.mxu0 0.0
      %1424 = vmatprep.subr.mxu0 0.0
      %1425 = vmatpush2.xpose.msra.mxu0 0.0
      %1426 = vmatprep.subr.mxu0 0.0
      %1427 = vmatpush2.xpose.msra.mxu0 0.0
      %1428 = vmatprep.subr.mxu0 0.0
      %1429 = vmatpush2.xpose.msra.mxu0 0.0
      %1430 = vmatprep.subr.mxu0 0.0
      %1431 = vmatpush2.xpose.msra.mxu0 0.0
      %1432 = vmatprep.subr.mxu0 0.0
      %1433 = vmatpush2.xpose.msra.mxu0 0.0
      %1434 = vmatprep.subr.mxu0 0.0
      %1435 = vmatpush2.xpose.msra.mxu0 0.0
      %1436 = vmatprep.subr.mxu0 0.0
      %1437 = vmatpush2.xpose.msra.mxu0 0.0
      %1438 = vmatprep.subr.mxu0 0.0
      %1439 = vmatpush2.xpose.msra.mxu0 0.0
      %1440 = vmatprep.subr.mxu0 0.0
      %1441 = vmatpush2.xpose.msra.mxu0 0.0
      %1442 = vmatprep.subr.mxu0 0.0
      %1443 = vmatpush2.xpose.msra.mxu0 0.0
      %1444 = vmatprep.subr.mxu0 0.0
      %1445 = vmatpush2.xpose.msra.mxu0 0.0
      %1446 = vmatprep.subr.mxu0 0.0
      %1447 = vmatpush2.xpose.msra.mxu0 0.0
      %1448 = vmatprep.subr.mxu0 0.0
      %1449 = vmatpush2.xpose.msra.mxu0 0.0
      %1450 = vmatprep.subr.mxu0 0.0
      %1451 = vmatpush2.xpose.msra.mxu0 0.0
      %1452 = vmatprep.subr.mxu0 0.0
      %1453 = vmatpush2.xpose.msra.mxu0 0.0
      %1454 = vmatprep.mubr.f32.mxu0 0.0
      %1455 = vmatmul.mubr.f32.gmra.mxu0 %v1386
      %v1456 = vpop.f32.mrf.mxu0
      %v1457 = vadd.f32 %v1165, %v1456
      %v1458 = vpop.f32.mrf.mxu0
      %1459 = vdwg.mxu0
      %v1460 = vsel %vm1297, %v1457, -inf
      %1461 = vmax.xlane.f32.xlu0 %v1460
      %v1462 = vpop.xlane.xlu0 %1461
      %v1463 = vsub.f32 %v1457, %v1462
      %v1464 = vmul.f32 %v1463, 1.442695
      %v1465 = vpow.pop %v1464
      %v1466 = vsel %vm1297, %v1465, 0.0
      %1467 = vadd.xlane.f32.xlu0 %v1466
      %v1468 = vpop.xlane.xlu0 %1467
      %v1469 = vrcp.pop %v1468
      %v1470 = vmul.f32 %v1465, %v1469
      %1472 = vrot.lane.b32.xlu0 %v1217, 96
      %v1473 = vpop.permute.xlu0 %1472
      %v1476 = vsel %vm1297, %v1470, 0
      %1478 = vmatprep.subr.mxu0 0.0
      %1479 = vmatpush1.msra.mxu0 0.0
      %1480 = vmatprep.subr.mxu0 0.0
      %1481 = vmatpush1.msra.mxu0 0.0
      %1482 = vmatprep.subr.mxu0 0.0
      %1483 = vmatpush1.msra.mxu0 0.0
      %1484 = vmatprep.subr.mxu0 0.0
      %1485 = vmatpush1.msra.mxu0 0.0
      %1486 = vmatprep.subr.mxu0 0.0
      %1487 = vmatpush1.msra.mxu0 0.0
      %1488 = vmatprep.subr.mxu0 0.0
      %1489 = vmatpush1.msra.mxu0 0.0
      %1490 = vmatprep.subr.mxu0 0.0
      %1491 = vmatpush1.msra.mxu0 0.0
      %1492 = vmatprep.subr.mxu0 0.0
      %1493 = vmatpush1.msra.mxu0 0.0
      %1494 = vmatprep.subr.mxu0 0.0
      %1495 = vmatpush1.msra.mxu0 0.0
      %1496 = vmatprep.subr.mxu0 0.0
      %1497 = vmatpush1.msra.mxu0 0.0
      %1498 = vmatprep.subr.mxu0 0.0
      %1499 = vmatpush1.msra.mxu0 0.0
      %1500 = vmatprep.subr.mxu0 0.0
      %1501 = vmatpush1.msra.mxu0 0.0
      %1502 = vmatprep.subr.mxu0 0.0
      %1503 = vmatpush1.msra.mxu0 0.0
      %1504 = vmatprep.subr.mxu0 0.0
      %1505 = vmatpush1.msra.mxu0 0.0
      %1506 = vmatprep.subr.mxu0 0.0
      %1507 = vmatpush1.msra.mxu0 0.0
      %1508 = vmatprep.subr.mxu0 0.0
      %1509 = vmatpush1.msra.mxu0 %v1473
      %1510 = vmatprep.subr.mxu0 0.0
      %1511 = vmatpush2.msra.mxu0 0.0
      %1512 = vmatprep.subr.mxu0 0.0
      %1513 = vmatpush2.msra.mxu0 0.0
      %1514 = vmatprep.subr.mxu0 0.0
      %1515 = vmatpush2.msra.mxu0 0.0
      %1516 = vmatprep.subr.mxu0 0.0
      %1517 = vmatpush2.msra.mxu0 0.0
      %1518 = vmatprep.subr.mxu0 0.0
      %1519 = vmatpush2.msra.mxu0 0.0
      %1520 = vmatprep.subr.mxu0 0.0
      %1521 = vmatpush2.msra.mxu0 0.0
      %1522 = vmatprep.subr.mxu0 0.0
      %1523 = vmatpush2.msra.mxu0 0.0
      %1524 = vmatprep.subr.mxu0 0.0
      %1525 = vmatpush2.msra.mxu0 0.0
      %1526 = vmatprep.subr.mxu0 0.0
      %1527 = vmatpush2.msra.mxu0 0.0
      %1528 = vmatprep.subr.mxu0 0.0
      %1529 = vmatpush2.msra.mxu0 0.0
      %1530 = vmatprep.subr.mxu0 0.0
      %1531 = vmatpush2.msra.mxu0 0.0
      %1532 = vmatprep.subr.mxu0 0.0
      %1533 = vmatpush2.msra.mxu0 0.0
      %1534 = vmatprep.subr.mxu0 0.0
      %1535 = vmatpush2.msra.mxu0 0.0
      %1536 = vmatprep.subr.mxu0 0.0
      %1537 = vmatpush2.msra.mxu0 0.0
      %1538 = vmatprep.subr.mxu0 0.0
      %1539 = vmatpush2.msra.mxu0 0.0
      %1540 = vmatprep.subr.mxu0 0.0
      %1541 = vmatpush2.msra.mxu0 0.0
      %1542 = vmatprep.mubr.f32.mxu0 0.0
      %1543 = vmatmul.mubr.f32.gmra.mxu0 %v1476
      %v1544 = vpop.f32.mrf.mxu0
      %v1545 = vadd.f32 0.0, %v1544
      %v1546 = vpop.f32.mrf.mxu0
      %1547 = vdwg.mxu0
      %v1548 = vld [vmem:[#allocation3 + $0x10] sm:$0xff]
      %1549 = vrot.lane.b32.xlu0 %v1215, 64
      %v1550 = vpop.permute.xlu0 %1549
      %v1551 = vsel %vm1221, %v1550, 0
      %v1554 = vsel %vm1221, %v1548, 0
      %1556 = vmatprep.subr.mxu0 0.0
      %1557 = vmatpush1.xpose.msra.mxu0 0.0
      %1558 = vmatprep.subr.mxu0 0.0
      %1559 = vmatpush1.xpose.msra.mxu0 0.0
      %1560 = vmatprep.subr.mxu0 0.0
      %1561 = vmatpush1.xpose.msra.mxu0 0.0
      %1562 = vmatprep.subr.mxu0 0.0
      %1563 = vmatpush1.xpose.msra.mxu0 0.0
      %1564 = vmatprep.subr.mxu0 0.0
      %1565 = vmatpush1.xpose.msra.mxu0 0.0
      %1566 = vmatprep.subr.mxu0 0.0
      %1567 = vmatpush1.xpose.msra.mxu0 0.0
      %1568 = vmatprep.subr.mxu0 0.0
      %1569 = vmatpush1.xpose.msra.mxu0 0.0
      %1570 = vmatprep.subr.mxu0 0.0
      %1571 = vmatpush1.xpose.msra.mxu0 0.0
      %1572 = vmatprep.subr.mxu0 0.0
      %1573 = vmatpush1.xpose.msra.mxu0 0.0
      %1574 = vmatprep.subr.mxu0 0.0
      %1575 = vmatpush1.xpose.msra.mxu0 0.0
      %1576 = vmatprep.subr.mxu0 0.0
      %1577 = vmatpush1.xpose.msra.mxu0 0.0
      %1578 = vmatprep.subr.mxu0 0.0
      %1579 = vmatpush1.xpose.msra.mxu0 0.0
      %1580 = vmatprep.subr.mxu0 0.0
      %1581 = vmatpush1.xpose.msra.mxu0 0.0
      %1582 = vmatprep.subr.mxu0 0.0
      %1583 = vmatpush1.xpose.msra.mxu0 0.0
      %1584 = vmatprep.subr.mxu0 0.0
      %1585 = vmatpush1.xpose.msra.mxu0 0.0
      %1586 = vmatprep.subr.mxu0 0.0
      %1587 = vmatpush1.xpose.msra.mxu0 %v1554
      %1588 = vmatprep.subr.mxu0 0.0
      %1589 = vmatpush2.xpose.msra.mxu0 0.0
      %1590 = vmatprep.subr.mxu0 0.0
      %1591 = vmatpush2.xpose.msra.mxu0 0.0
      %1592 = vmatprep.subr.mxu0 0.0
      %1593 = vmatpush2.xpose.msra.mxu0 0.0
      %1594 = vmatprep.subr.mxu0 0.0
      %1595 = vmatpush2.xpose.msra.mxu0 0.0
      %1596 = vmatprep.subr.mxu0 0.0
      %1597 = vmatpush2.xpose.msra.mxu0 0.0
      %1598 = vmatprep.subr.mxu0 0.0
      %1599 = vmatpush2.xpose.msra.mxu0 0.0
      %1600 = vmatprep.subr.mxu0 0.0
      %1601 = vmatpush2.xpose.msra.mxu0 0.0
      %1602 = vmatprep.subr.mxu0 0.0
      %1603 = vmatpush2.xpose.msra.mxu0 0.0
      %1604 = vmatprep.subr.mxu0 0.0
      %1605 = vmatpush2.xpose.msra.mxu0 0.0
      %1606 = vmatprep.subr.mxu0 0.0
      %1607 = vmatpush2.xpose.msra.mxu0 0.0
      %1608 = vmatprep.subr.mxu0 0.0
      %1609 = vmatpush2.xpose.msra.mxu0 0.0
      %1610 = vmatprep.subr.mxu0 0.0
      %1611 = vmatpush2.xpose.msra.mxu0 0.0
      %1612 = vmatprep.subr.mxu0 0.0
      %1613 = vmatpush2.xpose.msra.mxu0 0.0
      %1614 = vmatprep.subr.mxu0 0.0
      %1615 = vmatpush2.xpose.msra.mxu0 0.0
      %1616 = vmatprep.subr.mxu0 0.0
      %1617 = vmatpush2.xpose.msra.mxu0 0.0
      %1618 = vmatprep.subr.mxu0 0.0
      %1619 = vmatpush2.xpose.msra.mxu0 0.0
      %1620 = vmatprep.mubr.f32.mxu0 0.0
      %1621 = vmatmul.mubr.f32.gmra.mxu0 %v1551
      %v1622 = vpop.f32.mrf.mxu0
      %v1623 = vadd.f32 %v1165, %v1622
      %v1624 = vpop.f32.mrf.mxu0
      %1625 = vdwg.mxu0
      %v1626 = vsel %vm1297, %v1623, -inf
      %1627 = vmax.xlane.f32.xlu0 %v1626
      %v1628 = vpop.xlane.xlu0 %1627
      %v1629 = vsub.f32 %v1623, %v1628
      %v1630 = vmul.f32 %v1629, 1.442695
      %v1631 = vpow.pop %v1630
      %v1632 = vsel %vm1297, %v1631, 0.0
      %1633 = vadd.xlane.f32.xlu0 %v1632
      %v1634 = vpop.xlane.xlu0 %1633
      %v1635 = vrcp.pop %v1634
      %v1636 = vmul.f32 %v1631, %v1635
      %1637 = vrot.lane.b32.xlu0 %v1217, 64
      %v1638 = vpop.permute.xlu0 %1637
      %v1641 = vsel %vm1297, %v1636, 0
      %1643 = vmatprep.subr.mxu0 0.0
      %1644 = vmatpush1.msra.mxu0 0.0
      %1645 = vmatprep.subr.mxu0 0.0
      %1646 = vmatpush1.msra.mxu0 0.0
      %1647 = vmatprep.subr.mxu0 0.0
      %1648 = vmatpush1.msra.mxu0 0.0
      %1649 = vmatprep.subr.mxu0 0.0
      %1650 = vmatpush1.msra.mxu0 0.0
      %1651 = vmatprep.subr.mxu0 0.0
      %1652 = vmatpush1.msra.mxu0 0.0
      %1653 = vmatprep.subr.mxu0 0.0
      %1654 = vmatpush1.msra.mxu0 0.0
      %1655 = vmatprep.subr.mxu0 0.0
      %1656 = vmatpush1.msra.mxu0 0.0
      %1657 = vmatprep.subr.mxu0 0.0
      %1658 = vmatpush1.msra.mxu0 0.0
      %1659 = vmatprep.subr.mxu0 0.0
      %1660 = vmatpush1.msra.mxu0 0.0
      %1661 = vmatprep.subr.mxu0 0.0
      %1662 = vmatpush1.msra.mxu0 0.0
      %1663 = vmatprep.subr.mxu0 0.0
      %1664 = vmatpush1.msra.mxu0 0.0
      %1665 = vmatprep.subr.mxu0 0.0
      %1666 = vmatpush1.msra.mxu0 0.0
      %1667 = vmatprep.subr.mxu0 0.0
      %1668 = vmatpush1.msra.mxu0 0.0
      %1669 = vmatprep.subr.mxu0 0.0
      %1670 = vmatpush1.msra.mxu0 0.0
      %1671 = vmatprep.subr.mxu0 0.0
      %1672 = vmatpush1.msra.mxu0 0.0
      %1673 = vmatprep.subr.mxu0 0.0
      %1674 = vmatpush1.msra.mxu0 %v1638
      %1675 = vmatprep.subr.mxu0 0.0
      %1676 = vmatpush2.msra.mxu0 0.0
      %1677 = vmatprep.subr.mxu0 0.0
      %1678 = vmatpush2.msra.mxu0 0.0
      %1679 = vmatprep.subr.mxu0 0.0
      %1680 = vmatpush2.msra.mxu0 0.0
      %1681 = vmatprep.subr.mxu0 0.0
      %1682 = vmatpush2.msra.mxu0 0.0
      %1683 = vmatprep.subr.mxu0 0.0
      %1684 = vmatpush2.msra.mxu0 0.0
      %1685 = vmatprep.subr.mxu0 0.0
      %1686 = vmatpush2.msra.mxu0 0.0
      %1687 = vmatprep.subr.mxu0 0.0
      %1688 = vmatpush2.msra.mxu0 0.0
      %1689 = vmatprep.subr.mxu0 0.0
      %1690 = vmatpush2.msra.mxu0 0.0
      %1691 = vmatprep.subr.mxu0 0.0
      %1692 = vmatpush2.msra.mxu0 0.0
      %1693 = vmatprep.subr.mxu0 0.0
      %1694 = vmatpush2.msra.mxu0 0.0
      %1695 = vmatprep.subr.mxu0 0.0
      %1696 = vmatpush2.msra.mxu0 0.0
      %1697 = vmatprep.subr.mxu0 0.0
      %1698 = vmatpush2.msra.mxu0 0.0
      %1699 = vmatprep.subr.mxu0 0.0
      %1700 = vmatpush2.msra.mxu0 0.0
      %1701 = vmatprep.subr.mxu0 0.0
      %1702 = vmatpush2.msra.mxu0 0.0
      %1703 = vmatprep.subr.mxu0 0.0
      %1704 = vmatpush2.msra.mxu0 0.0
      %1705 = vmatprep.subr.mxu0 0.0
      %1706 = vmatpush2.msra.mxu0 0.0
      %1707 = vmatprep.mubr.f32.mxu0 0.0
      %1708 = vmatmul.mubr.f32.gmra.mxu0 %v1641
      %v1709 = vpop.f32.mrf.mxu0
      %v1710 = vadd.f32 0.0, %v1709
      %v1711 = vpop.f32.mrf.mxu0
      %1712 = vdwg.mxu0
      %1713 = vrot.lane.b32.xlu0 %v1215, 32
      %v1714 = vpop.permute.xlu0 %1713
      %1715 = vrot.lane.b32.xlu0 %v1548, 96
      %v1716 = vpop.permute.xlu0 %1715
      %v1717 = vsel %vm1221, %v1714, 0
      %v1719 = vsel %vm1221, %v1716, 0
      %1721 = vmatprep.subr.mxu0 0.0
      %1722 = vmatpush1.xpose.msra.mxu0 0.0
      %1723 = vmatprep.subr.mxu0 0.0
      %1724 = vmatpush1.xpose.msra.mxu0 0.0
      %1725 = vmatprep.subr.mxu0 0.0
      %1726 = vmatpush1.xpose.msra.mxu0 0.0
      %1727 = vmatprep.subr.mxu0 0.0
      %1728 = vmatpush1.xpose.msra.mxu0 0.0
      %1729 = vmatprep.subr.mxu0 0.0
      %1730 = vmatpush1.xpose.msra.mxu0 0.0
      %1731 = vmatprep.subr.mxu0 0.0
      %1732 = vmatpush1.xpose.msra.mxu0 0.0
      %1733 = vmatprep.subr.mxu0 0.0
      %1734 = vmatpush1.xpose.msra.mxu0 0.0
      %1735 = vmatprep.subr.mxu0 0.0
      %1736 = vmatpush1.xpose.msra.mxu0 0.0
      %1737 = vmatprep.subr.mxu0 0.0
      %1738 = vmatpush1.xpose.msra.mxu0 0.0
      %1739 = vmatprep.subr.mxu0 0.0
      %1740 = vmatpush1.xpose.msra.mxu0 0.0
      %1741 = vmatprep.subr.mxu0 0.0
      %1742 = vmatpush1.xpose.msra.mxu0 0.0
      %1743 = vmatprep.subr.mxu0 0.0
      %1744 = vmatpush1.xpose.msra.mxu0 0.0
      %1745 = vmatprep.subr.mxu0 0.0
      %1746 = vmatpush1.xpose.msra.mxu0 0.0
      %1747 = vmatprep.subr.mxu0 0.0
      %1748 = vmatpush1.xpose.msra.mxu0 0.0
      %1749 = vmatprep.subr.mxu0 0.0
      %1750 = vmatpush1.xpose.msra.mxu0 0.0
      %1751 = vmatprep.subr.mxu0 0.0
      %1752 = vmatpush1.xpose.msra.mxu0 %v1719
      %1753 = vmatprep.subr.mxu0 0.0
      %1754 = vmatpush2.xpose.msra.mxu0 0.0
      %1755 = vmatprep.subr.mxu0 0.0
      %1756 = vmatpush2.xpose.msra.mxu0 0.0
      %1757 = vmatprep.subr.mxu0 0.0
      %1758 = vmatpush2.xpose.msra.mxu0 0.0
      %1759 = vmatprep.subr.mxu0 0.0
      %1760 = vmatpush2.xpose.msra.mxu0 0.0
      %1761 = vmatprep.subr.mxu0 0.0
      %1762 = vmatpush2.xpose.msra.mxu0 0.0
      %1763 = vmatprep.subr.mxu0 0.0
      %1764 = vmatpush2.xpose.msra.mxu0 0.0
      %1765 = vmatprep.subr.mxu0 0.0
      %1766 = vmatpush2.xpose.msra.mxu0 0.0
      %1767 = vmatprep.subr.mxu0 0.0
      %1768 = vmatpush2.xpose.msra.mxu0 0.0
      %1769 = vmatprep.subr.mxu0 0.0
      %1770 = vmatpush2.xpose.msra.mxu0 0.0
      %1771 = vmatprep.subr.mxu0 0.0
      %1772 = vmatpush2.xpose.msra.mxu0 0.0
      %1773 = vmatprep.subr.mxu0 0.0
      %1774 = vmatpush2.xpose.msra.mxu0 0.0
      %1775 = vmatprep.subr.mxu0 0.0
      %1776 = vmatpush2.xpose.msra.mxu0 0.0
      %1777 = vmatprep.subr.mxu0 0.0
      %1778 = vmatpush2.xpose.msra.mxu0 0.0
      %1779 = vmatprep.subr.mxu0 0.0
      %1780 = vmatpush2.xpose.msra.mxu0 0.0
      %1781 = vmatprep.subr.mxu0 0.0
      %1782 = vmatpush2.xpose.msra.mxu0 0.0
      %1783 = vmatprep.subr.mxu0 0.0
      %1784 = vmatpush2.xpose.msra.mxu0 0.0
      %1785 = vmatprep.mubr.f32.mxu0 0.0
      %1786 = vmatmul.mubr.f32.gmra.mxu0 %v1717
      %v1787 = vpop.f32.mrf.mxu0
      %v1788 = vadd.f32 %v1165, %v1787
      %v1789 = vpop.f32.mrf.mxu0
      %1790 = vdwg.mxu0
      %v1791 = vsel %vm1297, %v1788, -inf
      %1792 = vmax.xlane.f32.xlu0 %v1791
      %v1793 = vpop.xlane.xlu0 %1792
      %v1794 = vsub.f32 %v1788, %v1793
      %v1795 = vmul.f32 %v1794, 1.442695
      %v1796 = vpow.pop %v1795
      %v1797 = vsel %vm1297, %v1796, 0.0
      %1798 = vadd.xlane.f32.xlu0 %v1797
      %v1799 = vpop.xlane.xlu0 %1798
      %v1800 = vrcp.pop %v1799
      %v1801 = vmul.f32 %v1796, %v1800
      %1802 = vrot.lane.b32.xlu0 %v1217, 32
      %v1803 = vpop.permute.xlu0 %1802
      %v1806 = vsel %vm1297, %v1801, 0
      %1808 = vmatprep.subr.mxu0 0.0
      %1809 = vmatpush1.msra.mxu0 0.0
      %1810 = vmatprep.subr.mxu0 0.0
      %1811 = vmatpush1.msra.mxu0 0.0
      %1812 = vmatprep.subr.mxu0 0.0
      %1813 = vmatpush1.msra.mxu0 0.0
      %1814 = vmatprep.subr.mxu0 0.0
      %1815 = vmatpush1.msra.mxu0 0.0
      %1816 = vmatprep.subr.mxu0 0.0
      %1817 = vmatpush1.msra.mxu0 0.0
      %1818 = vmatprep.subr.mxu0 0.0
      %1819 = vmatpush1.msra.mxu0 0.0
      %1820 = vmatprep.subr.mxu0 0.0
      %1821 = vmatpush1.msra.mxu0 0.0
      %1822 = vmatprep.subr.mxu0 0.0
      %1823 = vmatpush1.msra.mxu0 0.0
      %1824 = vmatprep.subr.mxu0 0.0
      %1825 = vmatpush1.msra.mxu0 0.0
      %1826 = vmatprep.subr.mxu0 0.0
      %1827 = vmatpush1.msra.mxu0 0.0
      %1828 = vmatprep.subr.mxu0 0.0
      %1829 = vmatpush1.msra.mxu0 0.0
      %1830 = vmatprep.subr.mxu0 0.0
      %1831 = vmatpush1.msra.mxu0 0.0
      %1832 = vmatprep.subr.mxu0 0.0
      %1833 = vmatpush1.msra.mxu0 0.0
      %1834 = vmatprep.subr.mxu0 0.0
      %1835 = vmatpush1.msra.mxu0 0.0
      %1836 = vmatprep.subr.mxu0 0.0
      %1837 = vmatpush1.msra.mxu0 0.0
      %1838 = vmatprep.subr.mxu0 0.0
      %1839 = vmatpush1.msra.mxu0 %v1803
      %1840 = vmatprep.subr.mxu0 0.0
      %1841 = vmatpush2.msra.mxu0 0.0
      %1842 = vmatprep.subr.mxu0 0.0
      %1843 = vmatpush2.msra.mxu0 0.0
      %1844 = vmatprep.subr.mxu0 0.0
      %1845 = vmatpush2.msra.mxu0 0.0
      %1846 = vmatprep.subr.mxu0 0.0
      %1847 = vmatpush2.msra.mxu0 0.0
      %1848 = vmatprep.subr.mxu0 0.0
      %1849 = vmatpush2.msra.mxu0 0.0
      %1850 = vmatprep.subr.mxu0 0.0
      %1851 = vmatpush2.msra.mxu0 0.0
      %1852 = vmatprep.subr.mxu0 0.0
      %1853 = vmatpush2.msra.mxu0 0.0
      %1854 = vmatprep.subr.mxu0 0.0
      %1855 = vmatpush2.msra.mxu0 0.0
      %1856 = vmatprep.subr.mxu0 0.0
      %1857 = vmatpush2.msra.mxu0 0.0
      %1858 = vmatprep.subr.mxu0 0.0
      %1859 = vmatpush2.msra.mxu0 0.0
      %1860 = vmatprep.subr.mxu0 0.0
      %1861 = vmatpush2.msra.mxu0 0.0
      %1862 = vmatprep.subr.mxu0 0.0
      %1863 = vmatpush2.msra.mxu0 0.0
      %1864 = vmatprep.subr.mxu0 0.0
      %1865 = vmatpush2.msra.mxu0 0.0
      %1866 = vmatprep.subr.mxu0 0.0
      %1867 = vmatpush2.msra.mxu0 0.0
      %1868 = vmatprep.subr.mxu0 0.0
      %1869 = vmatpush2.msra.mxu0 0.0
      %1870 = vmatprep.subr.mxu0 0.0
      %1871 = vmatpush2.msra.mxu0 0.0
      %1872 = vmatprep.mubr.f32.mxu0 0.0
      %1873 = vmatmul.mubr.f32.gmra.mxu0 %v1806
      %v1874 = vpop.f32.mrf.mxu0
      %v1875 = vadd.f32 0.0, %v1874
      %v1876 = vpop.f32.mrf.mxu0
      %1877 = vdwg.mxu0
      %v1878 = vld [vmem:[#allocation3 + $0x20] sm:$0xff]
      %1879 = vrot.lane.b32.xlu0 %v1548, 64
      %v1880 = vpop.permute.xlu0 %1879
      %v1881 = vsel %vm1221, %v1216, 0
      %v1883 = vsel %vm1221, %v1880, 0
      %1885 = vmatprep.subr.mxu0 0.0
      %1886 = vmatpush1.xpose.msra.mxu0 0.0
      %1887 = vmatprep.subr.mxu0 0.0
      %1888 = vmatpush1.xpose.msra.mxu0 0.0
      %1889 = vmatprep.subr.mxu0 0.0
      %1890 = vmatpush1.xpose.msra.mxu0 0.0
      %1891 = vmatprep.subr.mxu0 0.0
      %1892 = vmatpush1.xpose.msra.mxu0 0.0
      %1893 = vmatprep.subr.mxu0 0.0
      %1894 = vmatpush1.xpose.msra.mxu0 0.0
      %1895 = vmatprep.subr.mxu0 0.0
      %1896 = vmatpush1.xpose.msra.mxu0 0.0
      %1897 = vmatprep.subr.mxu0 0.0
      %1898 = vmatpush1.xpose.msra.mxu0 0.0
      %1899 = vmatprep.subr.mxu0 0.0
      %1900 = vmatpush1.xpose.msra.mxu0 0.0
      %1901 = vmatprep.subr.mxu0 0.0
      %1902 = vmatpush1.xpose.msra.mxu0 0.0
      %1903 = vmatprep.subr.mxu0 0.0
      %1904 = vmatpush1.xpose.msra.mxu0 0.0
      %1905 = vmatprep.subr.mxu0 0.0
      %1906 = vmatpush1.xpose.msra.mxu0 0.0
      %1907 = vmatprep.subr.mxu0 0.0
      %1908 = vmatpush1.xpose.msra.mxu0 0.0
      %1909 = vmatprep.subr.mxu0 0.0
      %1910 = vmatpush1.xpose.msra.mxu0 0.0
      %1911 = vmatprep.subr.mxu0 0.0
      %1912 = vmatpush1.xpose.msra.mxu0 0.0
      %1913 = vmatprep.subr.mxu0 0.0
      %1914 = vmatpush1.xpose.msra.mxu0 0.0
      %1915 = vmatprep.subr.mxu0 0.0
      %1916 = vmatpush1.xpose.msra.mxu0 %v1883
      %1917 = vmatprep.subr.mxu0 0.0
      %1918 = vmatpush2.xpose.msra.mxu0 0.0
      %1919 = vmatprep.subr.mxu0 0.0
      %1920 = vmatpush2.xpose.msra.mxu0 0.0
      %1921 = vmatprep.subr.mxu0 0.0
      %1922 = vmatpush2.xpose.msra.mxu0 0.0
      %1923 = vmatprep.subr.mxu0 0.0
      %1924 = vmatpush2.xpose.msra.mxu0 0.0
      %1925 = vmatprep.subr.mxu0 0.0
      %1926 = vmatpush2.xpose.msra.mxu0 0.0
      %1927 = vmatprep.subr.mxu0 0.0
      %1928 = vmatpush2.xpose.msra.mxu0 0.0
      %1929 = vmatprep.subr.mxu0 0.0
      %1930 = vmatpush2.xpose.msra.mxu0 0.0
      %1931 = vmatprep.subr.mxu0 0.0
      %1932 = vmatpush2.xpose.msra.mxu0 0.0
      %1933 = vmatprep.subr.mxu0 0.0
      %1934 = vmatpush2.xpose.msra.mxu0 0.0
      %1935 = vmatprep.subr.mxu0 0.0
      %1936 = vmatpush2.xpose.msra.mxu0 0.0
      %1937 = vmatprep.subr.mxu0 0.0
      %1938 = vmatpush2.xpose.msra.mxu0 0.0
      %1939 = vmatprep.subr.mxu0 0.0
      %1940 = vmatpush2.xpose.msra.mxu0 0.0
      %1941 = vmatprep.subr.mxu0 0.0
      %1942 = vmatpush2.xpose.msra.mxu0 0.0
      %1943 = vmatprep.subr.mxu0 0.0
      %1944 = vmatpush2.xpose.msra.mxu0 0.0
      %1945 = vmatprep.subr.mxu0 0.0
      %1946 = vmatpush2.xpose.msra.mxu0 0.0
      %1947 = vmatprep.subr.mxu0 0.0
      %1948 = vmatpush2.xpose.msra.mxu0 0.0
      %1949 = vmatprep.mubr.f32.mxu0 0.0
      %1950 = vmatmul.mubr.f32.gmra.mxu0 %v1881
      %v1951 = vpop.f32.mrf.mxu0
      %v1952 = vadd.f32 %v1165, %v1951
      %v1953 = vpop.f32.mrf.mxu0
      %1954 = vdwg.mxu0
      %v1955 = vsel %vm1297, %v1952, -inf
      %1956 = vmax.xlane.f32.xlu0 %v1955
      %v1957 = vpop.xlane.xlu0 %1956
      %v1958 = vsub.f32 %v1952, %v1957
      %v1959 = vmul.f32 %v1958, 1.442695
      %v1960 = vpow.pop %v1959
      %v1961 = vsel %vm1297, %v1960, 0.0
      %1962 = vadd.xlane.f32.xlu0 %v1961
      %v1963 = vpop.xlane.xlu0 %1962
      %v1964 = vrcp.pop %v1963
      %v1965 = vmul.f32 %v1960, %v1964
      %v1967 = vsel %vm1297, %v1965, 0
      %1969 = vmatprep.subr.mxu0 0.0
      %1970 = vmatpush1.msra.mxu0 0.0
      %1971 = vmatprep.subr.mxu0 0.0
      %1972 = vmatpush1.msra.mxu0 0.0
      %1973 = vmatprep.subr.mxu0 0.0
      %1974 = vmatpush1.msra.mxu0 0.0
      %1975 = vmatprep.subr.mxu0 0.0
      %1976 = vmatpush1.msra.mxu0 0.0
      %1977 = vmatprep.subr.mxu0 0.0
      %1978 = vmatpush1.msra.mxu0 0.0
      %1979 = vmatprep.subr.mxu0 0.0
      %1980 = vmatpush1.msra.mxu0 0.0
      %1981 = vmatprep.subr.mxu0 0.0
      %1982 = vmatpush1.msra.mxu0 0.0
      %1983 = vmatprep.subr.mxu0 0.0
      %1984 = vmatpush1.msra.mxu0 0.0
      %1985 = vmatprep.subr.mxu0 0.0
      %1986 = vmatpush1.msra.mxu0 0.0
      %1987 = vmatprep.subr.mxu0 0.0
      %1988 = vmatpush1.msra.mxu0 0.0
      %1989 = vmatprep.subr.mxu0 0.0
      %1990 = vmatpush1.msra.mxu0 0.0
      %1991 = vmatprep.subr.mxu0 0.0
      %1992 = vmatpush1.msra.mxu0 0.0
      %1993 = vmatprep.subr.mxu0 0.0
      %1994 = vmatpush1.msra.mxu0 0.0
      %1995 = vmatprep.subr.mxu0 0.0
      %1996 = vmatpush1.msra.mxu0 0.0
      %1997 = vmatprep.subr.mxu0 0.0
      %1998 = vmatpush1.msra.mxu0 0.0
      %1999 = vmatprep.subr.mxu0 0.0
      %2000 = vmatpush1.msra.mxu0 %v1878
      %2001 = vmatprep.subr.mxu0 0.0
      %2002 = vmatpush2.msra.mxu0 0.0
      %2003 = vmatprep.subr.mxu0 0.0
      %2004 = vmatpush2.msra.mxu0 0.0
      %2005 = vmatprep.subr.mxu0 0.0
      %2006 = vmatpush2.msra.mxu0 0.0
      %2007 = vmatprep.subr.mxu0 0.0
      %2008 = vmatpush2.msra.mxu0 0.0
      %2009 = vmatprep.subr.mxu0 0.0
      %2010 = vmatpush2.msra.mxu0 0.0
      %2011 = vmatprep.subr.mxu0 0.0
      %2012 = vmatpush2.msra.mxu0 0.0
      %2013 = vmatprep.subr.mxu0 0.0
      %2014 = vmatpush2.msra.mxu0 0.0
      %2015 = vmatprep.subr.mxu0 0.0
      %2016 = vmatpush2.msra.mxu0 0.0
      %2017 = vmatprep.subr.mxu0 0.0
      %2018 = vmatpush2.msra.mxu0 0.0
      %2019 = vmatprep.subr.mxu0 0.0
      %2020 = vmatpush2.msra.mxu0 0.0
      %2021 = vmatprep.subr.mxu0 0.0
      %2022 = vmatpush2.msra.mxu0 0.0
      %2023 = vmatprep.subr.mxu0 0.0
      %2024 = vmatpush2.msra.mxu0 0.0
      %2025 = vmatprep.subr.mxu0 0.0
      %2026 = vmatpush2.msra.mxu0 0.0
      %2027 = vmatprep.subr.mxu0 0.0
      %2028 = vmatpush2.msra.mxu0 0.0
      %2029 = vmatprep.subr.mxu0 0.0
      %2030 = vmatpush2.msra.mxu0 0.0
      %2031 = vmatprep.subr.mxu0 0.0
      %2032 = vmatpush2.msra.mxu0 0.0
      %2033 = vmatprep.mubr.f32.mxu0 0.0
      %2034 = vmatmul.mubr.f32.gmra.mxu0 %v1967
      %v2035 = vpop.f32.mrf.mxu0
      %v2036 = vadd.f32 0.0, %v2035
      %v2037 = vpop.f32.mrf.mxu0
      %2038 = vdwg.mxu0
      %2039 = vrot.lane.b32.xlu0 %v1216, 96
      %v2040 = vpop.permute.xlu0 %2039
      %2041 = vrot.lane.b32.xlu0 %v1548, 32
      %v2042 = vpop.permute.xlu0 %2041
      %v2043 = vsel %vm1221, %v2040, 0
      %v2045 = vsel %vm1221, %v2042, 0
      %2047 = vmatprep.subr.mxu0 0.0
      %2048 = vmatpush1.xpose.msra.mxu0 0.0
      %2049 = vmatprep.subr.mxu0 0.0
      %2050 = vmatpush1.xpose.msra.mxu0 0.0
      %2051 = vmatprep.subr.mxu0 0.0
      %2052 = vmatpush1.xpose.msra.mxu0 0.0
      %2053 = vmatprep.subr.mxu0 0.0
      %2054 = vmatpush1.xpose.msra.mxu0 0.0
      %2055 = vmatprep.subr.mxu0 0.0
      %2056 = vmatpush1.xpose.msra.mxu0 0.0
      %2057 = vmatprep.subr.mxu0 0.0
      %2058 = vmatpush1.xpose.msra.mxu0 0.0
      %2059 = vmatprep.subr.mxu0 0.0
      %2060 = vmatpush1.xpose.msra.mxu0 0.0
      %2061 = vmatprep.subr.mxu0 0.0
      %2062 = vmatpush1.xpose.msra.mxu0 0.0
      %2063 = vmatprep.subr.mxu0 0.0
      %2064 = vmatpush1.xpose.msra.mxu0 0.0
      %2065 = vmatprep.subr.mxu0 0.0
      %2066 = vmatpush1.xpose.msra.mxu0 0.0
      %2067 = vmatprep.subr.mxu0 0.0
      %2068 = vmatpush1.xpose.msra.mxu0 0.0
      %2069 = vmatprep.subr.mxu0 0.0
      %2070 = vmatpush1.xpose.msra.mxu0 0.0
      %2071 = vmatprep.subr.mxu0 0.0
      %2072 = vmatpush1.xpose.msra.mxu0 0.0
      %2073 = vmatprep.subr.mxu0 0.0
      %2074 = vmatpush1.xpose.msra.mxu0 0.0
      %2075 = vmatprep.subr.mxu0 0.0
      %2076 = vmatpush1.xpose.msra.mxu0 0.0
      %2077 = vmatprep.subr.mxu0 0.0
      %2078 = vmatpush1.xpose.msra.mxu0 %v2045
      %2079 = vmatprep.subr.mxu0 0.0
      %2080 = vmatpush2.xpose.msra.mxu0 0.0
      %2081 = vmatprep.subr.mxu0 0.0
      %2082 = vmatpush2.xpose.msra.mxu0 0.0
      %2083 = vmatprep.subr.mxu0 0.0
      %2084 = vmatpush2.xpose.msra.mxu0 0.0
      %2085 = vmatprep.subr.mxu0 0.0
      %2086 = vmatpush2.xpose.msra.mxu0 0.0
      %2087 = vmatprep.subr.mxu0 0.0
      %2088 = vmatpush2.xpose.msra.mxu0 0.0
      %2089 = vmatprep.subr.mxu0 0.0
      %2090 = vmatpush2.xpose.msra.mxu0 0.0
      %2091 = vmatprep.subr.mxu0 0.0
      %2092 = vmatpush2.xpose.msra.mxu0 0.0
      %2093 = vmatprep.subr.mxu0 0.0
      %2094 = vmatpush2.xpose.msra.mxu0 0.0
      %2095 = vmatprep.subr.mxu0 0.0
      %2096 = vmatpush2.xpose.msra.mxu0 0.0
      %2097 = vmatprep.subr.mxu0 0.0
      %2098 = vmatpush2.xpose.msra.mxu0 0.0
      %2099 = vmatprep.subr.mxu0 0.0
      %2100 = vmatpush2.xpose.msra.mxu0 0.0
      %2101 = vmatprep.subr.mxu0 0.0
      %2102 = vmatpush2.xpose.msra.mxu0 0.0
      %2103 = vmatprep.subr.mxu0 0.0
      %2104 = vmatpush2.xpose.msra.mxu0 0.0
      %2105 = vmatprep.subr.mxu0 0.0
      %2106 = vmatpush2.xpose.msra.mxu0 0.0
      %2107 = vmatprep.subr.mxu0 0.0
      %2108 = vmatpush2.xpose.msra.mxu0 0.0
      %2109 = vmatprep.subr.mxu0 0.0
      %2110 = vmatpush2.xpose.msra.mxu0 0.0
      %2111 = vmatprep.mubr.f32.mxu0 0.0
      %2112 = vmatmul.mubr.f32.gmra.mxu0 %v2043
      %v2113 = vpop.f32.mrf.mxu0
      %v2114 = vadd.f32 %v1165, %v2113
      %v2115 = vpop.f32.mrf.mxu0
      %2116 = vdwg.mxu0
      %v2117 = vsel %vm1297, %v2114, -inf
      %2118 = vmax.xlane.f32.xlu0 %v2117
      %v2119 = vpop.xlane.xlu0 %2118
      %v2120 = vsub.f32 %v2114, %v2119
      %v2121 = vmul.f32 %v2120, 1.442695
      %v2122 = vpow.pop %v2121
      %v2123 = vsel %vm1297, %v2122, 0.0
      %2124 = vadd.xlane.f32.xlu0 %v2123
      %v2125 = vpop.xlane.xlu0 %2124
      %v2126 = vrcp.pop %v2125
      %v2127 = vmul.f32 %v2122, %v2126
      %2129 = vrot.lane.b32.xlu0 %v1878, 96
      %v2130 = vpop.permute.xlu0 %2129
      %v2133 = vsel %vm1297, %v2127, 0
      %2135 = vmatprep.subr.mxu0 0.0
      %2136 = vmatpush1.msra.mxu0 0.0
      %2137 = vmatprep.subr.mxu0 0.0
      %2138 = vmatpush1.msra.mxu0 0.0
      %2139 = vmatprep.subr.mxu0 0.0
      %2140 = vmatpush1.msra.mxu0 0.0
      %2141 = vmatprep.subr.mxu0 0.0
      %2142 = vmatpush1.msra.mxu0 0.0
      %2143 = vmatprep.subr.mxu0 0.0
      %2144 = vmatpush1.msra.mxu0 0.0
      %2145 = vmatprep.subr.mxu0 0.0
      %2146 = vmatpush1.msra.mxu0 0.0
      %2147 = vmatprep.subr.mxu0 0.0
      %2148 = vmatpush1.msra.mxu0 0.0
      %2149 = vmatprep.subr.mxu0 0.0
      %2150 = vmatpush1.msra.mxu0 0.0
      %2151 = vmatprep.subr.mxu0 0.0
      %2152 = vmatpush1.msra.mxu0 0.0
      %2153 = vmatprep.subr.mxu0 0.0
      %2154 = vmatpush1.msra.mxu0 0.0
      %2155 = vmatprep.subr.mxu0 0.0
      %2156 = vmatpush1.msra.mxu0 0.0
      %2157 = vmatprep.subr.mxu0 0.0
      %2158 = vmatpush1.msra.mxu0 0.0
      %2159 = vmatprep.subr.mxu0 0.0
      %2160 = vmatpush1.msra.mxu0 0.0
      %2161 = vmatprep.subr.mxu0 0.0
      %2162 = vmatpush1.msra.mxu0 0.0
      %2163 = vmatprep.subr.mxu0 0.0
      %2164 = vmatpush1.msra.mxu0 0.0
      %2165 = vmatprep.subr.mxu0 0.0
      %2166 = vmatpush1.msra.mxu0 %v2130
      %2167 = vmatprep.subr.mxu0 0.0
      %2168 = vmatpush2.msra.mxu0 0.0
      %2169 = vmatprep.subr.mxu0 0.0
      %2170 = vmatpush2.msra.mxu0 0.0
      %2171 = vmatprep.subr.mxu0 0.0
      %2172 = vmatpush2.msra.mxu0 0.0
      %2173 = vmatprep.subr.mxu0 0.0
      %2174 = vmatpush2.msra.mxu0 0.0
      %2175 = vmatprep.subr.mxu0 0.0
      %2176 = vmatpush2.msra.mxu0 0.0
      %2177 = vmatprep.subr.mxu0 0.0
      %2178 = vmatpush2.msra.mxu0 0.0
      %2179 = vmatprep.subr.mxu0 0.0
      %2180 = vmatpush2.msra.mxu0 0.0
      %2181 = vmatprep.subr.mxu0 0.0
      %2182 = vmatpush2.msra.mxu0 0.0
      %2183 = vmatprep.subr.mxu0 0.0
      %2184 = vmatpush2.msra.mxu0 0.0
      %2185 = vmatprep.subr.mxu0 0.0
      %2186 = vmatpush2.msra.mxu0 0.0
      %2187 = vmatprep.subr.mxu0 0.0
      %2188 = vmatpush2.msra.mxu0 0.0
      %2189 = vmatprep.subr.mxu0 0.0
      %2190 = vmatpush2.msra.mxu0 0.0
      %2191 = vmatprep.subr.mxu0 0.0
      %2192 = vmatpush2.msra.mxu0 0.0
      %2193 = vmatprep.subr.mxu0 0.0
      %2194 = vmatpush2.msra.mxu0 0.0
      %2195 = vmatprep.subr.mxu0 0.0
      %2196 = vmatpush2.msra.mxu0 0.0
      %2197 = vmatprep.subr.mxu0 0.0
      %2198 = vmatpush2.msra.mxu0 0.0
      %2199 = vmatprep.mubr.f32.mxu0 0.0
      %2200 = vmatmul.mubr.f32.gmra.mxu0 %v2133
      %v2201 = vpop.f32.mrf.mxu0
      %v2202 = vadd.f32 0.0, %v2201
      %v2203 = vpop.f32.mrf.mxu0
      %2204 = vdwg.mxu0
      %2206 = vrot.lane.b32.xlu0 %v1545, 32
      %v2207 = vpop.permute.xlu0 %2206
      %2210 = vrot.lane.b32.xlu0 %v1710, 64
      %v2211 = vpop.permute.xlu0 %2210
      %2214 = vrot.lane.b32.xlu0 %v1875, 96
      %v2215 = vpop.permute.xlu0 %2214
      %2218 = vrot.lane.b32.xlu0 %v2202, 32
      %v2219 = vpop.permute.xlu0 %2218
      %v2221 = vsel %vm1221, %v1379, %v2207
      %v2222 = vsel %vm732, %v2221, %v2211
      %vm2223 = vcmask 785408
      %v2224 = vsel %vm2223, %v2222, %v2215
      %v2225 = vsel %vm1221, %v2036, %v2219
      %v2226 = vld [vmem:[#allocation2] sm:$0xff]
      %v2227 = vld [vmem:[#allocation2 + $0x8] sm:$0xff]
      %v2229 = vsel %vm732, %v2225, 0
      %2231 = vmatprep.subr.mxu0 %v1197
      %2232 = vmatpush1.msra.mxu0 %v1196
      %2233 = vmatprep.subr.mxu0 %v1195
      %2234 = vmatpush1.msra.mxu0 %v1194
      %2235 = vmatprep.subr.mxu0 %v1193
      %2236 = vmatpush1.msra.mxu0 %v1192
      %2237 = vmatprep.subr.mxu0 %v1191
      %2238 = vmatpush1.msra.mxu0 %v1190
      %2239 = vmatprep.subr.mxu0 %v1189
      %2240 = vmatpush1.msra.mxu0 %v1188
      %2241 = vmatprep.subr.mxu0 %v1187
      %2242 = vmatpush1.msra.mxu0 %v1186
      %2243 = vmatprep.subr.mxu0 %v1185
      %2244 = vmatpush1.msra.mxu0 %v1184
      %2245 = vmatprep.subr.mxu0 %v1183
      %2246 = vmatpush1.msra.mxu0 %v1182
      %2247 = vmatprep.subr.mxu0 %v1181
      %2248 = vmatpush1.msra.mxu0 %v1180
      %2249 = vmatprep.subr.mxu0 %v1179
      %2250 = vmatpush1.msra.mxu0 %v1178
      %2251 = vmatprep.subr.mxu0 %v1177
      %2252 = vmatpush1.msra.mxu0 %v1176
      %2253 = vmatprep.subr.mxu0 %v1175
      %2254 = vmatpush1.msra.mxu0 %v1174
      %2255 = vmatprep.subr.mxu0 %v1173
      %2256 = vmatpush1.msra.mxu0 %v1172
      %2257 = vmatprep.subr.mxu0 %v1171
      %2258 = vmatpush1.msra.mxu0 %v1170
      %2259 = vmatprep.subr.mxu0 %v1169
      %2260 = vmatpush1.msra.mxu0 %v1168
      %2261 = vmatprep.subr.mxu0 %v1167
      %2262 = vmatpush1.msra.mxu0 %v1166
      %2263 = vmatprep.subr.mxu0 0.0
      %2264 = vmatpush2.msra.mxu0 0.0
      %2265 = vmatprep.subr.mxu0 0.0
      %2266 = vmatpush2.msra.mxu0 0.0
      %2267 = vmatprep.subr.mxu0 0.0
      %2268 = vmatpush2.msra.mxu0 0.0
      %2269 = vmatprep.subr.mxu0 0.0
      %2270 = vmatpush2.msra.mxu0 0.0
      %2271 = vmatprep.subr.mxu0 0.0
      %2272 = vmatpush2.msra.mxu0 0.0
      %2273 = vmatprep.subr.mxu0 0.0
      %2274 = vmatpush2.msra.mxu0 0.0
      %2275 = vmatprep.subr.mxu0 0.0
      %2276 = vmatpush2.msra.mxu0 0.0
      %2277 = vmatprep.subr.mxu0 0.0
      %2278 = vmatpush2.msra.mxu0 0.0
      %2279 = vmatprep.subr.mxu0 %v1213
      %2280 = vmatpush2.msra.mxu0 %v1212
      %2281 = vmatprep.subr.mxu0 %v1211
      %2282 = vmatpush2.msra.mxu0 %v1210
      %2283 = vmatprep.subr.mxu0 %v1209
      %2284 = vmatpush2.msra.mxu0 %v1208
      %2285 = vmatprep.subr.mxu0 %v1207
      %2286 = vmatpush2.msra.mxu0 %v1206
      %2287 = vmatprep.subr.mxu0 %v1205
      %2288 = vmatpush2.msra.mxu0 %v1204
      %2289 = vmatprep.subr.mxu0 %v1203
      %2290 = vmatpush2.msra.mxu0 %v1202
      %2291 = vmatprep.subr.mxu0 %v1201
      %2292 = vmatpush2.msra.mxu0 %v1200
      %2293 = vmatprep.subr.mxu0 %v1199
      %2294 = vmatpush2.msra.mxu0 %v1198
      %2295 = vmatprep.mubr.f32.mxu0 %v2229
      %2296 = vmatmul.mubr.f32.gmra.mxu0 %v2224
      %v2297 = vpop.f32.mrf.mxu0
      %v2298 = vadd.f32 0.0, %v2297
      %v2299 = vpop.f32.mrf.mxu0
      %v2300 = vadd.f32 0.0, %v2299
      %2301 = vdwg.mxu0
      %v2302 = vadd.f32 %v2226, %v2298
      %v2303 = vadd.f32 %v2227, %v2300
      %v2305 = vlaneseq
      %v2306 = vshrl.u32 %v2305, 7
      %v2307 = vsub.s32 0, %v2306
      %v2308 = vrot.slane %v1214, %v2307
      %v2309 = vlaneseq
      %v2310 = vshrl.u32 %v2309, 7
      %v2311 = vsub.s32 1, %v2310
      %v2312 = vrot.slane %v1214, %v2311
      %v2315 = vadd.f32 %v2302, %v2308
      %v2316 = vadd.f32 %v2303, %v2312
      %2317 = vst [vmem:[#allocation2] sm:$0xff] %v2315
      %2318 = vst.msk [vmem:[#allocation2 + $0x8] sm:$0xff] %vm732, %v2316
      %v2319 = vld [vmem:[#allocation3 + $0x28] sm:$0xff]
      %v2320 = vld [vmem:[#allocation3 + $0x30] sm:$0xff]
      %v2321 = vld [vmem:[#allocation3 + $0x40] sm:$0xff]
      %2323 = vrot.lane.b32.xlu0 %v2320, 64
      %v2324 = vpop.permute.xlu0 %2323
      %v2326 = vsel %vm1221, %v2319, 0
      %v2328 = vsel %vm1221, %v2324, 0
      %2330 = vmatprep.subr.mxu0 0.0
      %2331 = vmatpush1.xpose.msra.mxu0 0.0
      %2332 = vmatprep.subr.mxu0 0.0
      %2333 = vmatpush1.xpose.msra.mxu0 0.0
      %2334 = vmatprep.subr.mxu0 0.0
      %2335 = vmatpush1.xpose.msra.mxu0 0.0
      %2336 = vmatprep.subr.mxu0 0.0
      %2337 = vmatpush1.xpose.msra.mxu0 0.0
      %2338 = vmatprep.subr.mxu0 0.0
      %2339 = vmatpush1.xpose.msra.mxu0 0.0
      %2340 = vmatprep.subr.mxu0 0.0
      %2341 = vmatpush1.xpose.msra.mxu0 0.0
      %2342 = vmatprep.subr.mxu0 0.0
      %2343 = vmatpush1.xpose.msra.mxu0 0.0
      %2344 = vmatprep.subr.mxu0 0.0
      %2345 = vmatpush1.xpose.msra.mxu0 0.0
      %2346 = vmatprep.subr.mxu0 0.0
      %2347 = vmatpush1.xpose.msra.mxu0 0.0
      %2348 = vmatprep.subr.mxu0 0.0
      %2349 = vmatpush1.xpose.msra.mxu0 0.0
      %2350 = vmatprep.subr.mxu0 0.0
      %2351 = vmatpush1.xpose.msra.mxu0 0.0
      %2352 = vmatprep.subr.mxu0 0.0
      %2353 = vmatpush1.xpose.msra.mxu0 0.0
      %2354 = vmatprep.subr.mxu0 0.0
      %2355 = vmatpush1.xpose.msra.mxu0 0.0
      %2356 = vmatprep.subr.mxu0 0.0
      %2357 = vmatpush1.xpose.msra.mxu0 0.0
      %2358 = vmatprep.subr.mxu0 0.0
      %2359 = vmatpush1.xpose.msra.mxu0 0.0
      %2360 = vmatprep.subr.mxu0 0.0
      %2361 = vmatpush1.xpose.msra.mxu0 %v2328
      %2362 = vmatprep.subr.mxu0 0.0
      %2363 = vmatpush2.xpose.msra.mxu0 0.0
      %2364 = vmatprep.subr.mxu0 0.0
      %2365 = vmatpush2.xpose.msra.mxu0 0.0
      %2366 = vmatprep.subr.mxu0 0.0
      %2367 = vmatpush2.xpose.msra.mxu0 0.0
      %2368 = vmatprep.subr.mxu0 0.0
      %2369 = vmatpush2.xpose.msra.mxu0 0.0
      %2370 = vmatprep.subr.mxu0 0.0
      %2371 = vmatpush2.xpose.msra.mxu0 0.0
      %2372 = vmatprep.subr.mxu0 0.0
      %2373 = vmatpush2.xpose.msra.mxu0 0.0
      %2374 = vmatprep.subr.mxu0 0.0
      %2375 = vmatpush2.xpose.msra.mxu0 0.0
      %2376 = vmatprep.subr.mxu0 0.0
      %2377 = vmatpush2.xpose.msra.mxu0 0.0
      %2378 = vmatprep.subr.mxu0 0.0
      %2379 = vmatpush2.xpose.msra.mxu0 0.0
      %2380 = vmatprep.subr.mxu0 0.0
      %2381 = vmatpush2.xpose.msra.mxu0 0.0
      %2382 = vmatprep.subr.mxu0 0.0
      %2383 = vmatpush2.xpose.msra.mxu0 0.0
      %2384 = vmatprep.subr.mxu0 0.0
      %2385 = vmatpush2.xpose.msra.mxu0 0.0
      %2386 = vmatprep.subr.mxu0 0.0
      %2387 = vmatpush2.xpose.msra.mxu0 0.0
      %2388 = vmatprep.subr.mxu0 0.0
      %2389 = vmatpush2.xpose.msra.mxu0 0.0
      %2390 = vmatprep.subr.mxu0 0.0
      %2391 = vmatpush2.xpose.msra.mxu0 0.0
      %2392 = vmatprep.subr.mxu0 0.0
      %2393 = vmatpush2.xpose.msra.mxu0 0.0
      %2394 = vmatprep.mubr.f32.mxu0 0.0
      %2395 = vmatmul.mubr.f32.gmra.mxu0 %v2326
      %v2396 = vpop.f32.mrf.mxu0
      %v2397 = vadd.f32 %v1165, %v2396
      %v2398 = vpop.f32.mrf.mxu0
      %2399 = vdwg.mxu0
      %v2400 = vsel %vm1297, %v2397, -inf
      %2401 = vmax.xlane.f32.xlu0 %v2400
      %v2402 = vpop.xlane.xlu0 %2401
      %v2403 = vsub.f32 %v2397, %v2402
      %v2404 = vmul.f32 %v2403, 1.442695
      %v2405 = vpow.pop %v2404
      %v2406 = vsel %vm1297, %v2405, 0.0
      %2407 = vadd.xlane.f32.xlu0 %v2406
      %v2408 = vpop.xlane.xlu0 %2407
      %v2409 = vrcp.pop %v2408
      %v2410 = vmul.f32 %v2405, %v2409
      %v2412 = vsel %vm1297, %v2410, 0
      %2414 = vmatprep.subr.mxu0 0.0
      %2415 = vmatpush1.msra.mxu0 0.0
      %2416 = vmatprep.subr.mxu0 0.0
      %2417 = vmatpush1.msra.mxu0 0.0
      %2418 = vmatprep.subr.mxu0 0.0
      %2419 = vmatpush1.msra.mxu0 0.0
      %2420 = vmatprep.subr.mxu0 0.0
      %2421 = vmatpush1.msra.mxu0 0.0
      %2422 = vmatprep.subr.mxu0 0.0
      %2423 = vmatpush1.msra.mxu0 0.0
      %2424 = vmatprep.subr.mxu0 0.0
      %2425 = vmatpush1.msra.mxu0 0.0
      %2426 = vmatprep.subr.mxu0 0.0
      %2427 = vmatpush1.msra.mxu0 0.0
      %2428 = vmatprep.subr.mxu0 0.0
      %2429 = vmatpush1.msra.mxu0 0.0
      %2430 = vmatprep.subr.mxu0 0.0
      %2431 = vmatpush1.msra.mxu0 0.0
      %2432 = vmatprep.subr.mxu0 0.0
      %2433 = vmatpush1.msra.mxu0 0.0
      %2434 = vmatprep.subr.mxu0 0.0
      %2435 = vmatpush1.msra.mxu0 0.0
      %2436 = vmatprep.subr.mxu0 0.0
      %2437 = vmatpush1.msra.mxu0 0.0
      %2438 = vmatprep.subr.mxu0 0.0
      %2439 = vmatpush1.msra.mxu0 0.0
      %2440 = vmatprep.subr.mxu0 0.0
      %2441 = vmatpush1.msra.mxu0 0.0
      %2442 = vmatprep.subr.mxu0 0.0
      %2443 = vmatpush1.msra.mxu0 0.0
      %2444 = vmatprep.subr.mxu0 0.0
      %2445 = vmatpush1.msra.mxu0 %v2321
      %2446 = vmatprep.subr.mxu0 0.0
      %2447 = vmatpush2.msra.mxu0 0.0
      %2448 = vmatprep.subr.mxu0 0.0
      %2449 = vmatpush2.msra.mxu0 0.0
      %2450 = vmatprep.subr.mxu0 0.0
      %2451 = vmatpush2.msra.mxu0 0.0
      %2452 = vmatprep.subr.mxu0 0.0
      %2453 = vmatpush2.msra.mxu0 0.0
      %2454 = vmatprep.subr.mxu0 0.0
      %2455 = vmatpush2.msra.mxu0 0.0
      %2456 = vmatprep.subr.mxu0 0.0
      %2457 = vmatpush2.msra.mxu0 0.0
      %2458 = vmatprep.subr.mxu0 0.0
      %2459 = vmatpush2.msra.mxu0 0.0
      %2460 = vmatprep.subr.mxu0 0.0
      %2461 = vmatpush2.msra.mxu0 0.0
      %2462 = vmatprep.subr.mxu0 0.0
      %2463 = vmatpush2.msra.mxu0 0.0
      %2464 = vmatprep.subr.mxu0 0.0
      %2465 = vmatpush2.msra.mxu0 0.0
      %2466 = vmatprep.subr.mxu0 0.0
      %2467 = vmatpush2.msra.mxu0 0.0
      %2468 = vmatprep.subr.mxu0 0.0
      %2469 = vmatpush2.msra.mxu0 0.0
      %2470 = vmatprep.subr.mxu0 0.0
      %2471 = vmatpush2.msra.mxu0 0.0
      %2472 = vmatprep.subr.mxu0 0.0
      %2473 = vmatpush2.msra.mxu0 0.0
      %2474 = vmatprep.subr.mxu0 0.0
      %2475 = vmatpush2.msra.mxu0 0.0
      %2476 = vmatprep.subr.mxu0 0.0
      %2477 = vmatpush2.msra.mxu0 0.0
      %2478 = vmatprep.mubr.f32.mxu0 0.0
      %2479 = vmatmul.mubr.f32.gmra.mxu0 %v2412
      %v2480 = vpop.f32.mrf.mxu0
      %v2481 = vadd.f32 0.0, %v2480
      %v2482 = vpop.f32.mrf.mxu0
      %2483 = vdwg.mxu0
      %2484 = vrot.lane.b32.xlu0 %v2319, 96
      %v2485 = vpop.permute.xlu0 %2484
      %2486 = vrot.lane.b32.xlu0 %v2320, 32
      %v2487 = vpop.permute.xlu0 %2486
      %v2488 = vsel %vm1221, %v2485, 0
      %v2490 = vsel %vm1221, %v2487, 0
      %2492 = vmatprep.subr.mxu0 0.0
      %2493 = vmatpush1.xpose.msra.mxu0 0.0
      %2494 = vmatprep.subr.mxu0 0.0
      %2495 = vmatpush1.xpose.msra.mxu0 0.0
      %2496 = vmatprep.subr.mxu0 0.0
      %2497 = vmatpush1.xpose.msra.mxu0 0.0
      %2498 = vmatprep.subr.mxu0 0.0
      %2499 = vmatpush1.xpose.msra.mxu0 0.0
      %2500 = vmatprep.subr.mxu0 0.0
      %2501 = vmatpush1.xpose.msra.mxu0 0.0
      %2502 = vmatprep.subr.mxu0 0.0
      %2503 = vmatpush1.xpose.msra.mxu0 0.0
      %2504 = vmatprep.subr.mxu0 0.0
      %2505 = vmatpush1.xpose.msra.mxu0 0.0
      %2506 = vmatprep.subr.mxu0 0.0
      %2507 = vmatpush1.xpose.msra.mxu0 0.0
      %2508 = vmatprep.subr.mxu0 0.0
      %2509 = vmatpush1.xpose.msra.mxu0 0.0
      %2510 = vmatprep.subr.mxu0 0.0
      %2511 = vmatpush1.xpose.msra.mxu0 0.0
      %2512 = vmatprep.subr.mxu0 0.0
      %2513 = vmatpush1.xpose.msra.mxu0 0.0
      %2514 = vmatprep.subr.mxu0 0.0
      %2515 = vmatpush1.xpose.msra.mxu0 0.0
      %2516 = vmatprep.subr.mxu0 0.0
      %2517 = vmatpush1.xpose.msra.mxu0 0.0
      %2518 = vmatprep.subr.mxu0 0.0
      %2519 = vmatpush1.xpose.msra.mxu0 0.0
      %2520 = vmatprep.subr.mxu0 0.0
      %2521 = vmatpush1.xpose.msra.mxu0 0.0
      %2522 = vmatprep.subr.mxu0 0.0
      %2523 = vmatpush1.xpose.msra.mxu0 %v2490
      %2524 = vmatprep.subr.mxu0 0.0
      %2525 = vmatpush2.xpose.msra.mxu0 0.0
      %2526 = vmatprep.subr.mxu0 0.0
      %2527 = vmatpush2.xpose.msra.mxu0 0.0
      %2528 = vmatprep.subr.mxu0 0.0
      %2529 = vmatpush2.xpose.msra.mxu0 0.0
      %2530 = vmatprep.subr.mxu0 0.0
      %2531 = vmatpush2.xpose.msra.mxu0 0.0
      %2532 = vmatprep.subr.mxu0 0.0
      %2533 = vmatpush2.xpose.msra.mxu0 0.0
      %2534 = vmatprep.subr.mxu0 0.0
      %2535 = vmatpush2.xpose.msra.mxu0 0.0
      %2536 = vmatprep.subr.mxu0 0.0
      %2537 = vmatpush2.xpose.msra.mxu0 0.0
      %2538 = vmatprep.subr.mxu0 0.0
      %2539 = vmatpush2.xpose.msra.mxu0 0.0
      %2540 = vmatprep.subr.mxu0 0.0
      %2541 = vmatpush2.xpose.msra.mxu0 0.0
      %2542 = vmatprep.subr.mxu0 0.0
      %2543 = vmatpush2.xpose.msra.mxu0 0.0
      %2544 = vmatprep.subr.mxu0 0.0
      %2545 = vmatpush2.xpose.msra.mxu0 0.0
      %2546 = vmatprep.subr.mxu0 0.0
      %2547 = vmatpush2.xpose.msra.mxu0 0.0
      %2548 = vmatprep.subr.mxu0 0.0
      %2549 = vmatpush2.xpose.msra.mxu0 0.0
      %2550 = vmatprep.subr.mxu0 0.0
      %2551 = vmatpush2.xpose.msra.mxu0 0.0
      %2552 = vmatprep.subr.mxu0 0.0
      %2553 = vmatpush2.xpose.msra.mxu0 0.0
      %2554 = vmatprep.subr.mxu0 0.0
      %2555 = vmatpush2.xpose.msra.mxu0 0.0
      %2556 = vmatprep.mubr.f32.mxu0 0.0
      %2557 = vmatmul.mubr.f32.gmra.mxu0 %v2488
      %v2558 = vpop.f32.mrf.mxu0
      %v2559 = vadd.f32 %v1165, %v2558
      %v2560 = vpop.f32.mrf.mxu0
      %2561 = vdwg.mxu0
      %v2562 = vsel %vm1297, %v2559, -inf
      %2563 = vmax.xlane.f32.xlu0 %v2562
      %v2564 = vpop.xlane.xlu0 %2563
      %v2565 = vsub.f32 %v2559, %v2564
      %v2566 = vmul.f32 %v2565, 1.442695
      %v2567 = vpow.pop %v2566
      %v2568 = vsel %vm1297, %v2567, 0.0
      %2569 = vadd.xlane.f32.xlu0 %v2568
      %v2570 = vpop.xlane.xlu0 %2569
      %v2571 = vrcp.pop %v2570
      %v2572 = vmul.f32 %v2567, %v2571
      %2574 = vrot.lane.b32.xlu0 %v2321, 96
      %v2575 = vpop.permute.xlu0 %2574
      %v2578 = vsel %vm1297, %v2572, 0
      %2580 = vmatprep.subr.mxu0 0.0
      %2581 = vmatpush1.msra.mxu0 0.0
      %2582 = vmatprep.subr.mxu0 0.0
      %2583 = vmatpush1.msra.mxu0 0.0
      %2584 = vmatprep.subr.mxu0 0.0
      %2585 = vmatpush1.msra.mxu0 0.0
      %2586 = vmatprep.subr.mxu0 0.0
      %2587 = vmatpush1.msra.mxu0 0.0
      %2588 = vmatprep.subr.mxu0 0.0
      %2589 = vmatpush1.msra.mxu0 0.0
      %2590 = vmatprep.subr.mxu0 0.0
      %2591 = vmatpush1.msra.mxu0 0.0
      %2592 = vmatprep.subr.mxu0 0.0
      %2593 = vmatpush1.msra.mxu0 0.0
      %2594 = vmatprep.subr.mxu0 0.0
      %2595 = vmatpush1.msra.mxu0 0.0
      %2596 = vmatprep.subr.mxu0 0.0
      %2597 = vmatpush1.msra.mxu0 0.0
      %2598 = vmatprep.subr.mxu0 0.0
      %2599 = vmatpush1.msra.mxu0 0.0
      %2600 = vmatprep.subr.mxu0 0.0
      %2601 = vmatpush1.msra.mxu0 0.0
      %2602 = vmatprep.subr.mxu0 0.0
      %2603 = vmatpush1.msra.mxu0 0.0
      %2604 = vmatprep.subr.mxu0 0.0
      %2605 = vmatpush1.msra.mxu0 0.0
      %2606 = vmatprep.subr.mxu0 0.0
      %2607 = vmatpush1.msra.mxu0 0.0
      %2608 = vmatprep.subr.mxu0 0.0
      %2609 = vmatpush1.msra.mxu0 0.0
      %2610 = vmatprep.subr.mxu0 0.0
      %2611 = vmatpush1.msra.mxu0 %v2575
      %2612 = vmatprep.subr.mxu0 0.0
      %2613 = vmatpush2.msra.mxu0 0.0
      %2614 = vmatprep.subr.mxu0 0.0
      %2615 = vmatpush2.msra.mxu0 0.0
      %2616 = vmatprep.subr.mxu0 0.0
      %2617 = vmatpush2.msra.mxu0 0.0
      %2618 = vmatprep.subr.mxu0 0.0
      %2619 = vmatpush2.msra.mxu0 0.0
      %2620 = vmatprep.subr.mxu0 0.0
      %2621 = vmatpush2.msra.mxu0 0.0
      %2622 = vmatprep.subr.mxu0 0.0
      %2623 = vmatpush2.msra.mxu0 0.0
      %2624 = vmatprep.subr.mxu0 0.0
      %2625 = vmatpush2.msra.mxu0 0.0
      %2626 = vmatprep.subr.mxu0 0.0
      %2627 = vmatpush2.msra.mxu0 0.0
      %2628 = vmatprep.subr.mxu0 0.0
      %2629 = vmatpush2.msra.mxu0 0.0
      %2630 = vmatprep.subr.mxu0 0.0
      %2631 = vmatpush2.msra.mxu0 0.0
      %2632 = vmatprep.subr.mxu0 0.0
      %2633 = vmatpush2.msra.mxu0 0.0
      %2634 = vmatprep.subr.mxu0 0.0
      %2635 = vmatpush2.msra.mxu0 0.0
      %2636 = vmatprep.subr.mxu0 0.0
      %2637 = vmatpush2.msra.mxu0 0.0
      %2638 = vmatprep.subr.mxu0 0.0
      %2639 = vmatpush2.msra.mxu0 0.0
      %2640 = vmatprep.subr.mxu0 0.0
      %2641 = vmatpush2.msra.mxu0 0.0
      %2642 = vmatprep.subr.mxu0 0.0
      %2643 = vmatpush2.msra.mxu0 0.0
      %2644 = vmatprep.mubr.f32.mxu0 0.0
      %2645 = vmatmul.mubr.f32.gmra.mxu0 %v2578
      %v2646 = vpop.f32.mrf.mxu0
      %v2647 = vadd.f32 0.0, %v2646
      %v2648 = vpop.f32.mrf.mxu0
      %2649 = vdwg.mxu0
      %v2650 = vld [vmem:[#allocation3 + $0x38] sm:$0xff]
      %2651 = vrot.lane.b32.xlu0 %v2319, 64
      %v2652 = vpop.permute.xlu0 %2651
      %v2653 = vsel %vm1221, %v2652, 0
      %v2656 = vsel %vm1221, %v2650, 0
      %2658 = vmatprep.subr.mxu0 0.0
      %2659 = vmatpush1.xpose.msra.mxu0 0.0
      %2660 = vmatprep.subr.mxu0 0.0
      %2661 = vmatpush1.xpose.msra.mxu0 0.0
      %2662 = vmatprep.subr.mxu0 0.0
      %2663 = vmatpush1.xpose.msra.mxu0 0.0
      %2664 = vmatprep.subr.mxu0 0.0
      %2665 = vmatpush1.xpose.msra.mxu0 0.0
      %2666 = vmatprep.subr.mxu0 0.0
      %2667 = vmatpush1.xpose.msra.mxu0 0.0
      %2668 = vmatprep.subr.mxu0 0.0
      %2669 = vmatpush1.xpose.msra.mxu0 0.0
      %2670 = vmatprep.subr.mxu0 0.0
      %2671 = vmatpush1.xpose.msra.mxu0 0.0
      %2672 = vmatprep.subr.mxu0 0.0
      %2673 = vmatpush1.xpose.msra.mxu0 0.0
      %2674 = vmatprep.subr.mxu0 0.0
      %2675 = vmatpush1.xpose.msra.mxu0 0.0
      %2676 = vmatprep.subr.mxu0 0.0
      %2677 = vmatpush1.xpose.msra.mxu0 0.0
      %2678 = vmatprep.subr.mxu0 0.0
      %2679 = vmatpush1.xpose.msra.mxu0 0.0
      %2680 = vmatprep.subr.mxu0 0.0
      %2681 = vmatpush1.xpose.msra.mxu0 0.0
      %2682 = vmatprep.subr.mxu0 0.0
      %2683 = vmatpush1.xpose.msra.mxu0 0.0
      %2684 = vmatprep.subr.mxu0 0.0
      %2685 = vmatpush1.xpose.msra.mxu0 0.0
      %2686 = vmatprep.subr.mxu0 0.0
      %2687 = vmatpush1.xpose.msra.mxu0 0.0
      %2688 = vmatprep.subr.mxu0 0.0
      %2689 = vmatpush1.xpose.msra.mxu0 %v2656
      %2690 = vmatprep.subr.mxu0 0.0
      %2691 = vmatpush2.xpose.msra.mxu0 0.0
      %2692 = vmatprep.subr.mxu0 0.0
      %2693 = vmatpush2.xpose.msra.mxu0 0.0
      %2694 = vmatprep.subr.mxu0 0.0
      %2695 = vmatpush2.xpose.msra.mxu0 0.0
      %2696 = vmatprep.subr.mxu0 0.0
      %2697 = vmatpush2.xpose.msra.mxu0 0.0
      %2698 = vmatprep.subr.mxu0 0.0
      %2699 = vmatpush2.xpose.msra.mxu0 0.0
      %2700 = vmatprep.subr.mxu0 0.0
      %2701 = vmatpush2.xpose.msra.mxu0 0.0
      %2702 = vmatprep.subr.mxu0 0.0
      %2703 = vmatpush2.xpose.msra.mxu0 0.0
      %2704 = vmatprep.subr.mxu0 0.0
      %2705 = vmatpush2.xpose.msra.mxu0 0.0
      %2706 = vmatprep.subr.mxu0 0.0
      %2707 = vmatpush2.xpose.msra.mxu0 0.0
      %2708 = vmatprep.subr.mxu0 0.0
      %2709 = vmatpush2.xpose.msra.mxu0 0.0
      %2710 = vmatprep.subr.mxu0 0.0
      %2711 = vmatpush2.xpose.msra.mxu0 0.0
      %2712 = vmatprep.subr.mxu0 0.0
      %2713 = vmatpush2.xpose.msra.mxu0 0.0
      %2714 = vmatprep.subr.mxu0 0.0
      %2715 = vmatpush2.xpose.msra.mxu0 0.0
      %2716 = vmatprep.subr.mxu0 0.0
      %2717 = vmatpush2.xpose.msra.mxu0 0.0
      %2718 = vmatprep.subr.mxu0 0.0
      %2719 = vmatpush2.xpose.msra.mxu0 0.0
      %2720 = vmatprep.subr.mxu0 0.0
      %2721 = vmatpush2.xpose.msra.mxu0 0.0
      %2722 = vmatprep.mubr.f32.mxu0 0.0
      %2723 = vmatmul.mubr.f32.gmra.mxu0 %v2653
      %v2724 = vpop.f32.mrf.mxu0
      %v2725 = vadd.f32 %v1165, %v2724
      %v2726 = vpop.f32.mrf.mxu0
      %2727 = vdwg.mxu0
      %v2728 = vsel %vm1297, %v2725, -inf
      %2729 = vmax.xlane.f32.xlu0 %v2728
      %v2730 = vpop.xlane.xlu0 %2729
      %v2731 = vsub.f32 %v2725, %v2730
      %v2732 = vmul.f32 %v2731, 1.442695
      %v2733 = vpow.pop %v2732
      %v2734 = vsel %vm1297, %v2733, 0.0
      %2735 = vadd.xlane.f32.xlu0 %v2734
      %v2736 = vpop.xlane.xlu0 %2735
      %v2737 = vrcp.pop %v2736
      %v2738 = vmul.f32 %v2733, %v2737
      %2739 = vrot.lane.b32.xlu0 %v2321, 64
      %v2740 = vpop.permute.xlu0 %2739
      %v2743 = vsel %vm1297, %v2738, 0
      %2745 = vmatprep.subr.mxu0 0.0
      %2746 = vmatpush1.msra.mxu0 0.0
      %2747 = vmatprep.subr.mxu0 0.0
      %2748 = vmatpush1.msra.mxu0 0.0
      %2749 = vmatprep.subr.mxu0 0.0
      %2750 = vmatpush1.msra.mxu0 0.0
      %2751 = vmatprep.subr.mxu0 0.0
      %2752 = vmatpush1.msra.mxu0 0.0
      %2753 = vmatprep.subr.mxu0 0.0
      %2754 = vmatpush1.msra.mxu0 0.0
      %2755 = vmatprep.subr.mxu0 0.0
      %2756 = vmatpush1.msra.mxu0 0.0
      %2757 = vmatprep.subr.mxu0 0.0
      %2758 = vmatpush1.msra.mxu0 0.0
      %2759 = vmatprep.subr.mxu0 0.0
      %2760 = vmatpush1.msra.mxu0 0.0
      %2761 = vmatprep.subr.mxu0 0.0
      %2762 = vmatpush1.msra.mxu0 0.0
      %2763 = vmatprep.subr.mxu0 0.0
      %2764 = vmatpush1.msra.mxu0 0.0
      %2765 = vmatprep.subr.mxu0 0.0
      %2766 = vmatpush1.msra.mxu0 0.0
      %2767 = vmatprep.subr.mxu0 0.0
      %2768 = vmatpush1.msra.mxu0 0.0
      %2769 = vmatprep.subr.mxu0 0.0
      %2770 = vmatpush1.msra.mxu0 0.0
      %2771 = vmatprep.subr.mxu0 0.0
      %2772 = vmatpush1.msra.mxu0 0.0
      %2773 = vmatprep.subr.mxu0 0.0
      %2774 = vmatpush1.msra.mxu0 0.0
      %2775 = vmatprep.subr.mxu0 0.0
      %2776 = vmatpush1.msra.mxu0 %v2740
      %2777 = vmatprep.subr.mxu0 0.0
      %2778 = vmatpush2.msra.mxu0 0.0
      %2779 = vmatprep.subr.mxu0 0.0
      %2780 = vmatpush2.msra.mxu0 0.0
      %2781 = vmatprep.subr.mxu0 0.0
      %2782 = vmatpush2.msra.mxu0 0.0
      %2783 = vmatprep.subr.mxu0 0.0
      %2784 = vmatpush2.msra.mxu0 0.0
      %2785 = vmatprep.subr.mxu0 0.0
      %2786 = vmatpush2.msra.mxu0 0.0
      %2787 = vmatprep.subr.mxu0 0.0
      %2788 = vmatpush2.msra.mxu0 0.0
      %2789 = vmatprep.subr.mxu0 0.0
      %2790 = vmatpush2.msra.mxu0 0.0
      %2791 = vmatprep.subr.mxu0 0.0
      %2792 = vmatpush2.msra.mxu0 0.0
      %2793 = vmatprep.subr.mxu0 0.0
      %2794 = vmatpush2.msra.mxu0 0.0
      %2795 = vmatprep.subr.mxu0 0.0
      %2796 = vmatpush2.msra.mxu0 0.0
      %2797 = vmatprep.subr.mxu0 0.0
      %2798 = vmatpush2.msra.mxu0 0.0
      %2799 = vmatprep.subr.mxu0 0.0
      %2800 = vmatpush2.msra.mxu0 0.0
      %2801 = vmatprep.subr.mxu0 0.0
      %2802 = vmatpush2.msra.mxu0 0.0
      %2803 = vmatprep.subr.mxu0 0.0
      %2804 = vmatpush2.msra.mxu0 0.0
      %2805 = vmatprep.subr.mxu0 0.0
      %2806 = vmatpush2.msra.mxu0 0.0
      %2807 = vmatprep.subr.mxu0 0.0
      %2808 = vmatpush2.msra.mxu0 0.0
      %2809 = vmatprep.mubr.f32.mxu0 0.0
      %2810 = vmatmul.mubr.f32.gmra.mxu0 %v2743
      %v2811 = vpop.f32.mrf.mxu0
      %v2812 = vadd.f32 0.0, %v2811
      %v2813 = vpop.f32.mrf.mxu0
      %2814 = vdwg.mxu0
      %2815 = vrot.lane.b32.xlu0 %v2319, 32
      %v2816 = vpop.permute.xlu0 %2815
      %2817 = vrot.lane.b32.xlu0 %v2650, 96
      %v2818 = vpop.permute.xlu0 %2817
      %v2819 = vsel %vm1221, %v2816, 0
      %v2821 = vsel %vm1221, %v2818, 0
      %2823 = vmatprep.subr.mxu0 0.0
      %2824 = vmatpush1.xpose.msra.mxu0 0.0
      %2825 = vmatprep.subr.mxu0 0.0
      %2826 = vmatpush1.xpose.msra.mxu0 0.0
      %2827 = vmatprep.subr.mxu0 0.0
      %2828 = vmatpush1.xpose.msra.mxu0 0.0
      %2829 = vmatprep.subr.mxu0 0.0
      %2830 = vmatpush1.xpose.msra.mxu0 0.0
      %2831 = vmatprep.subr.mxu0 0.0
      %2832 = vmatpush1.xpose.msra.mxu0 0.0
      %2833 = vmatprep.subr.mxu0 0.0
      %2834 = vmatpush1.xpose.msra.mxu0 0.0
      %2835 = vmatprep.subr.mxu0 0.0
      %2836 = vmatpush1.xpose.msra.mxu0 0.0
      %2837 = vmatprep.subr.mxu0 0.0
      %2838 = vmatpush1.xpose.msra.mxu0 0.0
      %2839 = vmatprep.subr.mxu0 0.0
      %2840 = vmatpush1.xpose.msra.mxu0 0.0
      %2841 = vmatprep.subr.mxu0 0.0
      %2842 = vmatpush1.xpose.msra.mxu0 0.0
      %2843 = vmatprep.subr.mxu0 0.0
      %2844 = vmatpush1.xpose.msra.mxu0 0.0
      %2845 = vmatprep.subr.mxu0 0.0
      %2846 = vmatpush1.xpose.msra.mxu0 0.0
      %2847 = vmatprep.subr.mxu0 0.0
      %2848 = vmatpush1.xpose.msra.mxu0 0.0
      %2849 = vmatprep.subr.mxu0 0.0
      %2850 = vmatpush1.xpose.msra.mxu0 0.0
      %2851 = vmatprep.subr.mxu0 0.0
      %2852 = vmatpush1.xpose.msra.mxu0 0.0
      %2853 = vmatprep.subr.mxu0 0.0
      %2854 = vmatpush1.xpose.msra.mxu0 %v2821
      %2855 = vmatprep.subr.mxu0 0.0
      %2856 = vmatpush2.xpose.msra.mxu0 0.0
      %2857 = vmatprep.subr.mxu0 0.0
      %2858 = vmatpush2.xpose.msra.mxu0 0.0
      %2859 = vmatprep.subr.mxu0 0.0
      %2860 = vmatpush2.xpose.msra.mxu0 0.0
      %2861 = vmatprep.subr.mxu0 0.0
      %2862 = vmatpush2.xpose.msra.mxu0 0.0
      %2863 = vmatprep.subr.mxu0 0.0
      %2864 = vmatpush2.xpose.msra.mxu0 0.0
      %2865 = vmatprep.subr.mxu0 0.0
      %2866 = vmatpush2.xpose.msra.mxu0 0.0
      %2867 = vmatprep.subr.mxu0 0.0
      %2868 = vmatpush2.xpose.msra.mxu0 0.0
      %2869 = vmatprep.subr.mxu0 0.0
      %2870 = vmatpush2.xpose.msra.mxu0 0.0
      %2871 = vmatprep.subr.mxu0 0.0
      %2872 = vmatpush2.xpose.msra.mxu0 0.0
      %2873 = vmatprep.subr.mxu0 0.0
      %2874 = vmatpush2.xpose.msra.mxu0 0.0
      %2875 = vmatprep.subr.mxu0 0.0
      %2876 = vmatpush2.xpose.msra.mxu0 0.0
      %2877 = vmatprep.subr.mxu0 0.0
      %2878 = vmatpush2.xpose.msra.mxu0 0.0
      %2879 = vmatprep.subr.mxu0 0.0
      %2880 = vmatpush2.xpose.msra.mxu0 0.0
      %2881 = vmatprep.subr.mxu0 0.0
      %2882 = vmatpush2.xpose.msra.mxu0 0.0
      %2883 = vmatprep.subr.mxu0 0.0
      %2884 = vmatpush2.xpose.msra.mxu0 0.0
      %2885 = vmatprep.subr.mxu0 0.0
      %2886 = vmatpush2.xpose.msra.mxu0 0.0
      %2887 = vmatprep.mubr.f32.mxu0 0.0
      %2888 = vmatmul.mubr.f32.gmra.mxu0 %v2819
      %v2889 = vpop.f32.mrf.mxu0
      %v2890 = vadd.f32 %v1165, %v2889
      %v2891 = vpop.f32.mrf.mxu0
      %2892 = vdwg.mxu0
      %v2893 = vsel %vm1297, %v2890, -inf
      %2894 = vmax.xlane.f32.xlu0 %v2893
      %v2895 = vpop.xlane.xlu0 %2894
      %v2896 = vsub.f32 %v2890, %v2895
      %v2897 = vmul.f32 %v2896, 1.442695
      %v2898 = vpow.pop %v2897
      %v2899 = vsel %vm1297, %v2898, 0.0
      %2900 = vadd.xlane.f32.xlu0 %v2899
      %v2901 = vpop.xlane.xlu0 %2900
      %v2902 = vrcp.pop %v2901
      %v2903 = vmul.f32 %v2898, %v2902
      %2904 = vrot.lane.b32.xlu0 %v2321, 32
      %v2905 = vpop.permute.xlu0 %2904
      %v2908 = vsel %vm1297, %v2903, 0
      %2910 = vmatprep.subr.mxu0 0.0
      %2911 = vmatpush1.msra.mxu0 0.0
      %2912 = vmatprep.subr.mxu0 0.0
      %2913 = vmatpush1.msra.mxu0 0.0
      %2914 = vmatprep.subr.mxu0 0.0
      %2915 = vmatpush1.msra.mxu0 0.0
      %2916 = vmatprep.subr.mxu0 0.0
      %2917 = vmatpush1.msra.mxu0 0.0
      %2918 = vmatprep.subr.mxu0 0.0
      %2919 = vmatpush1.msra.mxu0 0.0
      %2920 = vmatprep.subr.mxu0 0.0
      %2921 = vmatpush1.msra.mxu0 0.0
      %2922 = vmatprep.subr.mxu0 0.0
      %2923 = vmatpush1.msra.mxu0 0.0
      %2924 = vmatprep.subr.mxu0 0.0
      %2925 = vmatpush1.msra.mxu0 0.0
      %2926 = vmatprep.subr.mxu0 0.0
      %2927 = vmatpush1.msra.mxu0 0.0
      %2928 = vmatprep.subr.mxu0 0.0
      %2929 = vmatpush1.msra.mxu0 0.0
      %2930 = vmatprep.subr.mxu0 0.0
      %2931 = vmatpush1.msra.mxu0 0.0
      %2932 = vmatprep.subr.mxu0 0.0
      %2933 = vmatpush1.msra.mxu0 0.0
      %2934 = vmatprep.subr.mxu0 0.0
      %2935 = vmatpush1.msra.mxu0 0.0
      %2936 = vmatprep.subr.mxu0 0.0
      %2937 = vmatpush1.msra.mxu0 0.0
      %2938 = vmatprep.subr.mxu0 0.0
      %2939 = vmatpush1.msra.mxu0 0.0
      %2940 = vmatprep.subr.mxu0 0.0
      %2941 = vmatpush1.msra.mxu0 %v2905
      %2942 = vmatprep.subr.mxu0 0.0
      %2943 = vmatpush2.msra.mxu0 0.0
      %2944 = vmatprep.subr.mxu0 0.0
      %2945 = vmatpush2.msra.mxu0 0.0
      %2946 = vmatprep.subr.mxu0 0.0
      %2947 = vmatpush2.msra.mxu0 0.0
      %2948 = vmatprep.subr.mxu0 0.0
      %2949 = vmatpush2.msra.mxu0 0.0
      %2950 = vmatprep.subr.mxu0 0.0
      %2951 = vmatpush2.msra.mxu0 0.0
      %2952 = vmatprep.subr.mxu0 0.0
      %2953 = vmatpush2.msra.mxu0 0.0
      %2954 = vmatprep.subr.mxu0 0.0
      %2955 = vmatpush2.msra.mxu0 0.0
      %2956 = vmatprep.subr.mxu0 0.0
      %2957 = vmatpush2.msra.mxu0 0.0
      %2958 = vmatprep.subr.mxu0 0.0
      %2959 = vmatpush2.msra.mxu0 0.0
      %2960 = vmatprep.subr.mxu0 0.0
      %2961 = vmatpush2.msra.mxu0 0.0
      %2962 = vmatprep.subr.mxu0 0.0
      %2963 = vmatpush2.msra.mxu0 0.0
      %2964 = vmatprep.subr.mxu0 0.0
      %2965 = vmatpush2.msra.mxu0 0.0
      %2966 = vmatprep.subr.mxu0 0.0
      %2967 = vmatpush2.msra.mxu0 0.0
      %2968 = vmatprep.subr.mxu0 0.0
      %2969 = vmatpush2.msra.mxu0 0.0
      %2970 = vmatprep.subr.mxu0 0.0
      %2971 = vmatpush2.msra.mxu0 0.0
      %2972 = vmatprep.subr.mxu0 0.0
      %2973 = vmatpush2.msra.mxu0 0.0
      %2974 = vmatprep.mubr.f32.mxu0 0.0
      %2975 = vmatmul.mubr.f32.gmra.mxu0 %v2908
      %v2976 = vpop.f32.mrf.mxu0
      %v2977 = vadd.f32 0.0, %v2976
      %v2978 = vpop.f32.mrf.mxu0
      %2979 = vdwg.mxu0
      %v2980 = vld [vmem:[#allocation3 + $0x48] sm:$0xff]
      %2981 = vrot.lane.b32.xlu0 %v2650, 64
      %v2982 = vpop.permute.xlu0 %2981
      %v2983 = vsel %vm1221, %v2320, 0
      %v2985 = vsel %vm1221, %v2982, 0
      %2987 = vmatprep.subr.mxu0 0.0
      %2988 = vmatpush1.xpose.msra.mxu0 0.0
      %2989 = vmatprep.subr.mxu0 0.0
      %2990 = vmatpush1.xpose.msra.mxu0 0.0
      %2991 = vmatprep.subr.mxu0 0.0
      %2992 = vmatpush1.xpose.msra.mxu0 0.0
      %2993 = vmatprep.subr.mxu0 0.0
      %2994 = vmatpush1.xpose.msra.mxu0 0.0
      %2995 = vmatprep.subr.mxu0 0.0
      %2996 = vmatpush1.xpose.msra.mxu0 0.0
      %2997 = vmatprep.subr.mxu0 0.0
      %2998 = vmatpush1.xpose.msra.mxu0 0.0
      %2999 = vmatprep.subr.mxu0 0.0
      %3000 = vmatpush1.xpose.msra.mxu0 0.0
      %3001 = vmatprep.subr.mxu0 0.0
      %3002 = vmatpush1.xpose.msra.mxu0 0.0
      %3003 = vmatprep.subr.mxu0 0.0
      %3004 = vmatpush1.xpose.msra.mxu0 0.0
      %3005 = vmatprep.subr.mxu0 0.0
      %3006 = vmatpush1.xpose.msra.mxu0 0.0
      %3007 = vmatprep.subr.mxu0 0.0
      %3008 = vmatpush1.xpose.msra.mxu0 0.0
      %3009 = vmatprep.subr.mxu0 0.0
      %3010 = vmatpush1.xpose.msra.mxu0 0.0
      %3011 = vmatprep.subr.mxu0 0.0
      %3012 = vmatpush1.xpose.msra.mxu0 0.0
      %3013 = vmatprep.subr.mxu0 0.0
      %3014 = vmatpush1.xpose.msra.mxu0 0.0
      %3015 = vmatprep.subr.mxu0 0.0
      %3016 = vmatpush1.xpose.msra.mxu0 0.0
      %3017 = vmatprep.subr.mxu0 0.0
      %3018 = vmatpush1.xpose.msra.mxu0 %v2985
      %3019 = vmatprep.subr.mxu0 0.0
      %3020 = vmatpush2.xpose.msra.mxu0 0.0
      %3021 = vmatprep.subr.mxu0 0.0
      %3022 = vmatpush2.xpose.msra.mxu0 0.0
      %3023 = vmatprep.subr.mxu0 0.0
      %3024 = vmatpush2.xpose.msra.mxu0 0.0
      %3025 = vmatprep.subr.mxu0 0.0
      %3026 = vmatpush2.xpose.msra.mxu0 0.0
      %3027 = vmatprep.subr.mxu0 0.0
      %3028 = vmatpush2.xpose.msra.mxu0 0.0
      %3029 = vmatprep.subr.mxu0 0.0
      %3030 = vmatpush2.xpose.msra.mxu0 0.0
      %3031 = vmatprep.subr.mxu0 0.0
      %3032 = vmatpush2.xpose.msra.mxu0 0.0
      %3033 = vmatprep.subr.mxu0 0.0
      %3034 = vmatpush2.xpose.msra.mxu0 0.0
      %3035 = vmatprep.subr.mxu0 0.0
      %3036 = vmatpush2.xpose.msra.mxu0 0.0
      %3037 = vmatprep.subr.mxu0 0.0
      %3038 = vmatpush2.xpose.msra.mxu0 0.0
      %3039 = vmatprep.subr.mxu0 0.0
      %3040 = vmatpush2.xpose.msra.mxu0 0.0
      %3041 = vmatprep.subr.mxu0 0.0
      %3042 = vmatpush2.xpose.msra.mxu0 0.0
      %3043 = vmatprep.subr.mxu0 0.0
      %3044 = vmatpush2.xpose.msra.mxu0 0.0
      %3045 = vmatprep.subr.mxu0 0.0
      %3046 = vmatpush2.xpose.msra.mxu0 0.0
      %3047 = vmatprep.subr.mxu0 0.0
      %3048 = vmatpush2.xpose.msra.mxu0 0.0
      %3049 = vmatprep.subr.mxu0 0.0
      %3050 = vmatpush2.xpose.msra.mxu0 0.0
      %3051 = vmatprep.mubr.f32.mxu0 0.0
      %3052 = vmatmul.mubr.f32.gmra.mxu0 %v2983
      %v3053 = vpop.f32.mrf.mxu0
      %v3054 = vadd.f32 %v1165, %v3053
      %v3055 = vpop.f32.mrf.mxu0
      %3056 = vdwg.mxu0
      %v3057 = vsel %vm1297, %v3054, -inf
      %3058 = vmax.xlane.f32.xlu0 %v3057
      %v3059 = vpop.xlane.xlu0 %3058
      %v3060 = vsub.f32 %v3054, %v3059
      %v3061 = vmul.f32 %v3060, 1.442695
      %v3062 = vpow.pop %v3061
      %v3063 = vsel %vm1297, %v3062, 0.0
      %3064 = vadd.xlane.f32.xlu0 %v3063
      %v3065 = vpop.xlane.xlu0 %3064
      %v3066 = vrcp.pop %v3065
      %v3067 = vmul.f32 %v3062, %v3066
      %v3069 = vsel %vm1297, %v3067, 0
      %3071 = vmatprep.subr.mxu0 0.0
      %3072 = vmatpush1.msra.mxu0 0.0
      %3073 = vmatprep.subr.mxu0 0.0
      %3074 = vmatpush1.msra.mxu0 0.0
      %3075 = vmatprep.subr.mxu0 0.0
      %3076 = vmatpush1.msra.mxu0 0.0
      %3077 = vmatprep.subr.mxu0 0.0
      %3078 = vmatpush1.msra.mxu0 0.0
      %3079 = vmatprep.subr.mxu0 0.0
      %3080 = vmatpush1.msra.mxu0 0.0
      %3081 = vmatprep.subr.mxu0 0.0
      %3082 = vmatpush1.msra.mxu0 0.0
      %3083 = vmatprep.subr.mxu0 0.0
      %3084 = vmatpush1.msra.mxu0 0.0
      %3085 = vmatprep.subr.mxu0 0.0
      %3086 = vmatpush1.msra.mxu0 0.0
      %3087 = vmatprep.subr.mxu0 0.0
      %3088 = vmatpush1.msra.mxu0 0.0
      %3089 = vmatprep.subr.mxu0 0.0
      %3090 = vmatpush1.msra.mxu0 0.0
      %3091 = vmatprep.subr.mxu0 0.0
      %3092 = vmatpush1.msra.mxu0 0.0
      %3093 = vmatprep.subr.mxu0 0.0
      %3094 = vmatpush1.msra.mxu0 0.0
      %3095 = vmatprep.subr.mxu0 0.0
      %3096 = vmatpush1.msra.mxu0 0.0
      %3097 = vmatprep.subr.mxu0 0.0
      %3098 = vmatpush1.msra.mxu0 0.0
      %3099 = vmatprep.subr.mxu0 0.0
      %3100 = vmatpush1.msra.mxu0 0.0
      %3101 = vmatprep.subr.mxu0 0.0
      %3102 = vmatpush1.msra.mxu0 %v2980
      %3103 = vmatprep.subr.mxu0 0.0
      %3104 = vmatpush2.msra.mxu0 0.0
      %3105 = vmatprep.subr.mxu0 0.0
      %3106 = vmatpush2.msra.mxu0 0.0
      %3107 = vmatprep.subr.mxu0 0.0
      %3108 = vmatpush2.msra.mxu0 0.0
      %3109 = vmatprep.subr.mxu0 0.0
      %3110 = vmatpush2.msra.mxu0 0.0
      %3111 = vmatprep.subr.mxu0 0.0
      %3112 = vmatpush2.msra.mxu0 0.0
      %3113 = vmatprep.subr.mxu0 0.0
      %3114 = vmatpush2.msra.mxu0 0.0
      %3115 = vmatprep.subr.mxu0 0.0
      %3116 = vmatpush2.msra.mxu0 0.0
      %3117 = vmatprep.subr.mxu0 0.0
      %3118 = vmatpush2.msra.mxu0 0.0
      %3119 = vmatprep.subr.mxu0 0.0
      %3120 = vmatpush2.msra.mxu0 0.0
      %3121 = vmatprep.subr.mxu0 0.0
      %3122 = vmatpush2.msra.mxu0 0.0
      %3123 = vmatprep.subr.mxu0 0.0
      %3124 = vmatpush2.msra.mxu0 0.0
      %3125 = vmatprep.subr.mxu0 0.0
      %3126 = vmatpush2.msra.mxu0 0.0
      %3127 = vmatprep.subr.mxu0 0.0
      %3128 = vmatpush2.msra.mxu0 0.0
      %3129 = vmatprep.subr.mxu0 0.0
      %3130 = vmatpush2.msra.mxu0 0.0
      %3131 = vmatprep.subr.mxu0 0.0
      %3132 = vmatpush2.msra.mxu0 0.0
      %3133 = vmatprep.subr.mxu0 0.0
      %3134 = vmatpush2.msra.mxu0 0.0
      %3135 = vmatprep.mubr.f32.mxu0 0.0
      %3136 = vmatmul.mubr.f32.gmra.mxu0 %v3069
      %v3137 = vpop.f32.mrf.mxu0
      %v3138 = vadd.f32 0.0, %v3137
      %v3139 = vpop.f32.mrf.mxu0
      %3140 = vdwg.mxu0
      %3141 = vrot.lane.b32.xlu0 %v2320, 96
      %v3142 = vpop.permute.xlu0 %3141
      %3143 = vrot.lane.b32.xlu0 %v2650, 32
      %v3144 = vpop.permute.xlu0 %3143
      %v3145 = vsel %vm1221, %v3142, 0
      %v3147 = vsel %vm1221, %v3144, 0
      %3149 = vmatprep.subr.mxu0 0.0
      %3150 = vmatpush1.xpose.msra.mxu0 0.0
      %3151 = vmatprep.subr.mxu0 0.0
      %3152 = vmatpush1.xpose.msra.mxu0 0.0
      %3153 = vmatprep.subr.mxu0 0.0
      %3154 = vmatpush1.xpose.msra.mxu0 0.0
      %3155 = vmatprep.subr.mxu0 0.0
      %3156 = vmatpush1.xpose.msra.mxu0 0.0
      %3157 = vmatprep.subr.mxu0 0.0
      %3158 = vmatpush1.xpose.msra.mxu0 0.0
      %3159 = vmatprep.subr.mxu0 0.0
      %3160 = vmatpush1.xpose.msra.mxu0 0.0
      %3161 = vmatprep.subr.mxu0 0.0
      %3162 = vmatpush1.xpose.msra.mxu0 0.0
      %3163 = vmatprep.subr.mxu0 0.0
      %3164 = vmatpush1.xpose.msra.mxu0 0.0
      %3165 = vmatprep.subr.mxu0 0.0
      %3166 = vmatpush1.xpose.msra.mxu0 0.0
      %3167 = vmatprep.subr.mxu0 0.0
      %3168 = vmatpush1.xpose.msra.mxu0 0.0
      %3169 = vmatprep.subr.mxu0 0.0
      %3170 = vmatpush1.xpose.msra.mxu0 0.0
      %3171 = vmatprep.subr.mxu0 0.0
      %3172 = vmatpush1.xpose.msra.mxu0 0.0
      %3173 = vmatprep.subr.mxu0 0.0
      %3174 = vmatpush1.xpose.msra.mxu0 0.0
      %3175 = vmatprep.subr.mxu0 0.0
      %3176 = vmatpush1.xpose.msra.mxu0 0.0
      %3177 = vmatprep.subr.mxu0 0.0
      %3178 = vmatpush1.xpose.msra.mxu0 0.0
      %3179 = vmatprep.subr.mxu0 0.0
      %3180 = vmatpush1.xpose.msra.mxu0 %v3147
      %3181 = vmatprep.subr.mxu0 0.0
      %3182 = vmatpush2.xpose.msra.mxu0 0.0
      %3183 = vmatprep.subr.mxu0 0.0
      %3184 = vmatpush2.xpose.msra.mxu0 0.0
      %3185 = vmatprep.subr.mxu0 0.0
      %3186 = vmatpush2.xpose.msra.mxu0 0.0
      %3187 = vmatprep.subr.mxu0 0.0
      %3188 = vmatpush2.xpose.msra.mxu0 0.0
      %3189 = vmatprep.subr.mxu0 0.0
      %3190 = vmatpush2.xpose.msra.mxu0 0.0
      %3191 = vmatprep.subr.mxu0 0.0
      %3192 = vmatpush2.xpose.msra.mxu0 0.0
      %3193 = vmatprep.subr.mxu0 0.0
      %3194 = vmatpush2.xpose.msra.mxu0 0.0
      %3195 = vmatprep.subr.mxu0 0.0
      %3196 = vmatpush2.xpose.msra.mxu0 0.0
      %3197 = vmatprep.subr.mxu0 0.0
      %3198 = vmatpush2.xpose.msra.mxu0 0.0
      %3199 = vmatprep.subr.mxu0 0.0
      %3200 = vmatpush2.xpose.msra.mxu0 0.0
      %3201 = vmatprep.subr.mxu0 0.0
      %3202 = vmatpush2.xpose.msra.mxu0 0.0
      %3203 = vmatprep.subr.mxu0 0.0
      %3204 = vmatpush2.xpose.msra.mxu0 0.0
      %3205 = vmatprep.subr.mxu0 0.0
      %3206 = vmatpush2.xpose.msra.mxu0 0.0
      %3207 = vmatprep.subr.mxu0 0.0
      %3208 = vmatpush2.xpose.msra.mxu0 0.0
      %3209 = vmatprep.subr.mxu0 0.0
      %3210 = vmatpush2.xpose.msra.mxu0 0.0
      %3211 = vmatprep.subr.mxu0 0.0
      %3212 = vmatpush2.xpose.msra.mxu0 0.0
      %3213 = vmatprep.mubr.f32.mxu0 0.0
      %3214 = vmatmul.mubr.f32.gmra.mxu0 %v3145
      %v3215 = vpop.f32.mrf.mxu0
      %v3216 = vadd.f32 %v1165, %v3215
      %v3217 = vpop.f32.mrf.mxu0
      %3218 = vdwg.mxu0
      %v3219 = vsel %vm1297, %v3216, -inf
      %3220 = vmax.xlane.f32.xlu0 %v3219
      %v3221 = vpop.xlane.xlu0 %3220
      %v3222 = vsub.f32 %v3216, %v3221
      %v3223 = vmul.f32 %v3222, 1.442695
      %v3224 = vpow.pop %v3223
      %v3225 = vsel %vm1297, %v3224, 0.0
      %3226 = vadd.xlane.f32.xlu0 %v3225
      %v3227 = vpop.xlane.xlu0 %3226
      %v3228 = vrcp.pop %v3227
      %v3229 = vmul.f32 %v3224, %v3228
      %3231 = vrot.lane.b32.xlu0 %v2980, 96
      %v3232 = vpop.permute.xlu0 %3231
      %v3235 = vsel %vm1297, %v3229, 0
      %3237 = vmatprep.subr.mxu0 0.0
      %3238 = vmatpush1.msra.mxu0 0.0
      %3239 = vmatprep.subr.mxu0 0.0
      %3240 = vmatpush1.msra.mxu0 0.0
      %3241 = vmatprep.subr.mxu0 0.0
      %3242 = vmatpush1.msra.mxu0 0.0
      %3243 = vmatprep.subr.mxu0 0.0
      %3244 = vmatpush1.msra.mxu0 0.0
      %3245 = vmatprep.subr.mxu0 0.0
      %3246 = vmatpush1.msra.mxu0 0.0
      %3247 = vmatprep.subr.mxu0 0.0
      %3248 = vmatpush1.msra.mxu0 0.0
      %3249 = vmatprep.subr.mxu0 0.0
      %3250 = vmatpush1.msra.mxu0 0.0
      %3251 = vmatprep.subr.mxu0 0.0
      %3252 = vmatpush1.msra.mxu0 0.0
      %3253 = vmatprep.subr.mxu0 0.0
      %3254 = vmatpush1.msra.mxu0 0.0
      %3255 = vmatprep.subr.mxu0 0.0
      %3256 = vmatpush1.msra.mxu0 0.0
      %3257 = vmatprep.subr.mxu0 0.0
      %3258 = vmatpush1.msra.mxu0 0.0
      %3259 = vmatprep.subr.mxu0 0.0
      %3260 = vmatpush1.msra.mxu0 0.0
      %3261 = vmatprep.subr.mxu0 0.0
      %3262 = vmatpush1.msra.mxu0 0.0
      %3263 = vmatprep.subr.mxu0 0.0
      %3264 = vmatpush1.msra.mxu0 0.0
      %3265 = vmatprep.subr.mxu0 0.0
      %3266 = vmatpush1.msra.mxu0 0.0
      %3267 = vmatprep.subr.mxu0 0.0
      %3268 = vmatpush1.msra.mxu0 %v3232
      %3269 = vmatprep.subr.mxu0 0.0
      %3270 = vmatpush2.msra.mxu0 0.0
      %3271 = vmatprep.subr.mxu0 0.0
      %3272 = vmatpush2.msra.mxu0 0.0
      %3273 = vmatprep.subr.mxu0 0.0
      %3274 = vmatpush2.msra.mxu0 0.0
      %3275 = vmatprep.subr.mxu0 0.0
      %3276 = vmatpush2.msra.mxu0 0.0
      %3277 = vmatprep.subr.mxu0 0.0
      %3278 = vmatpush2.msra.mxu0 0.0
      %3279 = vmatprep.subr.mxu0 0.0
      %3280 = vmatpush2.msra.mxu0 0.0
      %3281 = vmatprep.subr.mxu0 0.0
      %3282 = vmatpush2.msra.mxu0 0.0
      %3283 = vmatprep.subr.mxu0 0.0
      %3284 = vmatpush2.msra.mxu0 0.0
      %3285 = vmatprep.subr.mxu0 0.0
      %3286 = vmatpush2.msra.mxu0 0.0
      %3287 = vmatprep.subr.mxu0 0.0
      %3288 = vmatpush2.msra.mxu0 0.0
      %3289 = vmatprep.subr.mxu0 0.0
      %3290 = vmatpush2.msra.mxu0 0.0
      %3291 = vmatprep.subr.mxu0 0.0
      %3292 = vmatpush2.msra.mxu0 0.0
      %3293 = vmatprep.subr.mxu0 0.0
      %3294 = vmatpush2.msra.mxu0 0.0
      %3295 = vmatprep.subr.mxu0 0.0
      %3296 = vmatpush2.msra.mxu0 0.0
      %3297 = vmatprep.subr.mxu0 0.0
      %3298 = vmatpush2.msra.mxu0 0.0
      %3299 = vmatprep.subr.mxu0 0.0
      %3300 = vmatpush2.msra.mxu0 0.0
      %3301 = vmatprep.mubr.f32.mxu0 0.0
      %3302 = vmatmul.mubr.f32.gmra.mxu0 %v3235
      %v3303 = vpop.f32.mrf.mxu0
      %v3304 = vadd.f32 0.0, %v3303
      %v3305 = vpop.f32.mrf.mxu0
      %3306 = vdwg.mxu0
      %3308 = vrot.lane.b32.xlu0 %v2647, 32
      %v3309 = vpop.permute.xlu0 %3308
      %3312 = vrot.lane.b32.xlu0 %v2812, 64
      %v3313 = vpop.permute.xlu0 %3312
      %3316 = vrot.lane.b32.xlu0 %v2977, 96
      %v3317 = vpop.permute.xlu0 %3316
      %3320 = vrot.lane.b32.xlu0 %v3304, 32
      %v3321 = vpop.permute.xlu0 %3320
      %v3323 = vsel %vm1221, %v2481, %v3309
      %v3324 = vsel %vm732, %v3323, %v3313
      %v3325 = vsel %vm2223, %v3324, %v3317
      %v3326 = vsel %vm1221, %v3138, %v3321
      %v3327 = vld [vmem:[#allocation2 + $0x10] sm:$0xff]
      %v3328 = vld [vmem:[#allocation2 + $0x18] sm:$0xff]
      %v3330 = vsel %vm732, %v3326, 0
      %3332 = vmatprep.subr.mxu0 %v1197
      %3333 = vmatpush1.msra.mxu0 %v1196
      %3334 = vmatprep.subr.mxu0 %v1195
      %3335 = vmatpush1.msra.mxu0 %v1194
      %3336 = vmatprep.subr.mxu0 %v1193
      %3337 = vmatpush1.msra.mxu0 %v1192
      %3338 = vmatprep.subr.mxu0 %v1191
      %3339 = vmatpush1.msra.mxu0 %v1190
      %3340 = vmatprep.subr.mxu0 %v1189
      %3341 = vmatpush1.msra.mxu0 %v1188
      %3342 = vmatprep.subr.mxu0 %v1187
      %3343 = vmatpush1.msra.mxu0 %v1186
      %3344 = vmatprep.subr.mxu0 %v1185
      %3345 = vmatpush1.msra.mxu0 %v1184
      %3346 = vmatprep.subr.mxu0 %v1183
      %3347 = vmatpush1.msra.mxu0 %v1182
      %3348 = vmatprep.subr.mxu0 %v1181
      %3349 = vmatpush1.msra.mxu0 %v1180
      %3350 = vmatprep.subr.mxu0 %v1179
      %3351 = vmatpush1.msra.mxu0 %v1178
      %3352 = vmatprep.subr.mxu0 %v1177
      %3353 = vmatpush1.msra.mxu0 %v1176
      %3354 = vmatprep.subr.mxu0 %v1175
      %3355 = vmatpush1.msra.mxu0 %v1174
      %3356 = vmatprep.subr.mxu0 %v1173
      %3357 = vmatpush1.msra.mxu0 %v1172
      %3358 = vmatprep.subr.mxu0 %v1171
      %3359 = vmatpush1.msra.mxu0 %v1170
      %3360 = vmatprep.subr.mxu0 %v1169
      %3361 = vmatpush1.msra.mxu0 %v1168
      %3362 = vmatprep.subr.mxu0 %v1167
      %3363 = vmatpush1.msra.mxu0 %v1166
      %3364 = vmatprep.subr.mxu0 0.0
      %3365 = vmatpush2.msra.mxu0 0.0
      %3366 = vmatprep.subr.mxu0 0.0
      %3367 = vmatpush2.msra.mxu0 0.0
      %3368 = vmatprep.subr.mxu0 0.0
      %3369 = vmatpush2.msra.mxu0 0.0
      %3370 = vmatprep.subr.mxu0 0.0
      %3371 = vmatpush2.msra.mxu0 0.0
      %3372 = vmatprep.subr.mxu0 0.0
      %3373 = vmatpush2.msra.mxu0 0.0
      %3374 = vmatprep.subr.mxu0 0.0
      %3375 = vmatpush2.msra.mxu0 0.0
      %3376 = vmatprep.subr.mxu0 0.0
      %3377 = vmatpush2.msra.mxu0 0.0
      %3378 = vmatprep.subr.mxu0 0.0
      %3379 = vmatpush2.msra.mxu0 0.0
      %3380 = vmatprep.subr.mxu0 %v1213
      %3381 = vmatpush2.msra.mxu0 %v1212
      %3382 = vmatprep.subr.mxu0 %v1211
      %3383 = vmatpush2.msra.mxu0 %v1210
      %3384 = vmatprep.subr.mxu0 %v1209
      %3385 = vmatpush2.msra.mxu0 %v1208
      %3386 = vmatprep.subr.mxu0 %v1207
      %3387 = vmatpush2.msra.mxu0 %v1206
      %3388 = vmatprep.subr.mxu0 %v1205
      %3389 = vmatpush2.msra.mxu0 %v1204
      %3390 = vmatprep.subr.mxu0 %v1203
      %3391 = vmatpush2.msra.mxu0 %v1202
      %3392 = vmatprep.subr.mxu0 %v1201
      %3393 = vmatpush2.msra.mxu0 %v1200
      %3394 = vmatprep.subr.mxu0 %v1199
      %3395 = vmatpush2.msra.mxu0 %v1198
      %3396 = vmatprep.mubr.f32.mxu0 %v3330
      %3397 = vmatmul.mubr.f32.gmra.mxu0 %v3325
      %v3398 = vpop.f32.mrf.mxu0
      %v3399 = vadd.f32 0.0, %v3398
      %v3400 = vpop.f32.mrf.mxu0
      %v3401 = vadd.f32 0.0, %v3400
      %3402 = vdwg.mxu0
      %v3403 = vadd.f32 %v3327, %v3399
      %v3404 = vadd.f32 %v3328, %v3401
      %v3405 = vadd.f32 %v3403, %v2308
      %v3406 = vadd.f32 %v3404, %v2312
      %3407 = vst [vmem:[#allocation2 + $0x10] sm:$0xff] %v3405
      %3408 = vst.msk [vmem:[#allocation2 + $0x18] sm:$0xff] %vm732, %v3406
      %v3409 = vld [vmem:[#allocation2] sm:$0xff]
      %v3410 = vld [vmem:[#allocation2 + $0x8] sm:$0xff]
      %v3411 = vld [vmem:[#allocation2 + $0x10] sm:$0xff]
      %v3412 = vld [vmem:[#allocation2 + $0x18] sm:$0xff]
      %v3413 = vld [vmem:[%s690] sm:$0x3]
      %v3414 = vld [vmem:[%s694] sm:$0x3]
      %v3415 = vsel %vm732, %v3410, 0.0
      %v3416 = vadd.f32 %v3409, %v3415
      %3417 = vadd.xlane.f32.xlu0 %v3416
      %v3418 = vpop.xlane.xlu0 %3417
      %v3419 = vsel %vm732, %v3412, 0.0
      %v3420 = vadd.f32 %v3411, %v3419
      %3421 = vadd.xlane.f32.xlu0 %v3420
      %v3422 = vpop.xlane.xlu0 %3421
      %v3423 = vmul.f32 %v3418, %v741
      %v3424 = vmul.f32 %v3422, %v741
      %v3425 = vsub.f32 %v3409, %v3423
      %v3426 = vsub.f32 %v3410, %v3423
      %v3427 = vsub.f32 %v3411, %v3424
      %v3428 = vsub.f32 %v3412, %v3424
      %v3429 = vmul.f32 %v3425, %v3425
      %v3430 = vmul.f32 %v3426, %v3426
      %v3431 = vmul.f32 %v3427, %v3427
      %v3432 = vmul.f32 %v3428, %v3428
      %v3433 = vsel %vm732, %v3430, 0.0
      %v3434 = vadd.f32 %v3429, %v3433
      %3435 = vadd.xlane.f32.xlu0 %v3434
      %v3436 = vpop.xlane.xlu0 %3435
      %v3437 = vsel %vm732, %v3432, 0.0
      %v3438 = vadd.f32 %v3431, %v3437
      %3439 = vadd.xlane.f32.xlu0 %v3438
      %v3440 = vpop.xlane.xlu0 %3439
      %v3441 = vmul.f32 %v3436, %v741
      %v3442 = vmul.f32 %v3440, %v741
      %v3443 = vadd.f32 %v3441, 1e-05
      %v3444 = vadd.f32 %v3442, 1e-05
      %v3445 = vrsqrt.pop %v3443
      %v3446 = vrsqrt.pop %v3444
      %v3447 = vmul.f32 %v3425, %v3445
      %v3448 = vmul.f32 %v3426, %v3445
      %v3449 = vmul.f32 %v3427, %v3446
      %v3450 = vmul.f32 %v3428, %v3446
      %v3452 = vlaneseq
      %v3453 = vshrl.u32 %v3452, 7
      %v3454 = vsub.s32 0, %v3453
      %v3455 = vrot.slane %v3413, %v3454
      %v3456 = vlaneseq
      %v3457 = vshrl.u32 %v3456, 7
      %v3458 = vsub.s32 1, %v3457
      %v3459 = vrot.slane %v3413, %v3458
      %v3462 = vmul.f32 %v3447, %v3455
      %v3463 = vmul.f32 %v3448, %v3459
      %v3464 = vmul.f32 %v3449, %v3455
      %v3465 = vmul.f32 %v3450, %v3459
      %v3467 = vlaneseq
      %v3468 = vshrl.u32 %v3467, 7
      %v3469 = vsub.s32 0, %v3468
      %v3470 = vrot.slane %v3414, %v3469
      %v3471 = vlaneseq
      %v3472 = vshrl.u32 %v3471, 7
      %v3473 = vsub.s32 1, %v3472
      %v3474 = vrot.slane %v3414, %v3473
      %v3477 = vadd.f32 %v3462, %v3470
      %v3478 = vadd.f32 %v3463, %v3474
      %v3479 = vadd.f32 %v3464, %v3470
      %v3480 = vadd.f32 %v3465, %v3474
      %v3481 = vld [vmem:[%s699] sm:$0xff]
      %v3482 = vld [vmem:[%s699 + $0x8] sm:$0xff]
      %v3483 = vld [vmem:[%s699 + $0x10] sm:$0xff]
      %v3484 = vld [vmem:[%s699 + $0x18] sm:$0xff]
      %v3485 = vld [vmem:[%s699 + $0x20] sm:$0xff]
      %v3486 = vld [vmem:[%s699 + $0x28] sm:$0xff]
      %v3487 = vld [vmem:[%s699 + $0x30] sm:$0xff]
      %v3488 = vld [vmem:[%s699 + $0x38] sm:$0xff]
      %v3489 = vld [vmem:[%s699 + $0x40] sm:$0xff]
      %v3490 = vld [vmem:[%s699 + $0x48] sm:$0xff]
      %v3491 = vld [vmem:[%s699 + $0x50] sm:$0xff]
      %v3492 = vld [vmem:[%s699 + $0x58] sm:$0xff]
      %v3493 = vld [vmem:[%s699 + $0x60] sm:$0xff]
      %v3494 = vld [vmem:[%s699 + $0x68] sm:$0xff]
      %v3495 = vld [vmem:[%s699 + $0x70] sm:$0xff]
      %v3496 = vld [vmem:[%s699 + $0x78] sm:$0xff]
      %v3497 = vld [vmem:[%s699 + $0x80] sm:$0xff]
      %v3498 = vld [vmem:[%s699 + $0x88] sm:$0xff]
      %v3499 = vld [vmem:[%s699 + $0x90] sm:$0xff]
      %v3500 = vld [vmem:[%s699 + $0x98] sm:$0xff]
      %v3501 = vld [vmem:[%s699 + $0xa0] sm:$0xff]
      %v3502 = vld [vmem:[%s699 + $0xa8] sm:$0xff]
      %v3503 = vld [vmem:[%s699 + $0xb0] sm:$0xff]
      %v3504 = vld [vmem:[%s699 + $0xb8] sm:$0xff]
      %v3505 = vld [vmem:[%s699 + $0xc0] sm:$0xff]
      %v3506 = vld [vmem:[%s699 + $0xc8] sm:$0xff]
      %v3507 = vld [vmem:[%s699 + $0xd0] sm:$0xff]
      %v3508 = vld [vmem:[%s699 + $0xd8] sm:$0xff]
      %v3509 = vld [vmem:[%s699 + $0xe0] sm:$0xff]
      %v3510 = vld [vmem:[%s699 + $0xe8] sm:$0xff]
      %v3511 = vld [vmem:[%s699 + $0xf0] sm:$0xff]
      %v3512 = vld [vmem:[%s699 + $0xf8] sm:$0xff]
      %v3513 = vld [vmem:[%s699 + $0x100] sm:$0xff]
      %v3514 = vld [vmem:[%s699 + $0x108] sm:$0xff]
      %v3515 = vld [vmem:[%s699 + $0x110] sm:$0xff]
      %v3516 = vld [vmem:[%s699 + $0x118] sm:$0xff]
      %v3517 = vld [vmem:[%s699 + $0x120] sm:$0xff]
      %v3518 = vld [vmem:[%s699 + $0x128] sm:$0xff]
      %v3519 = vld [vmem:[%s699 + $0x130] sm:$0xff]
      %v3520 = vld [vmem:[%s699 + $0x138] sm:$0xff]
      %v3521 = vld [vmem:[%s699 + $0x140] sm:$0xff]
      %v3522 = vld [vmem:[%s699 + $0x148] sm:$0xff]
      %v3523 = vld [vmem:[%s699 + $0x150] sm:$0xff]
      %v3524 = vld [vmem:[%s699 + $0x158] sm:$0xff]
      %v3525 = vld [vmem:[%s699 + $0x160] sm:$0xff]
      %v3526 = vld [vmem:[%s699 + $0x168] sm:$0xff]
      %v3527 = vld [vmem:[%s699 + $0x170] sm:$0xff]
      %v3528 = vld [vmem:[%s699 + $0x178] sm:$0xff]
      %v3529 = vld [vmem:[%s699 + $0x180] sm:$0xff]
      %v3530 = vld [vmem:[%s699 + $0x188] sm:$0xff]
      %v3531 = vld [vmem:[%s699 + $0x190] sm:$0xff]
      %v3532 = vld [vmem:[%s699 + $0x198] sm:$0xff]
      %v3533 = vld [vmem:[%s699 + $0x1a0] sm:$0xff]
      %v3534 = vld [vmem:[%s699 + $0x1a8] sm:$0xff]
      %v3535 = vld [vmem:[%s699 + $0x1b0] sm:$0xff]
      %v3536 = vld [vmem:[%s699 + $0x1b8] sm:$0xff]
      %v3537 = vld [vmem:[%s699 + $0x1c0] sm:$0xff]
      %v3538 = vld [vmem:[%s699 + $0x1c8] sm:$0xff]
      %v3539 = vld [vmem:[%s699 + $0x1d0] sm:$0xff]
      %v3540 = vld [vmem:[%s699 + $0x1d8] sm:$0xff]
      %v3541 = vld [vmem:[%s699 + $0x1e0] sm:$0xff]
      %v3542 = vld [vmem:[%s699 + $0x1e8] sm:$0xff]
      %v3543 = vld [vmem:[%s699 + $0x1f0] sm:$0xff]
      %v3544 = vld [vmem:[%s699 + $0x1f8] sm:$0xff]
      %v3545 = vld [vmem:[%s699 + $0x200] sm:$0xff]
      %v3546 = vld [vmem:[%s699 + $0x208] sm:$0xff]
      %v3547 = vld [vmem:[%s699 + $0x210] sm:$0xff]
      %v3548 = vld [vmem:[%s699 + $0x218] sm:$0xff]
      %v3549 = vld [vmem:[%s699 + $0x220] sm:$0xff]
      %v3550 = vld [vmem:[%s699 + $0x228] sm:$0xff]
      %v3551 = vld [vmem:[%s699 + $0x230] sm:$0xff]
      %v3552 = vld [vmem:[%s699 + $0x238] sm:$0xff]
      %v3553 = vld [vmem:[%s699 + $0x240] sm:$0xff]
      %v3554 = vld [vmem:[%s699 + $0x248] sm:$0xff]
      %v3555 = vld [vmem:[%s699 + $0x250] sm:$0xff]
      %v3556 = vld [vmem:[%s699 + $0x258] sm:$0xff]
      %v3557 = vld [vmem:[%s699 + $0x260] sm:$0xff]
      %v3558 = vld [vmem:[%s699 + $0x268] sm:$0xff]
      %v3559 = vld [vmem:[%s699 + $0x270] sm:$0xff]
      %v3560 = vld [vmem:[%s699 + $0x278] sm:$0xff]
      %v3561 = vld [vmem:[%s699 + $0x280] sm:$0xff]
      %v3562 = vld [vmem:[%s699 + $0x288] sm:$0xff]
      %v3563 = vld [vmem:[%s699 + $0x290] sm:$0xff]
      %v3564 = vld [vmem:[%s699 + $0x298] sm:$0xff]
      %v3565 = vld [vmem:[%s699 + $0x2a0] sm:$0xff]
      %v3566 = vld [vmem:[%s699 + $0x2a8] sm:$0xff]
      %v3567 = vld [vmem:[%s699 + $0x2b0] sm:$0xff]
      %v3568 = vld [vmem:[%s699 + $0x2b8] sm:$0xff]
      %v3569 = vld [vmem:[%s699 + $0x2c0] sm:$0xff]
      %v3570 = vld [vmem:[%s699 + $0x2c8] sm:$0xff]
      %v3571 = vld [vmem:[%s699 + $0x2d0] sm:$0xff]
      %v3572 = vld [vmem:[%s699 + $0x2d8] sm:$0xff]
      %v3573 = vld [vmem:[%s699 + $0x2e0] sm:$0xff]
      %v3574 = vld [vmem:[%s699 + $0x2e8] sm:$0xff]
      %v3575 = vld [vmem:[%s699 + $0x2f0] sm:$0xff]
      %v3576 = vld [vmem:[%s699 + $0x2f8] sm:$0xff]
      %v3577 = vld [vmem:[%s699 + $0x300] sm:$0xff]
      %v3578 = vld [vmem:[%s699 + $0x308] sm:$0xff]
      %v3579 = vld [vmem:[%s699 + $0x310] sm:$0xff]
      %v3580 = vld [vmem:[%s699 + $0x318] sm:$0xff]
      %v3581 = vld [vmem:[%s699 + $0x320] sm:$0xff]
      %v3582 = vld [vmem:[%s699 + $0x328] sm:$0xff]
      %v3583 = vld [vmem:[%s699 + $0x330] sm:$0xff]
      %v3584 = vld [vmem:[%s699 + $0x338] sm:$0xff]
      %v3585 = vld [vmem:[%s699 + $0x340] sm:$0xff]
      %v3586 = vld [vmem:[%s699 + $0x348] sm:$0xff]
      %v3587 = vld [vmem:[%s699 + $0x350] sm:$0xff]
      %v3588 = vld [vmem:[%s699 + $0x358] sm:$0xff]
      %v3589 = vld [vmem:[%s699 + $0x360] sm:$0xff]
      %v3590 = vld [vmem:[%s699 + $0x368] sm:$0xff]
      %v3591 = vld [vmem:[%s699 + $0x370] sm:$0xff]
      %v3592 = vld [vmem:[%s699 + $0x378] sm:$0xff]
      %v3593 = vld [vmem:[%s699 + $0x380] sm:$0xff]
      %v3594 = vld [vmem:[%s699 + $0x388] sm:$0xff]
      %v3595 = vld [vmem:[%s699 + $0x390] sm:$0xff]
      %v3596 = vld [vmem:[%s699 + $0x398] sm:$0xff]
      %v3597 = vld [vmem:[%s699 + $0x3a0] sm:$0xff]
      %v3598 = vld [vmem:[%s699 + $0x3a8] sm:$0xff]
      %v3599 = vld [vmem:[%s699 + $0x3b0] sm:$0xff]
      %v3600 = vld [vmem:[%s699 + $0x3b8] sm:$0xff]
      %v3601 = vld [vmem:[%s699 + $0x3c0] sm:$0xff]
      %v3602 = vld [vmem:[%s699 + $0x3c8] sm:$0xff]
      %v3603 = vld [vmem:[%s699 + $0x3d0] sm:$0xff]
      %v3604 = vld [vmem:[%s699 + $0x3d8] sm:$0xff]
      %v3605 = vld [vmem:[%s699 + $0x3e0] sm:$0xff]
      %v3606 = vld [vmem:[%s699 + $0x3e8] sm:$0xff]
      %v3607 = vld [vmem:[%s699 + $0x3f0] sm:$0xff]
      %v3608 = vld [vmem:[%s699 + $0x3f8] sm:$0xff]
      %v3609 = vld [vmem:[%s699 + $0x400] sm:$0xff]
      %v3610 = vld [vmem:[%s699 + $0x408] sm:$0xff]
      %v3611 = vld [vmem:[%s699 + $0x410] sm:$0xff]
      %v3612 = vld [vmem:[%s699 + $0x418] sm:$0xff]
      %v3613 = vld [vmem:[%s699 + $0x420] sm:$0xff]
      %v3614 = vld [vmem:[%s699 + $0x428] sm:$0xff]
      %v3615 = vld [vmem:[%s699 + $0x430] sm:$0xff]
      %v3616 = vld [vmem:[%s699 + $0x438] sm:$0xff]
      %v3617 = vld [vmem:[%s699 + $0x440] sm:$0xff]
      %v3618 = vld [vmem:[%s699 + $0x448] sm:$0xff]
      %v3619 = vld [vmem:[%s699 + $0x450] sm:$0xff]
      %v3620 = vld [vmem:[%s699 + $0x458] sm:$0xff]
      %v3621 = vld [vmem:[%s699 + $0x460] sm:$0xff]
      %v3622 = vld [vmem:[%s699 + $0x468] sm:$0xff]
      %v3623 = vld [vmem:[%s699 + $0x470] sm:$0xff]
      %v3624 = vld [vmem:[%s699 + $0x478] sm:$0xff]
      %v3625 = vld [vmem:[%s703] sm:$0x3f]
      %v3627 = vlaneseq
      %v3628 = vshrl.u32 %v3627, 7
      %v3629 = vsub.s32 0, %v3628
      %v3630 = vrot.slane %v3625, %v3629
      %v3631 = vlaneseq
      %v3632 = vshrl.u32 %v3631, 7
      %v3633 = vsub.s32 1, %v3632
      %v3634 = vrot.slane %v3625, %v3633
      %v3635 = vlaneseq
      %v3636 = vshrl.u32 %v3635, 7
      %v3637 = vsub.s32 2, %v3636
      %v3638 = vrot.slane %v3625, %v3637
      %v3639 = vlaneseq
      %v3640 = vshrl.u32 %v3639, 7
      %v3641 = vsub.s32 3, %v3640
      %v3642 = vrot.slane %v3625, %v3641
      %v3643 = vlaneseq
      %v3644 = vshrl.u32 %v3643, 7
      %v3645 = vsub.s32 4, %v3644
      %v3646 = vrot.slane %v3625, %v3645
      %v3647 = vlaneseq
      %v3648 = vshrl.u32 %v3647, 7
      %v3649 = vsub.s32 5, %v3648
      %v3650 = vrot.slane %v3625, %v3649
      %v3658 = vsel %vm732, %v3478, 0
      %v3661 = vsel %vm732, %v3480, 0
      %3663 = vmatprep.subr.mxu0 %v3572
      %3664 = vmatpush1.msra.mxu0 %v3571
      %3665 = vmatprep.subr.mxu0 %v3566
      %3666 = vmatpush1.msra.mxu0 %v3565
      %3667 = vmatprep.subr.mxu0 %v3560
      %3668 = vmatpush1.msra.mxu0 %v3559
      %3669 = vmatprep.subr.mxu0 %v3554
      %3670 = vmatpush1.msra.mxu0 %v3553
      %3671 = vmatprep.subr.mxu0 %v3548
      %3672 = vmatpush1.msra.mxu0 %v3547
      %3673 = vmatprep.subr.mxu0 %v3542
      %3674 = vmatpush1.msra.mxu0 %v3541
      %3675 = vmatprep.subr.mxu0 %v3536
      %3676 = vmatpush1.msra.mxu0 %v3535
      %3677 = vmatprep.subr.mxu0 %v3530
      %3678 = vmatpush1.msra.mxu0 %v3529
      %3679 = vmatprep.subr.mxu0 %v3524
      %3680 = vmatpush1.msra.mxu0 %v3523
      %3681 = vmatprep.subr.mxu0 %v3518
      %3682 = vmatpush1.msra.mxu0 %v3517
      %3683 = vmatprep.subr.mxu0 %v3512
      %3684 = vmatpush1.msra.mxu0 %v3511
      %3685 = vmatprep.subr.mxu0 %v3506
      %3686 = vmatpush1.msra.mxu0 %v3505
      %3687 = vmatprep.subr.mxu0 %v3500
      %3688 = vmatpush1.msra.mxu0 %v3499
      %3689 = vmatprep.subr.mxu0 %v3494
      %3690 = vmatpush1.msra.mxu0 %v3493
      %3691 = vmatprep.subr.mxu0 %v3488
      %3692 = vmatpush1.msra.mxu0 %v3487
      %3693 = vmatprep.subr.mxu0 %v3482
      %3694 = vmatpush1.msra.mxu0 %v3481
      %3695 = vmatprep.subr.mxu0 0.0
      %3696 = vmatpush2.msra.mxu0 0.0
      %3697 = vmatprep.subr.mxu0 0.0
      %3698 = vmatpush2.msra.mxu0 0.0
      %3699 = vmatprep.subr.mxu0 0.0
      %3700 = vmatpush2.msra.mxu0 0.0
      %3701 = vmatprep.subr.mxu0 0.0
      %3702 = vmatpush2.msra.mxu0 0.0
      %3703 = vmatprep.subr.mxu0 0.0
      %3704 = vmatpush2.msra.mxu0 0.0
      %3705 = vmatprep.subr.mxu0 0.0
      %3706 = vmatpush2.msra.mxu0 0.0
      %3707 = vmatprep.subr.mxu0 0.0
      %3708 = vmatpush2.msra.mxu0 0.0
      %3709 = vmatprep.subr.mxu0 0.0
      %3710 = vmatpush2.msra.mxu0 0.0
      %3711 = vmatprep.subr.mxu0 %v3620
      %3712 = vmatpush2.msra.mxu0 %v3619
      %3713 = vmatprep.subr.mxu0 %v3614
      %3714 = vmatpush2.msra.mxu0 %v3613
      %3715 = vmatprep.subr.mxu0 %v3608
      %3716 = vmatpush2.msra.mxu0 %v3607
      %3717 = vmatprep.subr.mxu0 %v3602
      %3718 = vmatpush2.msra.mxu0 %v3601
      %3719 = vmatprep.subr.mxu0 %v3596
      %3720 = vmatpush2.msra.mxu0 %v3595
      %3721 = vmatprep.subr.mxu0 %v3590
      %3722 = vmatpush2.msra.mxu0 %v3589
      %3723 = vmatprep.subr.mxu0 %v3584
      %3724 = vmatpush2.msra.mxu0 %v3583
      %3725 = vmatprep.subr.mxu0 %v3578
      %3726 = vmatpush2.msra.mxu0 %v3577
      %3727 = vmatprep.mubr.f32.mxu0 %v3658
      %3728 = vmatmul.mubr.f32.gmra.mxu0 %v3477
      %v3729 = vpop.f32.mrf.mxu0
      %v3730 = vadd.f32 %v3630, %v3729
      %v3731 = vpop.f32.mrf.mxu0
      %v3732 = vadd.f32 %v3634, %v3731
      %3733 = vmatprep.mubr.f32.mxu0 %v3661
      %3734 = vmatmul.mubr.f32.gmra.mxu0 %v3479
      %v3735 = vpop.f32.mrf.mxu0
      %v3736 = vadd.f32 %v3630, %v3735
      %v3737 = vpop.f32.mrf.mxu0
      %v3738 = vadd.f32 %v3634, %v3737
      %3739 = vdwg.mxu0
      %3740 = vmatprep.subr.mxu0 %v3574
      %3741 = vmatpush1.msra.mxu0 %v3573
      %3742 = vmatprep.subr.mxu0 %v3568
      %3743 = vmatpush1.msra.mxu0 %v3567
      %3744 = vmatprep.subr.mxu0 %v3562
      %3745 = vmatpush1.msra.mxu0 %v3561
      %3746 = vmatprep.subr.mxu0 %v3556
      %3747 = vmatpush1.msra.mxu0 %v3555
      %3748 = vmatprep.subr.mxu0 %v3550
      %3749 = vmatpush1.msra.mxu0 %v3549
      %3750 = vmatprep.subr.mxu0 %v3544
      %3751 = vmatpush1.msra.mxu0 %v3543
      %3752 = vmatprep.subr.mxu0 %v3538
      %3753 = vmatpush1.msra.mxu0 %v3537
      %3754 = vmatprep.subr.mxu0 %v3532
      %3755 = vmatpush1.msra.mxu0 %v3531
      %3756 = vmatprep.subr.mxu0 %v3526
      %3757 = vmatpush1.msra.mxu0 %v3525
      %3758 = vmatprep.subr.mxu0 %v3520
      %3759 = vmatpush1.msra.mxu0 %v3519
      %3760 = vmatprep.subr.mxu0 %v3514
      %3761 = vmatpush1.msra.mxu0 %v3513
      %3762 = vmatprep.subr.mxu0 %v3508
      %3763 = vmatpush1.msra.mxu0 %v3507
      %3764 = vmatprep.subr.mxu0 %v3502
      %3765 = vmatpush1.msra.mxu0 %v3501
      %3766 = vmatprep.subr.mxu0 %v3496
      %3767 = vmatpush1.msra.mxu0 %v3495
      %3768 = vmatprep.subr.mxu0 %v3490
      %3769 = vmatpush1.msra.mxu0 %v3489
      %3770 = vmatprep.subr.mxu0 %v3484
      %3771 = vmatpush1.msra.mxu0 %v3483
      %3772 = vmatprep.subr.mxu0 0.0
      %3773 = vmatpush2.msra.mxu0 0.0
      %3774 = vmatprep.subr.mxu0 0.0
      %3775 = vmatpush2.msra.mxu0 0.0
      %3776 = vmatprep.subr.mxu0 0.0
      %3777 = vmatpush2.msra.mxu0 0.0
      %3778 = vmatprep.subr.mxu0 0.0
      %3779 = vmatpush2.msra.mxu0 0.0
      %3780 = vmatprep.subr.mxu0 0.0
      %3781 = vmatpush2.msra.mxu0 0.0
      %3782 = vmatprep.subr.mxu0 0.0
      %3783 = vmatpush2.msra.mxu0 0.0
      %3784 = vmatprep.subr.mxu0 0.0
      %3785 = vmatpush2.msra.mxu0 0.0
      %3786 = vmatprep.subr.mxu0 0.0
      %3787 = vmatpush2.msra.mxu0 0.0
      %3788 = vmatprep.subr.mxu0 %v3622
      %3789 = vmatpush2.msra.mxu0 %v3621
      %3790 = vmatprep.subr.mxu0 %v3616
      %3791 = vmatpush2.msra.mxu0 %v3615
      %3792 = vmatprep.subr.mxu0 %v3610
      %3793 = vmatpush2.msra.mxu0 %v3609
      %3794 = vmatprep.subr.mxu0 %v3604
      %3795 = vmatpush2.msra.mxu0 %v3603
      %3796 = vmatprep.subr.mxu0 %v3598
      %3797 = vmatpush2.msra.mxu0 %v3597
      %3798 = vmatprep.subr.mxu0 %v3592
      %3799 = vmatpush2.msra.mxu0 %v3591
      %3800 = vmatprep.subr.mxu0 %v3586
      %3801 = vmatpush2.msra.mxu0 %v3585
      %3802 = vmatprep.subr.mxu0 %v3580
      %3803 = vmatpush2.msra.mxu0 %v3579
      %3804 = vmatprep.mubr.f32.mxu0 %v3658
      %3805 = vmatmul.mubr.f32.gmra.mxu0 %v3477
      %v3806 = vpop.f32.mrf.mxu0
      %v3807 = vadd.f32 %v3638, %v3806
      %v3808 = vpop.f32.mrf.mxu0
      %v3809 = vadd.f32 %v3642, %v3808
      %3810 = vmatprep.mubr.f32.mxu0 %v3661
      %3811 = vmatmul.mubr.f32.gmra.mxu0 %v3479
      %v3812 = vpop.f32.mrf.mxu0
      %v3813 = vadd.f32 %v3638, %v3812
      %v3814 = vpop.f32.mrf.mxu0
      %v3815 = vadd.f32 %v3642, %v3814
      %3816 = vdwg.mxu0
      %3817 = vmatprep.subr.mxu0 %v3576
      %3818 = vmatpush1.msra.mxu0 %v3575
      %3819 = vmatprep.subr.mxu0 %v3570
      %3820 = vmatpush1.msra.mxu0 %v3569
      %3821 = vmatprep.subr.mxu0 %v3564
      %3822 = vmatpush1.msra.mxu0 %v3563
      %3823 = vmatprep.subr.mxu0 %v3558
      %3824 = vmatpush1.msra.mxu0 %v3557
      %3825 = vmatprep.subr.mxu0 %v3552
      %3826 = vmatpush1.msra.mxu0 %v3551
      %3827 = vmatprep.subr.mxu0 %v3546
      %3828 = vmatpush1.msra.mxu0 %v3545
      %3829 = vmatprep.subr.mxu0 %v3540
      %3830 = vmatpush1.msra.mxu0 %v3539
      %3831 = vmatprep.subr.mxu0 %v3534
      %3832 = vmatpush1.msra.mxu0 %v3533
      %3833 = vmatprep.subr.mxu0 %v3528
      %3834 = vmatpush1.msra.mxu0 %v3527
      %3835 = vmatprep.subr.mxu0 %v3522
      %3836 = vmatpush1.msra.mxu0 %v3521
      %3837 = vmatprep.subr.mxu0 %v3516
      %3838 = vmatpush1.msra.mxu0 %v3515
      %3839 = vmatprep.subr.mxu0 %v3510
      %3840 = vmatpush1.msra.mxu0 %v3509
      %3841 = vmatprep.subr.mxu0 %v3504
      %3842 = vmatpush1.msra.mxu0 %v3503
      %3843 = vmatprep.subr.mxu0 %v3498
      %3844 = vmatpush1.msra.mxu0 %v3497
      %3845 = vmatprep.subr.mxu0 %v3492
      %3846 = vmatpush1.msra.mxu0 %v3491
      %3847 = vmatprep.subr.mxu0 %v3486
      %3848 = vmatpush1.msra.mxu0 %v3485
      %3849 = vmatprep.subr.mxu0 0.0
      %3850 = vmatpush2.msra.mxu0 0.0
      %3851 = vmatprep.subr.mxu0 0.0
      %3852 = vmatpush2.msra.mxu0 0.0
      %3853 = vmatprep.subr.mxu0 0.0
      %3854 = vmatpush2.msra.mxu0 0.0
      %3855 = vmatprep.subr.mxu0 0.0
      %3856 = vmatpush2.msra.mxu0 0.0
      %3857 = vmatprep.subr.mxu0 0.0
      %3858 = vmatpush2.msra.mxu0 0.0
      %3859 = vmatprep.subr.mxu0 0.0
      %3860 = vmatpush2.msra.mxu0 0.0
      %3861 = vmatprep.subr.mxu0 0.0
      %3862 = vmatpush2.msra.mxu0 0.0
      %3863 = vmatprep.subr.mxu0 0.0
      %3864 = vmatpush2.msra.mxu0 0.0
      %3865 = vmatprep.subr.mxu0 %v3624
      %3866 = vmatpush2.msra.mxu0 %v3623
      %3867 = vmatprep.subr.mxu0 %v3618
      %3868 = vmatpush2.msra.mxu0 %v3617
      %3869 = vmatprep.subr.mxu0 %v3612
      %3870 = vmatpush2.msra.mxu0 %v3611
      %3871 = vmatprep.subr.mxu0 %v3606
      %3872 = vmatpush2.msra.mxu0 %v3605
      %3873 = vmatprep.subr.mxu0 %v3600
      %3874 = vmatpush2.msra.mxu0 %v3599
      %3875 = vmatprep.subr.mxu0 %v3594
      %3876 = vmatpush2.msra.mxu0 %v3593
      %3877 = vmatprep.subr.mxu0 %v3588
      %3878 = vmatpush2.msra.mxu0 %v3587
      %3879 = vmatprep.subr.mxu0 %v3582
      %3880 = vmatpush2.msra.mxu0 %v3581
      %3881 = vmatprep.mubr.f32.mxu0 %v3658
      %3882 = vmatmul.mubr.f32.gmra.mxu0 %v3477
      %v3883 = vpop.f32.mrf.mxu0
      %v3884 = vadd.f32 %v3646, %v3883
      %v3885 = vpop.f32.mrf.mxu0
      %v3886 = vadd.f32 %v3650, %v3885
      %3887 = vmatprep.mubr.f32.mxu0 %v3661
      %3888 = vmatmul.mubr.f32.gmra.mxu0 %v3479
      %v3889 = vpop.f32.mrf.mxu0
      %v3890 = vadd.f32 %v3646, %v3889
      %v3891 = vpop.f32.mrf.mxu0
      %v3892 = vadd.f32 %v3650, %v3891
      %3893 = vdwg.mxu0
      %v3894 = vmax.f32 %v3730, 0.0
      %v3895 = vmax.f32 %v3732, 0.0
      %v3896 = vmax.f32 %v3807, 0.0
      %v3897 = vmax.f32 %v3809, 0.0
      %v3898 = vmax.f32 %v3884, 0.0
      %v3899 = vmax.f32 %v3886, 0.0
      %v3900 = vmax.f32 %v3736, 0.0
      %v3901 = vmax.f32 %v3738, 0.0
      %v3902 = vmax.f32 %v3813, 0.0
      %v3903 = vmax.f32 %v3815, 0.0
      %v3904 = vmax.f32 %v3890, 0.0
      %v3905 = vmax.f32 %v3892, 0.0
      %v3906 = vld [vmem:[%s708] sm:$0xff]
      %v3907 = vld [vmem:[%s708 + $0x8] sm:$0xff]
      %v3908 = vld [vmem:[%s708 + $0x10] sm:$0xff]
      %v3909 = vld [vmem:[%s708 + $0x18] sm:$0xff]
      %v3910 = vld [vmem:[%s708 + $0x20] sm:$0xff]
      %v3911 = vld [vmem:[%s708 + $0x28] sm:$0xff]
      %v3912 = vld [vmem:[%s708 + $0x30] sm:$0xff]
      %v3913 = vld [vmem:[%s708 + $0x38] sm:$0xff]
      %v3914 = vld [vmem:[%s708 + $0x40] sm:$0xff]
      %v3915 = vld [vmem:[%s708 + $0x48] sm:$0xff]
      %v3916 = vld [vmem:[%s708 + $0x50] sm:$0xff]
      %v3917 = vld [vmem:[%s708 + $0x58] sm:$0xff]
      %v3918 = vld [vmem:[%s708 + $0x60] sm:$0xff]
      %v3919 = vld [vmem:[%s708 + $0x68] sm:$0xff]
      %v3920 = vld [vmem:[%s708 + $0x70] sm:$0xff]
      %v3921 = vld [vmem:[%s708 + $0x78] sm:$0xff]
      %v3922 = vld [vmem:[%s708 + $0x80] sm:$0xff]
      %v3923 = vld [vmem:[%s708 + $0x88] sm:$0xff]
      %v3924 = vld [vmem:[%s708 + $0x90] sm:$0xff]
      %v3925 = vld [vmem:[%s708 + $0x98] sm:$0xff]
      %v3926 = vld [vmem:[%s708 + $0xa0] sm:$0xff]
      %v3927 = vld [vmem:[%s708 + $0xa8] sm:$0xff]
      %v3928 = vld [vmem:[%s708 + $0xb0] sm:$0xff]
      %v3929 = vld [vmem:[%s708 + $0xb8] sm:$0xff]
      %v3930 = vld [vmem:[%s708 + $0xc0] sm:$0xff]
      %v3931 = vld [vmem:[%s708 + $0xc8] sm:$0xff]
      %v3932 = vld [vmem:[%s708 + $0xd0] sm:$0xff]
      %v3933 = vld [vmem:[%s708 + $0xd8] sm:$0xff]
      %v3934 = vld [vmem:[%s708 + $0xe0] sm:$0xff]
      %v3935 = vld [vmem:[%s708 + $0xe8] sm:$0xff]
      %v3936 = vld [vmem:[%s708 + $0xf0] sm:$0xff]
      %v3937 = vld [vmem:[%s708 + $0xf8] sm:$0xff]
      %v3938 = vld [vmem:[%s708 + $0x100] sm:$0xff]
      %v3939 = vld [vmem:[%s708 + $0x108] sm:$0xff]
      %v3940 = vld [vmem:[%s708 + $0x110] sm:$0xff]
      %v3941 = vld [vmem:[%s708 + $0x118] sm:$0xff]
      %v3942 = vld [vmem:[%s708 + $0x120] sm:$0xff]
      %v3943 = vld [vmem:[%s708 + $0x128] sm:$0xff]
      %v3944 = vld [vmem:[%s708 + $0x130] sm:$0xff]
      %v3945 = vld [vmem:[%s708 + $0x138] sm:$0xff]
      %v3946 = vld [vmem:[%s708 + $0x140] sm:$0xff]
      %v3947 = vld [vmem:[%s708 + $0x148] sm:$0xff]
      %v3948 = vld [vmem:[%s708 + $0x150] sm:$0xff]
      %v3949 = vld [vmem:[%s708 + $0x158] sm:$0xff]
      %v3950 = vld [vmem:[%s708 + $0x160] sm:$0xff]
      %v3951 = vld [vmem:[%s708 + $0x168] sm:$0xff]
      %v3952 = vld [vmem:[%s708 + $0x170] sm:$0xff]
      %v3953 = vld [vmem:[%s708 + $0x178] sm:$0xff]
      %v3954 = vld [vmem:[%s708 + $0x180] sm:$0xff]
      %v3955 = vld [vmem:[%s708 + $0x188] sm:$0xff]
      %v3956 = vld [vmem:[%s708 + $0x190] sm:$0xff]
      %v3957 = vld [vmem:[%s708 + $0x198] sm:$0xff]
      %v3958 = vld [vmem:[%s708 + $0x1a0] sm:$0xff]
      %v3959 = vld [vmem:[%s708 + $0x1a8] sm:$0xff]
      %v3960 = vld [vmem:[%s708 + $0x1b0] sm:$0xff]
      %v3961 = vld [vmem:[%s708 + $0x1b8] sm:$0xff]
      %v3962 = vld [vmem:[%s708 + $0x1c0] sm:$0xff]
      %v3963 = vld [vmem:[%s708 + $0x1c8] sm:$0xff]
      %v3964 = vld [vmem:[%s708 + $0x1d0] sm:$0xff]
      %v3965 = vld [vmem:[%s708 + $0x1d8] sm:$0xff]
      %v3966 = vld [vmem:[%s708 + $0x1e0] sm:$0xff]
      %v3967 = vld [vmem:[%s708 + $0x1e8] sm:$0xff]
      %v3968 = vld [vmem:[%s708 + $0x1f0] sm:$0xff]
      %v3969 = vld [vmem:[%s708 + $0x1f8] sm:$0xff]
      %v3970 = vld [vmem:[%s708 + $0x200] sm:$0xff]
      %v3971 = vld [vmem:[%s708 + $0x208] sm:$0xff]
      %v3972 = vld [vmem:[%s708 + $0x210] sm:$0xff]
      %v3973 = vld [vmem:[%s708 + $0x218] sm:$0xff]
      %v3974 = vld [vmem:[%s708 + $0x220] sm:$0xff]
      %v3975 = vld [vmem:[%s708 + $0x228] sm:$0xff]
      %v3976 = vld [vmem:[%s708 + $0x230] sm:$0xff]
      %v3977 = vld [vmem:[%s708 + $0x238] sm:$0xff]
      %v3978 = vld [vmem:[%s708 + $0x240] sm:$0xff]
      %v3979 = vld [vmem:[%s708 + $0x248] sm:$0xff]
      %v3980 = vld [vmem:[%s708 + $0x250] sm:$0xff]
      %v3981 = vld [vmem:[%s708 + $0x258] sm:$0xff]
      %v3982 = vld [vmem:[%s708 + $0x260] sm:$0xff]
      %v3983 = vld [vmem:[%s708 + $0x268] sm:$0xff]
      %v3984 = vld [vmem:[%s708 + $0x270] sm:$0xff]
      %v3985 = vld [vmem:[%s708 + $0x278] sm:$0xff]
      %v3986 = vld [vmem:[%s708 + $0x280] sm:$0xff]
      %v3987 = vld [vmem:[%s708 + $0x288] sm:$0xff]
      %v3988 = vld [vmem:[%s708 + $0x290] sm:$0xff]
      %v3989 = vld [vmem:[%s708 + $0x298] sm:$0xff]
      %v3990 = vld [vmem:[%s708 + $0x2a0] sm:$0xff]
      %v3991 = vld [vmem:[%s708 + $0x2a8] sm:$0xff]
      %v3992 = vld [vmem:[%s708 + $0x2b0] sm:$0xff]
      %v3993 = vld [vmem:[%s708 + $0x2b8] sm:$0xff]
      %v3994 = vld [vmem:[%s708 + $0x2c0] sm:$0xff]
      %v3995 = vld [vmem:[%s708 + $0x2c8] sm:$0xff]
      %v3996 = vld [vmem:[%s708 + $0x2d0] sm:$0xff]
      %v3997 = vld [vmem:[%s708 + $0x2d8] sm:$0xff]
      %v3998 = vld [vmem:[%s708 + $0x2e0] sm:$0xff]
      %v3999 = vld [vmem:[%s708 + $0x2e8] sm:$0xff]
      %v4000 = vld [vmem:[%s708 + $0x2f0] sm:$0xff]
      %v4001 = vld [vmem:[%s708 + $0x2f8] sm:$0xff]
      %v4002 = vld [vmem:[%s708 + $0x300] sm:$0xff]
      %v4003 = vld [vmem:[%s708 + $0x308] sm:$0xff]
      %v4004 = vld [vmem:[%s708 + $0x310] sm:$0xff]
      %v4005 = vld [vmem:[%s708 + $0x318] sm:$0xff]
      %v4006 = vld [vmem:[%s708 + $0x320] sm:$0xff]
      %v4007 = vld [vmem:[%s708 + $0x328] sm:$0xff]
      %v4008 = vld [vmem:[%s708 + $0x330] sm:$0xff]
      %v4009 = vld [vmem:[%s708 + $0x338] sm:$0xff]
      %v4010 = vld [vmem:[%s708 + $0x340] sm:$0xff]
      %v4011 = vld [vmem:[%s708 + $0x348] sm:$0xff]
      %v4012 = vld [vmem:[%s708 + $0x350] sm:$0xff]
      %v4013 = vld [vmem:[%s708 + $0x358] sm:$0xff]
      %v4014 = vld [vmem:[%s708 + $0x360] sm:$0xff]
      %v4015 = vld [vmem:[%s708 + $0x368] sm:$0xff]
      %v4016 = vld [vmem:[%s708 + $0x370] sm:$0xff]
      %v4017 = vld [vmem:[%s708 + $0x378] sm:$0xff]
      %v4018 = vld [vmem:[%s708 + $0x380] sm:$0xff]
      %v4019 = vld [vmem:[%s708 + $0x388] sm:$0xff]
      %v4020 = vld [vmem:[%s708 + $0x390] sm:$0xff]
      %v4021 = vld [vmem:[%s708 + $0x398] sm:$0xff]
      %v4022 = vld [vmem:[%s708 + $0x3a0] sm:$0xff]
      %v4023 = vld [vmem:[%s708 + $0x3a8] sm:$0xff]
      %v4024 = vld [vmem:[%s708 + $0x3b0] sm:$0xff]
      %v4025 = vld [vmem:[%s708 + $0x3b8] sm:$0xff]
      %v4026 = vld [vmem:[%s708 + $0x3c0] sm:$0xff]
      %v4027 = vld [vmem:[%s708 + $0x3c8] sm:$0xff]
      %v4028 = vld [vmem:[%s708 + $0x3d0] sm:$0xff]
      %v4029 = vld [vmem:[%s708 + $0x3d8] sm:$0xff]
      %v4030 = vld [vmem:[%s708 + $0x3e0] sm:$0xff]
      %v4031 = vld [vmem:[%s708 + $0x3e8] sm:$0xff]
      %v4032 = vld [vmem:[%s708 + $0x3f0] sm:$0xff]
      %v4033 = vld [vmem:[%s708 + $0x3f8] sm:$0xff]
      %v4034 = vld [vmem:[%s708 + $0x400] sm:$0xff]
      %v4035 = vld [vmem:[%s708 + $0x408] sm:$0xff]
      %v4036 = vld [vmem:[%s708 + $0x410] sm:$0xff]
      %v4037 = vld [vmem:[%s708 + $0x418] sm:$0xff]
      %v4038 = vld [vmem:[%s708 + $0x420] sm:$0xff]
      %v4039 = vld [vmem:[%s708 + $0x428] sm:$0xff]
      %v4040 = vld [vmem:[%s708 + $0x430] sm:$0xff]
      %v4041 = vld [vmem:[%s708 + $0x438] sm:$0xff]
      %v4042 = vld [vmem:[%s708 + $0x440] sm:$0xff]
      %v4043 = vld [vmem:[%s708 + $0x448] sm:$0xff]
      %v4044 = vld [vmem:[%s708 + $0x450] sm:$0xff]
      %v4045 = vld [vmem:[%s708 + $0x458] sm:$0xff]
      %v4046 = vld [vmem:[%s708 + $0x460] sm:$0xff]
      %v4047 = vld [vmem:[%s708 + $0x468] sm:$0xff]
      %v4048 = vld [vmem:[%s708 + $0x470] sm:$0xff]
      %v4049 = vld [vmem:[%s708 + $0x478] sm:$0xff]
      %v4050 = vld [vmem:[%s708 + $0x480] sm:$0xff]
      %v4051 = vld [vmem:[%s708 + $0x488] sm:$0xff]
      %v4052 = vld [vmem:[%s708 + $0x490] sm:$0xff]
      %v4053 = vld [vmem:[%s708 + $0x498] sm:$0xff]
      %v4054 = vld [vmem:[%s708 + $0x4a0] sm:$0xff]
      %v4055 = vld [vmem:[%s708 + $0x4a8] sm:$0xff]
      %v4056 = vld [vmem:[%s708 + $0x4b0] sm:$0xff]
      %v4057 = vld [vmem:[%s708 + $0x4b8] sm:$0xff]
      %v4058 = vld [vmem:[%s708 + $0x4c0] sm:$0xff]
      %v4059 = vld [vmem:[%s708 + $0x4c8] sm:$0xff]
      %v4060 = vld [vmem:[%s708 + $0x4d0] sm:$0xff]
      %v4061 = vld [vmem:[%s708 + $0x4d8] sm:$0xff]
      %v4062 = vld [vmem:[%s708 + $0x4e0] sm:$0xff]
      %v4063 = vld [vmem:[%s708 + $0x4e8] sm:$0xff]
      %v4064 = vld [vmem:[%s708 + $0x4f0] sm:$0xff]
      %v4065 = vld [vmem:[%s708 + $0x4f8] sm:$0xff]
      %v4066 = vld [vmem:[%s708 + $0x500] sm:$0xff]
      %v4067 = vld [vmem:[%s708 + $0x508] sm:$0xff]
      %v4068 = vld [vmem:[%s708 + $0x510] sm:$0xff]
      %v4069 = vld [vmem:[%s708 + $0x518] sm:$0xff]
      %v4070 = vld [vmem:[%s708 + $0x520] sm:$0xff]
      %v4071 = vld [vmem:[%s708 + $0x528] sm:$0xff]
      %v4072 = vld [vmem:[%s708 + $0x530] sm:$0xff]
      %v4073 = vld [vmem:[%s708 + $0x538] sm:$0xff]
      %v4074 = vld [vmem:[%s708 + $0x540] sm:$0xff]
      %v4075 = vld [vmem:[%s708 + $0x548] sm:$0xff]
      %v4076 = vld [vmem:[%s708 + $0x550] sm:$0xff]
      %v4077 = vld [vmem:[%s708 + $0x558] sm:$0xff]
      %v4078 = vld [vmem:[%s708 + $0x560] sm:$0xff]
      %v4079 = vld [vmem:[%s708 + $0x568] sm:$0xff]
      %v4080 = vld [vmem:[%s708 + $0x570] sm:$0xff]
      %v4081 = vld [vmem:[%s708 + $0x578] sm:$0xff]
      %v4082 = vld [vmem:[%s708 + $0x580] sm:$0xff]
      %v4083 = vld [vmem:[%s708 + $0x588] sm:$0xff]
      %v4084 = vld [vmem:[%s708 + $0x590] sm:$0xff]
      %v4085 = vld [vmem:[%s708 + $0x598] sm:$0xff]
      %v4086 = vld [vmem:[%s708 + $0x5a0] sm:$0xff]
      %v4087 = vld [vmem:[%s708 + $0x5a8] sm:$0xff]
      %v4088 = vld [vmem:[%s708 + $0x5b0] sm:$0xff]
      %v4089 = vld [vmem:[%s708 + $0x5b8] sm:$0xff]
      %v4090 = vld [vmem:[%s708 + $0x5c0] sm:$0xff]
      %v4091 = vld [vmem:[%s708 + $0x5c8] sm:$0xff]
      %v4092 = vld [vmem:[%s708 + $0x5d0] sm:$0xff]
      %v4093 = vld [vmem:[%s708 + $0x5d8] sm:$0xff]
      %v4094 = vld [vmem:[%s708 + $0x5e0] sm:$0xff]
      %v4095 = vld [vmem:[%s708 + $0x5e8] sm:$0xff]
      %v4096 = vld [vmem:[%s708 + $0x5f0] sm:$0xff]
      %v4097 = vld [vmem:[%s708 + $0x5f8] sm:$0xff]
      %4098 = vmatprep.subr.mxu0 %v3937
      %4099 = vmatpush1.msra.mxu0 %v3936
      %4100 = vmatprep.subr.mxu0 %v3935
      %4101 = vmatpush1.msra.mxu0 %v3934
      %4102 = vmatprep.subr.mxu0 %v3933
      %4103 = vmatpush1.msra.mxu0 %v3932
      %4104 = vmatprep.subr.mxu0 %v3931
      %4105 = vmatpush1.msra.mxu0 %v3930
      %4106 = vmatprep.subr.mxu0 %v3929
      %4107 = vmatpush1.msra.mxu0 %v3928
      %4108 = vmatprep.subr.mxu0 %v3927
      %4109 = vmatpush1.msra.mxu0 %v3926
      %4110 = vmatprep.subr.mxu0 %v3925
      %4111 = vmatpush1.msra.mxu0 %v3924
      %4112 = vmatprep.subr.mxu0 %v3923
      %4113 = vmatpush1.msra.mxu0 %v3922
      %4114 = vmatprep.subr.mxu0 %v3921
      %4115 = vmatpush1.msra.mxu0 %v3920
      %4116 = vmatprep.subr.mxu0 %v3919
      %4117 = vmatpush1.msra.mxu0 %v3918
      %4118 = vmatprep.subr.mxu0 %v3917
      %4119 = vmatpush1.msra.mxu0 %v3916
      %4120 = vmatprep.subr.mxu0 %v3915
      %4121 = vmatpush1.msra.mxu0 %v3914
      %4122 = vmatprep.subr.mxu0 %v3913
      %4123 = vmatpush1.msra.mxu0 %v3912
      %4124 = vmatprep.subr.mxu0 %v3911
      %4125 = vmatpush1.msra.mxu0 %v3910
      %4126 = vmatprep.subr.mxu0 %v3909
      %4127 = vmatpush1.msra.mxu0 %v3908
      %4128 = vmatprep.subr.mxu0 %v3907
      %4129 = vmatpush1.msra.mxu0 %v3906
      %4130 = vmatprep.subr.mxu0 %v3969
      %4131 = vmatpush2.msra.mxu0 %v3968
      %4132 = vmatprep.subr.mxu0 %v3967
      %4133 = vmatpush2.msra.mxu0 %v3966
      %4134 = vmatprep.subr.mxu0 %v3965
      %4135 = vmatpush2.msra.mxu0 %v3964
      %4136 = vmatprep.subr.mxu0 %v3963
      %4137 = vmatpush2.msra.mxu0 %v3962
      %4138 = vmatprep.subr.mxu0 %v3961
      %4139 = vmatpush2.msra.mxu0 %v3960
      %4140 = vmatprep.subr.mxu0 %v3959
      %4141 = vmatpush2.msra.mxu0 %v3958
      %4142 = vmatprep.subr.mxu0 %v3957
      %4143 = vmatpush2.msra.mxu0 %v3956
      %4144 = vmatprep.subr.mxu0 %v3955
      %4145 = vmatpush2.msra.mxu0 %v3954
      %4146 = vmatprep.subr.mxu0 %v3953
      %4147 = vmatpush2.msra.mxu0 %v3952
      %4148 = vmatprep.subr.mxu0 %v3951
      %4149 = vmatpush2.msra.mxu0 %v3950
      %4150 = vmatprep.subr.mxu0 %v3949
      %4151 = vmatpush2.msra.mxu0 %v3948
      %4152 = vmatprep.subr.mxu0 %v3947
      %4153 = vmatpush2.msra.mxu0 %v3946
      %4154 = vmatprep.subr.mxu0 %v3945
      %4155 = vmatpush2.msra.mxu0 %v3944
      %4156 = vmatprep.subr.mxu0 %v3943
      %4157 = vmatpush2.msra.mxu0 %v3942
      %4158 = vmatprep.subr.mxu0 %v3941
      %4159 = vmatpush2.msra.mxu0 %v3940
      %4160 = vmatprep.subr.mxu0 %v3939
      %4161 = vmatpush2.msra.mxu0 %v3938
      %4162 = vmatprep.mubr.f32.mxu0 %v3895
      %4163 = vmatmul.mubr.f32.gmra.mxu0 %v3894
      %v4164 = vpop.f32.mrf.mxu0
      %v4165 = vadd.f32 0.0, %v4164
      %v4166 = vpop.f32.mrf.mxu0
      %v4167 = vadd.f32 0.0, %v4166
      %4168 = vmatprep.mubr.f32.mxu0 %v3901
      %4169 = vmatmul.mubr.f32.gmra.mxu0 %v3900
      %v4170 = vpop.f32.mrf.mxu0
      %v4171 = vadd.f32 0.0, %v4170
      %v4172 = vpop.f32.mrf.mxu0
      %v4173 = vadd.f32 0.0, %v4172
      %4174 = vdwg.mxu0
      %4175 = vmatprep.subr.mxu0 %v4001
      %4176 = vmatpush1.msra.mxu0 %v4000
      %4177 = vmatprep.subr.mxu0 %v3999
      %4178 = vmatpush1.msra.mxu0 %v3998
      %4179 = vmatprep.subr.mxu0 %v3997
      %4180 = vmatpush1.msra.mxu0 %v3996
      %4181 = vmatprep.subr.mxu0 %v3995
      %4182 = vmatpush1.msra.mxu0 %v3994
      %4183 = vmatprep.subr.mxu0 %v3993
      %4184 = vmatpush1.msra.mxu0 %v3992
      %4185 = vmatprep.subr.mxu0 %v3991
      %4186 = vmatpush1.msra.mxu0 %v3990
      %4187 = vmatprep.subr.mxu0 %v3989
      %4188 = vmatpush1.msra.mxu0 %v3988
      %4189 = vmatprep.subr.mxu0 %v3987
      %4190 = vmatpush1.msra.mxu0 %v3986
      %4191 = vmatprep.subr.mxu0 %v3985
      %4192 = vmatpush1.msra.mxu0 %v3984
      %4193 = vmatprep.subr.mxu0 %v3983
      %4194 = vmatpush1.msra.mxu0 %v3982
      %4195 = vmatprep.subr.mxu0 %v3981
      %4196 = vmatpush1.msra.mxu0 %v3980
      %4197 = vmatprep.subr.mxu0 %v3979
      %4198 = vmatpush1.msra.mxu0 %v3978
      %4199 = vmatprep.subr.mxu0 %v3977
      %4200 = vmatpush1.msra.mxu0 %v3976
      %4201 = vmatprep.subr.mxu0 %v3975
      %4202 = vmatpush1.msra.mxu0 %v3974
      %4203 = vmatprep.subr.mxu0 %v3973
      %4204 = vmatpush1.msra.mxu0 %v3972
      %4205 = vmatprep.subr.mxu0 %v3971
      %4206 = vmatpush1.msra.mxu0 %v3970
      %4207 = vmatprep.subr.mxu0 %v4033
      %4208 = vmatpush2.msra.mxu0 %v4032
      %4209 = vmatprep.subr.mxu0 %v4031
      %4210 = vmatpush2.msra.mxu0 %v4030
      %4211 = vmatprep.subr.mxu0 %v4029
      %4212 = vmatpush2.msra.mxu0 %v4028
      %4213 = vmatprep.subr.mxu0 %v4027
      %4214 = vmatpush2.msra.mxu0 %v4026
      %4215 = vmatprep.subr.mxu0 %v4025
      %4216 = vmatpush2.msra.mxu0 %v4024
      %4217 = vmatprep.subr.mxu0 %v4023
      %4218 = vmatpush2.msra.mxu0 %v4022
      %4219 = vmatprep.subr.mxu0 %v4021
      %4220 = vmatpush2.msra.mxu0 %v4020
      %4221 = vmatprep.subr.mxu0 %v4019
      %4222 = vmatpush2.msra.mxu0 %v4018
      %4223 = vmatprep.subr.mxu0 %v4017
      %4224 = vmatpush2.msra.mxu0 %v4016
      %4225 = vmatprep.subr.mxu0 %v4015
      %4226 = vmatpush2.msra.mxu0 %v4014
      %4227 = vmatprep.subr.mxu0 %v4013
      %4228 = vmatpush2.msra.mxu0 %v4012
      %4229 = vmatprep.subr.mxu0 %v4011
      %4230 = vmatpush2.msra.mxu0 %v4010
      %4231 = vmatprep.subr.mxu0 %v4009
      %4232 = vmatpush2.msra.mxu0 %v4008
      %4233 = vmatprep.subr.mxu0 %v4007
      %4234 = vmatpush2.msra.mxu0 %v4006
      %4235 = vmatprep.subr.mxu0 %v4005
      %4236 = vmatpush2.msra.mxu0 %v4004
      %4237 = vmatprep.subr.mxu0 %v4003
      %4238 = vmatpush2.msra.mxu0 %v4002
      %4239 = vmatprep.mubr.f32.mxu0 %v3897
      %4240 = vmatmul.mubr.f32.gmra.mxu0 %v3896
      %v4241 = vpop.f32.mrf.mxu0
      %v4242 = vadd.f32 %v4165, %v4241
      %v4243 = vpop.f32.mrf.mxu0
      %v4244 = vadd.f32 %v4167, %v4243
      %4245 = vmatprep.mubr.f32.mxu0 %v3903
      %4246 = vmatmul.mubr.f32.gmra.mxu0 %v3902
      %v4247 = vpop.f32.mrf.mxu0
      %v4248 = vadd.f32 %v4171, %v4247
      %v4249 = vpop.f32.mrf.mxu0
      %v4250 = vadd.f32 %v4173, %v4249
      %4251 = vdwg.mxu0
      %4252 = vmatprep.subr.mxu0 %v4065
      %4253 = vmatpush1.msra.mxu0 %v4064
      %4254 = vmatprep.subr.mxu0 %v4063
      %4255 = vmatpush1.msra.mxu0 %v4062
      %4256 = vmatprep.subr.mxu0 %v4061
      %4257 = vmatpush1.msra.mxu0 %v4060
      %4258 = vmatprep.subr.mxu0 %v4059
      %4259 = vmatpush1.msra.mxu0 %v4058
      %4260 = vmatprep.subr.mxu0 %v4057
      %4261 = vmatpush1.msra.mxu0 %v4056
      %4262 = vmatprep.subr.mxu0 %v4055
      %4263 = vmatpush1.msra.mxu0 %v4054
      %4264 = vmatprep.subr.mxu0 %v4053
      %4265 = vmatpush1.msra.mxu0 %v4052
      %4266 = vmatprep.subr.mxu0 %v4051
      %4267 = vmatpush1.msra.mxu0 %v4050
      %4268 = vmatprep.subr.mxu0 %v4049
      %4269 = vmatpush1.msra.mxu0 %v4048
      %4270 = vmatprep.subr.mxu0 %v4047
      %4271 = vmatpush1.msra.mxu0 %v4046
      %4272 = vmatprep.subr.mxu0 %v4045
      %4273 = vmatpush1.msra.mxu0 %v4044
      %4274 = vmatprep.subr.mxu0 %v4043
      %4275 = vmatpush1.msra.mxu0 %v4042
      %4276 = vmatprep.subr.mxu0 %v4041
      %4277 = vmatpush1.msra.mxu0 %v4040
      %4278 = vmatprep.subr.mxu0 %v4039
      %4279 = vmatpush1.msra.mxu0 %v4038
      %4280 = vmatprep.subr.mxu0 %v4037
      %4281 = vmatpush1.msra.mxu0 %v4036
      %4282 = vmatprep.subr.mxu0 %v4035
      %4283 = vmatpush1.msra.mxu0 %v4034
      %4284 = vmatprep.subr.mxu0 %v4097
      %4285 = vmatpush2.msra.mxu0 %v4096
      %4286 = vmatprep.subr.mxu0 %v4095
      %4287 = vmatpush2.msra.mxu0 %v4094
      %4288 = vmatprep.subr.mxu0 %v4093
      %4289 = vmatpush2.msra.mxu0 %v4092
      %4290 = vmatprep.subr.mxu0 %v4091
      %4291 = vmatpush2.msra.mxu0 %v4090
      %4292 = vmatprep.subr.mxu0 %v4089
      %4293 = vmatpush2.msra.mxu0 %v4088
      %4294 = vmatprep.subr.mxu0 %v4087
      %4295 = vmatpush2.msra.mxu0 %v4086
      %4296 = vmatprep.subr.mxu0 %v4085
      %4297 = vmatpush2.msra.mxu0 %v4084
      %4298 = vmatprep.subr.mxu0 %v4083
      %4299 = vmatpush2.msra.mxu0 %v4082
      %4300 = vmatprep.subr.mxu0 %v4081
      %4301 = vmatpush2.msra.mxu0 %v4080
      %4302 = vmatprep.subr.mxu0 %v4079
      %4303 = vmatpush2.msra.mxu0 %v4078
      %4304 = vmatprep.subr.mxu0 %v4077
      %4305 = vmatpush2.msra.mxu0 %v4076
      %4306 = vmatprep.subr.mxu0 %v4075
      %4307 = vmatpush2.msra.mxu0 %v4074
      %4308 = vmatprep.subr.mxu0 %v4073
      %4309 = vmatpush2.msra.mxu0 %v4072
      %4310 = vmatprep.subr.mxu0 %v4071
      %4311 = vmatpush2.msra.mxu0 %v4070
      %4312 = vmatprep.subr.mxu0 %v4069
      %4313 = vmatpush2.msra.mxu0 %v4068
      %4314 = vmatprep.subr.mxu0 %v4067
      %4315 = vmatpush2.msra.mxu0 %v4066
      %4316 = vmatprep.mubr.f32.mxu0 %v3899
      %4317 = vmatmul.mubr.f32.gmra.mxu0 %v3898
      %v4318 = vpop.f32.mrf.mxu0
      %v4319 = vadd.f32 %v4242, %v4318
      %v4320 = vpop.f32.mrf.mxu0
      %v4321 = vadd.f32 %v4244, %v4320
      %4322 = vmatprep.mubr.f32.mxu0 %v3905
      %4323 = vmatmul.mubr.f32.gmra.mxu0 %v3904
      %v4324 = vpop.f32.mrf.mxu0
      %v4325 = vadd.f32 %v4248, %v4324
      %v4326 = vpop.f32.mrf.mxu0
      %v4327 = vadd.f32 %v4250, %v4326
      %4328 = vdwg.mxu0
      %v4329 = vadd.f32 %v3409, %v4319
      %v4330 = vadd.f32 %v3410, %v4321
      %v4331 = vadd.f32 %v3411, %v4325
      %v4332 = vadd.f32 %v3412, %v4327
      %v4333 = vld [vmem:[%s712] sm:$0x3]
      %v4335 = vlaneseq
      %v4336 = vshrl.u32 %v4335, 7
      %v4337 = vsub.s32 0, %v4336
      %v4338 = vrot.slane %v4333, %v4337
      %v4339 = vlaneseq
      %v4340 = vshrl.u32 %v4339, 7
      %v4341 = vsub.s32 1, %v4340
      %v4342 = vrot.slane %v4333, %v4341
      %v4345 = vadd.f32 %v4329, %v4338
      %v4346 = vadd.f32 %v4330, %v4342
      %v4347 = vadd.f32 %v4331, %v4338
      %v4348 = vadd.f32 %v4332, %v4342
      %4349 = vst [vmem:[#allocation2] sm:$0xff] %v4345
      %4350 = vst.msk [vmem:[#allocation2 + $0x8] sm:$0xff] %vm732, %v4346
      %4351 = vst [vmem:[#allocation2 + $0x10] sm:$0xff] %v4347
      %4352 = vst.msk [vmem:[#allocation2 + $0x18] sm:$0xff] %vm732, %v4348
      %p4353 = scmp.eq.s32.totalorder %s28, 5
      // Predicated region
      $region93: #{_lambda_.1} parent=87 // pred_check
        %p4354 = pneg %p4353
      $region94: #{_lambda_.1} parent=87 // pred_check_branch
        %4356 = sbr.rel (%p4354) target = $region96
      $region95: #{_lambda_.1} parent=87 // pred_region
        %v4357 = vld [vmem:[%s13] sm:$0x3]
        %v4358 = vld [vmem:[%s14] sm:$0x3]
        %v4359 = vsel %vm732, %v4346, 0.0
        %v4360 = vadd.f32 %v4345, %v4359
        %4361 = vadd.xlane.f32.xlu0 %v4360
        %v4362 = vpop.xlane.xlu0 %4361
        %v4363 = vsel %vm732, %v4348, 0.0
        %v4364 = vadd.f32 %v4347, %v4363
        %4365 = vadd.xlane.f32.xlu0 %v4364
        %v4366 = vpop.xlane.xlu0 %4365
        %v4367 = vmul.f32 %v4362, %v741
        %v4368 = vmul.f32 %v4366, %v741
        %v4369 = vsub.f32 %v4345, %v4367
        %v4370 = vsub.f32 %v4346, %v4367
        %v4371 = vsub.f32 %v4347, %v4368
        %v4372 = vsub.f32 %v4348, %v4368
        %v4373 = vmul.f32 %v4369, %v4369
        %v4374 = vmul.f32 %v4370, %v4370
        %v4375 = vmul.f32 %v4371, %v4371
        %v4376 = vmul.f32 %v4372, %v4372
        %v4377 = vsel %vm732, %v4374, 0.0
        %v4378 = vadd.f32 %v4373, %v4377
        %4379 = vadd.xlane.f32.xlu0 %v4378
        %v4380 = vpop.xlane.xlu0 %4379
        %v4381 = vsel %vm732, %v4376, 0.0
        %v4382 = vadd.f32 %v4375, %v4381
        %4383 = vadd.xlane.f32.xlu0 %v4382
        %v4384 = vpop.xlane.xlu0 %4383
        %v4385 = vmul.f32 %v4380, %v741
        %v4386 = vmul.f32 %v4384, %v741
        %v4387 = vadd.f32 %v4385, 1e-05
        %v4388 = vadd.f32 %v4386, 1e-05
        %v4389 = vrsqrt.pop %v4387
        %v4390 = vrsqrt.pop %v4388
        %v4391 = vmul.f32 %v4369, %v4389
        %v4392 = vmul.f32 %v4370, %v4389
        %v4393 = vmul.f32 %v4371, %v4390
        %v4394 = vmul.f32 %v4372, %v4390
        %v4396 = vlaneseq
        %v4397 = vshrl.u32 %v4396, 7
        %v4398 = vsub.s32 0, %v4397
        %v4399 = vrot.slane %v4357, %v4398
        %v4400 = vlaneseq
        %v4401 = vshrl.u32 %v4400, 7
        %v4402 = vsub.s32 1, %v4401
        %v4403 = vrot.slane %v4357, %v4402
        %v4406 = vmul.f32 %v4391, %v4399
        %v4407 = vmul.f32 %v4392, %v4403
        %v4408 = vmul.f32 %v4393, %v4399
        %v4409 = vmul.f32 %v4394, %v4403
        %v4411 = vlaneseq
        %v4412 = vshrl.u32 %v4411, 7
        %v4413 = vsub.s32 0, %v4412
        %v4414 = vrot.slane %v4358, %v4413
        %v4415 = vlaneseq
        %v4416 = vshrl.u32 %v4415, 7
        %v4417 = vsub.s32 1, %v4416
        %v4418 = vrot.slane %v4358, %v4417
        %v4421 = vadd.f32 %v4406, %v4414
        %v4422 = vadd.f32 %v4407, %v4418
        %v4423 = vadd.f32 %v4408, %v4414
        %v4424 = vadd.f32 %v4409, %v4418
        %v4425 = vld [vmem:[%s15] sm:$0xff]
        %v4426 = vld [vmem:[%s15 + $0x8] sm:$0xff]
        %v4427 = vld [vmem:[%s15 + $0x10] sm:$0xff]
        %v4428 = vld [vmem:[%s15 + $0x18] sm:$0xff]
        %v4429 = vld [vmem:[%s15 + $0x20] sm:$0xff]
        %v4430 = vld [vmem:[%s15 + $0x28] sm:$0xff]
        %v4431 = vld [vmem:[%s15 + $0x30] sm:$0xff]
        %v4432 = vld [vmem:[%s15 + $0x38] sm:$0xff]
        %v4433 = vld [vmem:[%s15 + $0x40] sm:$0xff]
        %v4434 = vld [vmem:[%s15 + $0x48] sm:$0xff]
        %v4435 = vld [vmem:[%s15 + $0x50] sm:$0xff]
        %v4436 = vld [vmem:[%s15 + $0x58] sm:$0xff]
        %v4437 = vld [vmem:[%s15 + $0x60] sm:$0xff]
        %v4438 = vld [vmem:[%s15 + $0x68] sm:$0xff]
        %v4439 = vld [vmem:[%s15 + $0x70] sm:$0xff]
        %v4440 = vld [vmem:[%s15 + $0x78] sm:$0xff]
        %v4441 = vld [vmem:[%s15 + $0x80] sm:$0xff]
        %v4442 = vld [vmem:[%s15 + $0x88] sm:$0xff]
        %v4443 = vld [vmem:[%s15 + $0x90] sm:$0xff]
        %v4444 = vld [vmem:[%s15 + $0x98] sm:$0xff]
        %v4445 = vld [vmem:[%s15 + $0xa0] sm:$0xff]
        %v4446 = vld [vmem:[%s15 + $0xa8] sm:$0xff]
        %v4447 = vld [vmem:[%s15 + $0xb0] sm:$0xff]
        %v4448 = vld [vmem:[%s15 + $0xb8] sm:$0xff]
        %v4449 = vld [vmem:[%s16] sm:$0x1]
        %v4451 = vlaneseq
        %v4452 = vshrl.u32 %v4451, 7
        %v4453 = vsub.s32 0, %v4452
        %v4454 = vrot.slane %v4449, %v4453
        %v4457 = vsel %vm732, %v4422, 0
        %v4460 = vsel %vm732, %v4424, 0
        %4462 = vmatprep.subr.mxu0 0.0
        %4463 = vmatpush1.msra.mxu0 %v4440
        %4464 = vmatprep.subr.mxu0 0.0
        %4465 = vmatpush1.msra.mxu0 %v4439
        %4466 = vmatprep.subr.mxu0 0.0
        %4467 = vmatpush1.msra.mxu0 %v4438
        %4468 = vmatprep.subr.mxu0 0.0
        %4469 = vmatpush1.msra.mxu0 %v4437
        %4470 = vmatprep.subr.mxu0 0.0
        %4471 = vmatpush1.msra.mxu0 %v4436
        %4472 = vmatprep.subr.mxu0 0.0
        %4473 = vmatpush1.msra.mxu0 %v4435
        %4474 = vmatprep.subr.mxu0 0.0
        %4475 = vmatpush1.msra.mxu0 %v4434
        %4476 = vmatprep.subr.mxu0 0.0
        %4477 = vmatpush1.msra.mxu0 %v4433
        %4478 = vmatprep.subr.mxu0 0.0
        %4479 = vmatpush1.msra.mxu0 %v4432
        %4480 = vmatprep.subr.mxu0 0.0
        %4481 = vmatpush1.msra.mxu0 %v4431
        %4482 = vmatprep.subr.mxu0 0.0
        %4483 = vmatpush1.msra.mxu0 %v4430
        %4484 = vmatprep.subr.mxu0 0.0
        %4485 = vmatpush1.msra.mxu0 %v4429
        %4486 = vmatprep.subr.mxu0 0.0
        %4487 = vmatpush1.msra.mxu0 %v4428
        %4488 = vmatprep.subr.mxu0 0.0
        %4489 = vmatpush1.msra.mxu0 %v4427
        %4490 = vmatprep.subr.mxu0 0.0
        %4491 = vmatpush1.msra.mxu0 %v4426
        %4492 = vmatprep.subr.mxu0 0.0
        %4493 = vmatpush1.msra.mxu0 %v4425
        %4494 = vmatprep.subr.mxu0 0.0
        %4495 = vmatpush2.msra.mxu0 0.0
        %4496 = vmatprep.subr.mxu0 0.0
        %4497 = vmatpush2.msra.mxu0 0.0
        %4498 = vmatprep.subr.mxu0 0.0
        %4499 = vmatpush2.msra.mxu0 0.0
        %4500 = vmatprep.subr.mxu0 0.0
        %4501 = vmatpush2.msra.mxu0 0.0
        %4502 = vmatprep.subr.mxu0 0.0
        %4503 = vmatpush2.msra.mxu0 0.0
        %4504 = vmatprep.subr.mxu0 0.0
        %4505 = vmatpush2.msra.mxu0 0.0
        %4506 = vmatprep.subr.mxu0 0.0
        %4507 = vmatpush2.msra.mxu0 0.0
        %4508 = vmatprep.subr.mxu0 0.0
        %4509 = vmatpush2.msra.mxu0 0.0
        %4510 = vmatprep.subr.mxu0 0.0
        %4511 = vmatpush2.msra.mxu0 %v4448
        %4512 = vmatprep.subr.mxu0 0.0
        %4513 = vmatpush2.msra.mxu0 %v4447
        %4514 = vmatprep.subr.mxu0 0.0
        %4515 = vmatpush2.msra.mxu0 %v4446
        %4516 = vmatprep.subr.mxu0 0.0
        %4517 = vmatpush2.msra.mxu0 %v4445
        %4518 = vmatprep.subr.mxu0 0.0
        %4519 = vmatpush2.msra.mxu0 %v4444
        %4520 = vmatprep.subr.mxu0 0.0
        %4521 = vmatpush2.msra.mxu0 %v4443
        %4522 = vmatprep.subr.mxu0 0.0
        %4523 = vmatpush2.msra.mxu0 %v4442
        %4524 = vmatprep.subr.mxu0 0.0
        %4525 = vmatpush2.msra.mxu0 %v4441
        %4526 = vmatprep.mubr.f32.mxu0 %v4457
        %4527 = vmatmul.mubr.f32.gmra.mxu0 %v4421
        %v4528 = vpop.f32.mrf.mxu0
        %v4529 = vadd.f32 %v4454, %v4528
        %v4530 = vpop.f32.mrf.mxu0
        %4531 = vmatprep.mubr.f32.mxu0 %v4460
        %4532 = vmatmul.mubr.f32.gmra.mxu0 %v4423
        %v4533 = vpop.f32.mrf.mxu0
        %v4534 = vadd.f32 %v4454, %v4533
        %v4535 = vpop.f32.mrf.mxu0
        %4536 = vdwg.mxu0
        %4537 = vst [vmem:[%s17] sm:$0xff] %v4529
        %4538 = vst [vmem:[%s17 + $0x8] sm:$0xff] %v4534
      $region96: #{_lambda_.1} parent=87 // pred_fallthru
        _
      // Predicated region
      $region97: #{_lambda_.1} parent=87 // pred_check
        %p4539 = pneg %p453
      $region98: #{_lambda_.1} parent=87 // pred_check_branch
        %4541 = sbr.rel (%p4539) target = $region100
      $region99: #{_lambda_.1} parent=87 // pred_region
        _
      $region100: #{_lambda_.1} parent=87 // pred_fallthru
        _
      // Predicated region
      $region101: #{_lambda_.1} parent=87 // pred_check
        %p4542 = pneg %p453
      $region102: #{_lambda_.1} parent=87 // pred_check_branch
        %4544 = sbr.rel (%p4542) target = $region104
      $region103: #{_lambda_.1} parent=87 // pred_region
        _
      $region104: #{_lambda_.1} parent=87 // pred_fallthru
        _
    $region88: #{_lambda_.1} parent=5 // pred_fallthru
      _
    %p4545 = scmp.le.s32.totalorder 2, %s23
    // Predicated region
    $region105: #{_lambda_.1} parent=5 // pred_check
      %p4546 = pneg %p4545
    $region106: #{_lambda_.1} parent=5 // pred_check_branch
      %4548 = sbr.rel (%p4546) target = $region108
    $region107: #{_lambda_.1} parent=5 // pred_region
      %s4549 = ssub.s32 %s23, 2
    $region108: #{_lambda_.1} parent=5 // pred_fallthru
      _
  $region6: #{_lambda_.1} parent=0 // loop_footer
    %s27 = sadd.s32 1, %s23
  $region7: #{_lambda_.1} parent=0 // loop_footer_branch
    %22 = sbr.rel target = $region3
  $region8: #{_lambda_.1} parent=0 // loop_exit
    _

</llo_original>
